<compile_context>
chip_gen: v7x
topology: tpu7x:2x2x1
jax: 0.10.0
libtpu: 0.0.40
codegen_flags: <defaults>
</compile_context>

<pallas_src>
import functools

import jax
import jax.numpy as jnp
from jax.experimental import pallas as pl
from jax.experimental.pallas import tpu as pltpu


def _round_up(x, m):
    return ((x + m - 1) // m) * m


# ---------------------------------------------------------------------------
# Fused kernel: single invocation, whole layer chain traced as a Python loop.
#   refs = [x, w_0..w_{L-1} (int8), s_0..s_{L-1} (f32 per-col scale),
#           b_0..b_{L-1} (f32), enc_out, dec_out]
#   All refs are full-array VMEM blocks (total ~1-2 MiB at demo scale).
# ---------------------------------------------------------------------------
def _fused_autoencoder_kernel(*refs, n_layers, n_enc):
    x_ref = refs[0]
    w_refs = refs[1:1 + n_layers]
    s_refs = refs[1 + n_layers:1 + 2 * n_layers]
    b_refs = refs[1 + 2 * n_layers:1 + 3 * n_layers]
    enc_ref = refs[1 + 3 * n_layers]
    dec_ref = refs[2 + 3 * n_layers]

    h = x_ref[...].astype(jnp.bfloat16)            # running activation, bf16
    for l in range(n_layers):
        # Dequantize int8 weight on the VPU (free slot) -> bf16 MXU operand.
        w = (w_refs[l][...].astype(jnp.float32) * s_refs[l][...]).astype(jnp.bfloat16)
        y = jnp.dot(h, w, preferred_element_type=jnp.float32) + b_refs[l][...]
        if l == n_layers - 1:                      # final decoder layer: no ReLU
            dec_ref[...] = y
        else:
            a = jnp.maximum(y, 0.0)                # ReLU computed once, reused
            if l == n_enc - 1:                     # encoder output (post-ReLU)
                enc_ref[...] = a
            h = a.astype(jnp.bfloat16)


def fused_autoencoder_call(x_pad, w_q, w_s, b_p, *, n_enc):
    n_layers = len(w_q)
    M = x_pad.shape[0]
    latent_pad = w_q[n_enc - 1].shape[1]
    out_pad = w_q[-1].shape[1]
    kernel = functools.partial(_fused_autoencoder_kernel,
                               n_layers=n_layers, n_enc=n_enc)
    vmem = pl.BlockSpec(memory_space=pltpu.MemorySpace.VMEM)
    return pl.pallas_call(
        kernel,
        out_shape=(jax.ShapeDtypeStruct((M, latent_pad), jnp.float32),
                   jax.ShapeDtypeStruct((M, out_pad), jnp.float32)),
        in_specs=[vmem] * (1 + 3 * n_layers),
        out_specs=(vmem, vmem),
    )(x_pad, *w_q, *w_s, *b_p)


def autoencoder_apply(x, w_q, w_s, b_p, *, n_enc, latent_dim, input_size):
    """Pads batch/features, runs the fused kernel, slices back to native shapes."""
    batch, in_dim = x.shape
    in_pad = w_q[0].shape[0]
    M = max(8, _round_up(batch, 8))                # f32 sublane multiple
    x_pad = jnp.zeros((M, in_pad), jnp.float32).at[:batch, :in_dim].set(x)
    enc, dec = fused_autoencoder_call(x_pad, w_q, w_s, b_p, n_enc=n_enc)
    return enc[:batch, :latent_dim], dec[:batch, :input_size]


# ---------------------------------------------------------------------------
# Parameter setup (glue): native-size init + ragged per-layer pad / int8 quant.
# ---------------------------------------------------------------------------
def init_autoencoder_params(key, input_size, latent_dim, hidden_dims):
    """PyTorch-default-style init (uniform +-1/sqrt(fan_in)); weights stored
    transposed as (in_features, out_features)."""
    enc_dims = [input_size, *hidden_dims, latent_dim]
    dec_dims = [latent_dim, *reversed(hidden_dims), input_size]
    layer_dims = (list(zip(enc_dims[:-1], enc_dims[1:]))
                  + list(zip(dec_dims[:-1], dec_dims[1:])))
    params = []
    for d_in, d_out in layer_dims:
        key, kw, kb = jax.random.split(key, 3)
        bound = 1.0 / jnp.sqrt(d_in)
        w = jax.random.uniform(kw, (d_in, d_out), jnp.float32, -bound, bound)
        b = jax.random.uniform(kb, (d_out,), jnp.float32, -bound, bound)
        params.append((w, b))
    n_enc = len(enc_dims) - 1
    return params, n_enc


def pack_params(params):
    """Ragged packing: each layer padded only to its own 128-multiples, then
    int8 per-output-channel symmetric quantization (scale kept in f32)."""
    w_q, w_s, b_p = [], [], []
    for w, b in params:
        k, n = w.shape
        kp, npad = _round_up(k, 128), _round_up(n, 128)
        wp = jnp.zeros((kp, npad), jnp.float32).at[:k, :n].set(w)
        amax = jnp.max(jnp.abs(wp), axis=0, keepdims=True)          # (1, npad)
        scale = jnp.where(amax > 0, amax / 127.0, 1.0).astype(jnp.float32)
        q = jnp.clip(jnp.round(wp / scale), -127, 127).astype(jnp.int8)
        bp = jnp.zeros((1, npad), jnp.float32).at[0, :n].set(b)
        w_q.append(q)
        w_s.append(scale)
        b_p.append(bp)
    return w_q, w_s, b_p


if __name__ == "__main__":
    # Small stand-ins for the original (huge) widths; same 10-layer structure:
    #   encoder: in -> h1 -> h2 -> h3 -> h4 -> latent, ReLU after every layer
    #   decoder: latent -> h4 -> h3 -> h2 -> h1 -> in, ReLU on all but the last
    batch = 4
    input_size = 250          # deliberately not 128-aligned (exercises padding)
    latent_dim = 128
    hidden_dims = (512, 384, 200, 160)

    key = jax.random.PRNGKey(0)
    key, kx = jax.random.split(key)
    x = jax.random.normal(kx, (batch, input_size), dtype=jnp.float32)

    params, n_enc = init_autoencoder_params(key, input_size, latent_dim, hidden_dims)
    w_q, w_s, b_p = pack_params(params)

    fwd = jax.jit(functools.partial(
        autoencoder_apply, n_enc=n_enc, latent_dim=latent_dim, input_size=input_size))
    encoded, decoded = fwd(x, w_q, w_s, b_p)
    jax.block_until_ready((encoded, decoded))

    # Reference in plain JAX using the SAME int8-dequantized bf16 weights /
    # f32 accumulation, so the comparison isolates the kernel, not the quant.
    def ref_forward(x, w_q, w_s, b_p, n_enc):
        in_pad = w_q[0].shape[0]
        h = jnp.zeros((x.shape[0], in_pad), jnp.float32).at[:, :x.shape[1]].set(x)
        h = h.astype(jnp.bfloat16)
        enc = dec = None
        for l in range(len(w_q)):
            w = (w_q[l].astype(jnp.float32) * w_s[l]).astype(jnp.bfloat16)
            y = jnp.dot(h, w, preferred_element_type=jnp.float32) + b_p[l]
            if l == len(w_q) - 1:
                dec = y
            else:
                a = jnp.maximum(y, 0.0)
                if l == n_enc - 1:
                    enc = a
                h = a.astype(jnp.bfloat16)
        return enc[:, :latent_dim], dec[:, :input_size]

    e_ref, d_ref = ref_forward(x, w_q, w_s, b_p, n_enc)
    assert encoded.shape == (batch, latent_dim)
    assert decoded.shape == (batch, input_size)
    assert jnp.allclose(encoded, e_ref, atol=2e-2, rtol=2e-2)
    assert jnp.allclose(decoded, d_ref, atol=2e-2, rtol=2e-2)

    print("KERNEL_OK")
</pallas_src>

<mosaic_0001>
module attributes {stable_mosaic.version = 11 : i64} {
  func.func @_fused_autoencoder_kernel(%arg0: memref<8x256xf32, #tpu.memory_space<vmem>>, %arg1: memref<256x512xi8, #tpu.memory_space<vmem>>, %arg2: memref<512x384xi8, #tpu.memory_space<vmem>>, %arg3: memref<384x256xi8, #tpu.memory_space<vmem>>, %arg4: memref<256x256xi8, #tpu.memory_space<vmem>>, %arg5: memref<256x128xi8, #tpu.memory_space<vmem>>, %arg6: memref<128x256xi8, #tpu.memory_space<vmem>>, %arg7: memref<256x256xi8, #tpu.memory_space<vmem>>, %arg8: memref<256x384xi8, #tpu.memory_space<vmem>>, %arg9: memref<384x512xi8, #tpu.memory_space<vmem>>, %arg10: memref<512x256xi8, #tpu.memory_space<vmem>>, %arg11: memref<1x512xf32, #tpu.memory_space<vmem>>, %arg12: memref<1x384xf32, #tpu.memory_space<vmem>>, %arg13: memref<1x256xf32, #tpu.memory_space<vmem>>, %arg14: memref<1x256xf32, #tpu.memory_space<vmem>>, %arg15: memref<1x128xf32, #tpu.memory_space<vmem>>, %arg16: memref<1x256xf32, #tpu.memory_space<vmem>>, %arg17: memref<1x256xf32, #tpu.memory_space<vmem>>, %arg18: memref<1x384xf32, #tpu.memory_space<vmem>>, %arg19: memref<1x512xf32, #tpu.memory_space<vmem>>, %arg20: memref<1x256xf32, #tpu.memory_space<vmem>>, %arg21: memref<1x512xf32, #tpu.memory_space<vmem>>, %arg22: memref<1x384xf32, #tpu.memory_space<vmem>>, %arg23: memref<1x256xf32, #tpu.memory_space<vmem>>, %arg24: memref<1x256xf32, #tpu.memory_space<vmem>>, %arg25: memref<1x128xf32, #tpu.memory_space<vmem>>, %arg26: memref<1x256xf32, #tpu.memory_space<vmem>>, %arg27: memref<1x256xf32, #tpu.memory_space<vmem>>, %arg28: memref<1x384xf32, #tpu.memory_space<vmem>>, %arg29: memref<1x512xf32, #tpu.memory_space<vmem>>, %arg30: memref<1x256xf32, #tpu.memory_space<vmem>>, %arg31: memref<8x128xf32, #tpu.memory_space<vmem>>, %arg32: memref<8x256xf32, #tpu.memory_space<vmem>>) attributes {dimension_semantics = [], scalar_prefetch = 0 : i64, scratch_operands = 0 : i64, tpu.core_type = #tpu.core_type<tc>} {
    %c0 = arith.constant 0 : index
    %c0_0 = arith.constant 0 : index
    %0 = vector.load %arg0[%c0, %c0_0] : memref<8x256xf32, #tpu.memory_space<vmem>>, vector<8x256xf32>
    %1 = arith.truncf %0 : vector<8x256xf32> to vector<8x256xbf16>
    %c0_1 = arith.constant 0 : index
    %c0_2 = arith.constant 0 : index
    %2 = vector.load %arg1[%c0_1, %c0_2] : memref<256x512xi8, #tpu.memory_space<vmem>>, vector<256x512xi8>
    %3 = arith.sitofp %2 : vector<256x512xi8> to vector<256x512xf32>
    %c0_3 = arith.constant 0 : index
    %c0_4 = arith.constant 0 : index
    %4 = vector.load %arg11[%c0_3, %c0_4] : memref<1x512xf32, #tpu.memory_space<vmem>>, vector<1x512xf32>
    %5 = vector.broadcast %4 : vector<1x512xf32> to vector<256x512xf32>
    %6 = arith.mulf %3, %5 : vector<256x512xf32>
    %7 = arith.truncf %6 : vector<256x512xf32> to vector<256x512xbf16>
    %cst = arith.constant dense<0.000000e+00> : vector<8x512xf32>
    %8 = tpu.matmul %1, %7, %cst {dimension_numbers = #tpu.dot_dimension_numbers<[1], [0], [0], [1], [0, 0, 1, 1], [], []>} : vector<8x256xbf16>, vector<256x512xbf16>, vector<8x512xf32> -> vector<8x512xf32>
    %c0_5 = arith.constant 0 : index
    %c0_6 = arith.constant 0 : index
    %9 = vector.load %arg21[%c0_5, %c0_6] : memref<1x512xf32, #tpu.memory_space<vmem>>, vector<1x512xf32>
    %10 = vector.broadcast %9 : vector<1x512xf32> to vector<8x512xf32>
    %11 = arith.addf %8, %10 : vector<8x512xf32>
    %cst_7 = arith.constant 0.000000e+00 : f32
    %12 = vector.broadcast %cst_7 : f32 to vector<8x512xf32>
    %13 = arith.maximumf %11, %12 : vector<8x512xf32>
    %14 = arith.truncf %13 : vector<8x512xf32> to vector<8x512xbf16>
    %c0_8 = arith.constant 0 : index
    %c0_9 = arith.constant 0 : index
    %15 = vector.load %arg2[%c0_8, %c0_9] : memref<512x384xi8, #tpu.memory_space<vmem>>, vector<512x384xi8>
    %16 = arith.sitofp %15 : vector<512x384xi8> to vector<512x384xf32>
    %c0_10 = arith.constant 0 : index
    %c0_11 = arith.constant 0 : index
    %17 = vector.load %arg12[%c0_10, %c0_11] : memref<1x384xf32, #tpu.memory_space<vmem>>, vector<1x384xf32>
    %18 = vector.broadcast %17 : vector<1x384xf32> to vector<512x384xf32>
    %19 = arith.mulf %16, %18 : vector<512x384xf32>
    %20 = arith.truncf %19 : vector<512x384xf32> to vector<512x384xbf16>
    %cst_12 = arith.constant dense<0.000000e+00> : vector<8x384xf32>
    %21 = tpu.matmul %14, %20, %cst_12 {dimension_numbers = #tpu.dot_dimension_numbers<[1], [0], [0], [1], [0, 0, 1, 1], [], []>} : vector<8x512xbf16>, vector<512x384xbf16>, vector<8x384xf32> -> vector<8x384xf32>
    %c0_13 = arith.constant 0 : index
    %c0_14 = arith.constant 0 : index
    %22 = vector.load %arg22[%c0_13, %c0_14] : memref<1x384xf32, #tpu.memory_space<vmem>>, vector<1x384xf32>
    %23 = vector.broadcast %22 : vector<1x384xf32> to vector<8x384xf32>
    %24 = arith.addf %21, %23 : vector<8x384xf32>
    %cst_15 = arith.constant 0.000000e+00 : f32
    %25 = vector.broadcast %cst_15 : f32 to vector<8x384xf32>
    %26 = arith.maximumf %24, %25 : vector<8x384xf32>
    %27 = arith.truncf %26 : vector<8x384xf32> to vector<8x384xbf16>
    %c0_16 = arith.constant 0 : index
    %c0_17 = arith.constant 0 : index
    %28 = vector.load %arg3[%c0_16, %c0_17] : memref<384x256xi8, #tpu.memory_space<vmem>>, vector<384x256xi8>
    %29 = arith.sitofp %28 : vector<384x256xi8> to vector<384x256xf32>
    %c0_18 = arith.constant 0 : index
    %c0_19 = arith.constant 0 : index
    %30 = vector.load %arg13[%c0_18, %c0_19] : memref<1x256xf32, #tpu.memory_space<vmem>>, vector<1x256xf32>
    %31 = vector.broadcast %30 : vector<1x256xf32> to vector<384x256xf32>
    %32 = arith.mulf %29, %31 : vector<384x256xf32>
    %33 = arith.truncf %32 : vector<384x256xf32> to vector<384x256xbf16>
    %cst_20 = arith.constant dense<0.000000e+00> : vector<8x256xf32>
    %34 = tpu.matmul %27, %33, %cst_20 {dimension_numbers = #tpu.dot_dimension_numbers<[1], [0], [0], [1], [0, 0, 1, 1], [], []>} : vector<8x384xbf16>, vector<384x256xbf16>, vector<8x256xf32> -> vector<8x256xf32>
    %c0_21 = arith.constant 0 : index
    %c0_22 = arith.constant 0 : index
    %35 = vector.load %arg23[%c0_21, %c0_22] : memref<1x256xf32, #tpu.memory_space<vmem>>, vector<1x256xf32>
    %36 = vector.broadcast %35 : vector<1x256xf32> to vector<8x256xf32>
    %37 = arith.addf %34, %36 : vector<8x256xf32>
    %cst_23 = arith.constant 0.000000e+00 : f32
    %38 = vector.broadcast %cst_23 : f32 to vector<8x256xf32>
    %39 = arith.maximumf %37, %38 : vector<8x256xf32>
    %40 = arith.truncf %39 : vector<8x256xf32> to vector<8x256xbf16>
    %c0_24 = arith.constant 0 : index
    %c0_25 = arith.constant 0 : index
    %41 = vector.load %arg4[%c0_24, %c0_25] : memref<256x256xi8, #tpu.memory_space<vmem>>, vector<256x256xi8>
    %42 = arith.sitofp %41 : vector<256x256xi8> to vector<256x256xf32>
    %c0_26 = arith.constant 0 : index
    %c0_27 = arith.constant 0 : index
    %43 = vector.load %arg14[%c0_26, %c0_27] : memref<1x256xf32, #tpu.memory_space<vmem>>, vector<1x256xf32>
    %44 = vector.broadcast %43 : vector<1x256xf32> to vector<256x256xf32>
    %45 = arith.mulf %42, %44 : vector<256x256xf32>
    %46 = arith.truncf %45 : vector<256x256xf32> to vector<256x256xbf16>
    %cst_28 = arith.constant dense<0.000000e+00> : vector<8x256xf32>
    %47 = tpu.matmul %40, %46, %cst_28 {dimension_numbers = #tpu.dot_dimension_numbers<[1], [0], [0], [1], [0, 0, 1, 1], [], []>} : vector<8x256xbf16>, vector<256x256xbf16>, vector<8x256xf32> -> vector<8x256xf32>
    %c0_29 = arith.constant 0 : index
    %c0_30 = arith.constant 0 : index
    %48 = vector.load %arg24[%c0_29, %c0_30] : memref<1x256xf32, #tpu.memory_space<vmem>>, vector<1x256xf32>
    %49 = vector.broadcast %48 : vector<1x256xf32> to vector<8x256xf32>
    %50 = arith.addf %47, %49 : vector<8x256xf32>
    %cst_31 = arith.constant 0.000000e+00 : f32
    %51 = vector.broadcast %cst_31 : f32 to vector<8x256xf32>
    %52 = arith.maximumf %50, %51 : vector<8x256xf32>
    %53 = arith.truncf %52 : vector<8x256xf32> to vector<8x256xbf16>
    %c0_32 = arith.constant 0 : index
    %c0_33 = arith.constant 0 : index
    %54 = vector.load %arg5[%c0_32, %c0_33] : memref<256x128xi8, #tpu.memory_space<vmem>>, vector<256x128xi8>
    %55 = arith.sitofp %54 : vector<256x128xi8> to vector<256x128xf32>
    %c0_34 = arith.constant 0 : index
    %c0_35 = arith.constant 0 : index
    %56 = vector.load %arg15[%c0_34, %c0_35] : memref<1x128xf32, #tpu.memory_space<vmem>>, vector<1x128xf32>
    %57 = vector.broadcast %56 : vector<1x128xf32> to vector<256x128xf32>
    %58 = arith.mulf %55, %57 : vector<256x128xf32>
    %59 = arith.truncf %58 : vector<256x128xf32> to vector<256x128xbf16>
    %cst_36 = arith.constant dense<0.000000e+00> : vector<8x128xf32>
    %60 = tpu.matmul %53, %59, %cst_36 {dimension_numbers = #tpu.dot_dimension_numbers<[1], [0], [0], [1], [0, 0, 1, 1], [], []>} : vector<8x256xbf16>, vector<256x128xbf16>, vector<8x128xf32> -> vector<8x128xf32>
    %c0_37 = arith.constant 0 : index
    %c0_38 = arith.constant 0 : index
    %61 = vector.load %arg25[%c0_37, %c0_38] : memref<1x128xf32, #tpu.memory_space<vmem>>, vector<1x128xf32>
    %62 = vector.broadcast %61 : vector<1x128xf32> to vector<8x128xf32>
    %63 = arith.addf %60, %62 : vector<8x128xf32>
    %cst_39 = arith.constant 0.000000e+00 : f32
    %64 = vector.broadcast %cst_39 : f32 to vector<8x128xf32>
    %65 = arith.maximumf %63, %64 : vector<8x128xf32>
    %c0_40 = arith.constant 0 : index
    %c0_41 = arith.constant 0 : index
    %66 = vector.load %arg31[%c0_40, %c0_41] : memref<8x128xf32, #tpu.memory_space<vmem>>, vector<8x128xf32>
    tpu.vector_store %arg31[%c0_40, %c0_41], %65 {strides = array<i32>} : memref<8x128xf32, #tpu.memory_space<vmem>>, vector<8x128xf32>,
    %67 = arith.truncf %65 : vector<8x128xf32> to vector<8x128xbf16>
    %c0_42 = arith.constant 0 : index
    %c0_43 = arith.constant 0 : index
    %68 = vector.load %arg6[%c0_42, %c0_43] : memref<128x256xi8, #tpu.memory_space<vmem>>, vector<128x256xi8>
    %69 = arith.sitofp %68 : vector<128x256xi8> to vector<128x256xf32>
    %c0_44 = arith.constant 0 : index
    %c0_45 = arith.constant 0 : index
    %70 = vector.load %arg16[%c0_44, %c0_45] : memref<1x256xf32, #tpu.memory_space<vmem>>, vector<1x256xf32>
    %71 = vector.broadcast %70 : vector<1x256xf32> to vector<128x256xf32>
    %72 = arith.mulf %69, %71 : vector<128x256xf32>
    %73 = arith.truncf %72 : vector<128x256xf32> to vector<128x256xbf16>
    %cst_46 = arith.constant dense<0.000000e+00> : vector<8x256xf32>
    %74 = tpu.matmul %67, %73, %cst_46 {dimension_numbers = #tpu.dot_dimension_numbers<[1], [0], [0], [1], [0, 0, 1, 1], [], []>} : vector<8x128xbf16>, vector<128x256xbf16>, vector<8x256xf32> -> vector<8x256xf32>
    %c0_47 = arith.constant 0 : index
    %c0_48 = arith.constant 0 : index
    %75 = vector.load %arg26[%c0_47, %c0_48] : memref<1x256xf32, #tpu.memory_space<vmem>>, vector<1x256xf32>
    %76 = vector.broadcast %75 : vector<1x256xf32> to vector<8x256xf32>
    %77 = arith.addf %74, %76 : vector<8x256xf32>
    %cst_49 = arith.constant 0.000000e+00 : f32
    %78 = vector.broadcast %cst_49 : f32 to vector<8x256xf32>
    %79 = arith.maximumf %77, %78 : vector<8x256xf32>
    %80 = arith.truncf %79 : vector<8x256xf32> to vector<8x256xbf16>
    %c0_50 = arith.constant 0 : index
    %c0_51 = arith.constant 0 : index
    %81 = vector.load %arg7[%c0_50, %c0_51] : memref<256x256xi8, #tpu.memory_space<vmem>>, vector<256x256xi8>
    %82 = arith.sitofp %81 : vector<256x256xi8> to vector<256x256xf32>
    %c0_52 = arith.constant 0 : index
    %c0_53 = arith.constant 0 : index
    %83 = vector.load %arg17[%c0_52, %c0_53] : memref<1x256xf32, #tpu.memory_space<vmem>>, vector<1x256xf32>
    %84 = vector.broadcast %83 : vector<1x256xf32> to vector<256x256xf32>
    %85 = arith.mulf %82, %84 : vector<256x256xf32>
    %86 = arith.truncf %85 : vector<256x256xf32> to vector<256x256xbf16>
    %cst_54 = arith.constant dense<0.000000e+00> : vector<8x256xf32>
    %87 = tpu.matmul %80, %86, %cst_54 {dimension_numbers = #tpu.dot_dimension_numbers<[1], [0], [0], [1], [0, 0, 1, 1], [], []>} : vector<8x256xbf16>, vector<256x256xbf16>, vector<8x256xf32> -> vector<8x256xf32>
    %c0_55 = arith.constant 0 : index
    %c0_56 = arith.constant 0 : index
    %88 = vector.load %arg27[%c0_55, %c0_56] : memref<1x256xf32, #tpu.memory_space<vmem>>, vector<1x256xf32>
    %89 = vector.broadcast %88 : vector<1x256xf32> to vector<8x256xf32>
    %90 = arith.addf %87, %89 : vector<8x256xf32>
    %cst_57 = arith.constant 0.000000e+00 : f32
    %91 = vector.broadcast %cst_57 : f32 to vector<8x256xf32>
    %92 = arith.maximumf %90, %91 : vector<8x256xf32>
    %93 = arith.truncf %92 : vector<8x256xf32> to vector<8x256xbf16>
    %c0_58 = arith.constant 0 : index
    %c0_59 = arith.constant 0 : index
    %94 = vector.load %arg8[%c0_58, %c0_59] : memref<256x384xi8, #tpu.memory_space<vmem>>, vector<256x384xi8>
    %95 = arith.sitofp %94 : vector<256x384xi8> to vector<256x384xf32>
    %c0_60 = arith.constant 0 : index
    %c0_61 = arith.constant 0 : index
    %96 = vector.load %arg18[%c0_60, %c0_61] : memref<1x384xf32, #tpu.memory_space<vmem>>, vector<1x384xf32>
    %97 = vector.broadcast %96 : vector<1x384xf32> to vector<256x384xf32>
    %98 = arith.mulf %95, %97 : vector<256x384xf32>
    %99 = arith.truncf %98 : vector<256x384xf32> to vector<256x384xbf16>
    %cst_62 = arith.constant dense<0.000000e+00> : vector<8x384xf32>
    %100 = tpu.matmul %93, %99, %cst_62 {dimension_numbers = #tpu.dot_dimension_numbers<[1], [0], [0], [1], [0, 0, 1, 1], [], []>} : vector<8x256xbf16>, vector<256x384xbf16>, vector<8x384xf32> -> vector<8x384xf32>
    %c0_63 = arith.constant 0 : index
    %c0_64 = arith.constant 0 : index
    %101 = vector.load %arg28[%c0_63, %c0_64] : memref<1x384xf32, #tpu.memory_space<vmem>>, vector<1x384xf32>
    %102 = vector.broadcast %101 : vector<1x384xf32> to vector<8x384xf32>
    %103 = arith.addf %100, %102 : vector<8x384xf32>
    %cst_65 = arith.constant 0.000000e+00 : f32
    %104 = vector.broadcast %cst_65 : f32 to vector<8x384xf32>
    %105 = arith.maximumf %103, %104 : vector<8x384xf32>
    %106 = arith.truncf %105 : vector<8x384xf32> to vector<8x384xbf16>
    %c0_66 = arith.constant 0 : index
    %c0_67 = arith.constant 0 : index
    %107 = vector.load %arg9[%c0_66, %c0_67] : memref<384x512xi8, #tpu.memory_space<vmem>>, vector<384x512xi8>
    %108 = arith.sitofp %107 : vector<384x512xi8> to vector<384x512xf32>
    %c0_68 = arith.constant 0 : index
    %c0_69 = arith.constant 0 : index
    %109 = vector.load %arg19[%c0_68, %c0_69] : memref<1x512xf32, #tpu.memory_space<vmem>>, vector<1x512xf32>
    %110 = vector.broadcast %109 : vector<1x512xf32> to vector<384x512xf32>
    %111 = arith.mulf %108, %110 : vector<384x512xf32>
    %112 = arith.truncf %111 : vector<384x512xf32> to vector<384x512xbf16>
    %cst_70 = arith.constant dense<0.000000e+00> : vector<8x512xf32>
    %113 = tpu.matmul %106, %112, %cst_70 {dimension_numbers = #tpu.dot_dimension_numbers<[1], [0], [0], [1], [0, 0, 1, 1], [], []>} : vector<8x384xbf16>, vector<384x512xbf16>, vector<8x512xf32> -> vector<8x512xf32>
    %c0_71 = arith.constant 0 : index
    %c0_72 = arith.constant 0 : index
    %114 = vector.load %arg29[%c0_71, %c0_72] : memref<1x512xf32, #tpu.memory_space<vmem>>, vector<1x512xf32>
    %115 = vector.broadcast %114 : vector<1x512xf32> to vector<8x512xf32>
    %116 = arith.addf %113, %115 : vector<8x512xf32>
    %cst_73 = arith.constant 0.000000e+00 : f32
    %117 = vector.broadcast %cst_73 : f32 to vector<8x512xf32>
    %118 = arith.maximumf %116, %117 : vector<8x512xf32>
    %119 = arith.truncf %118 : vector<8x512xf32> to vector<8x512xbf16>
    %c0_74 = arith.constant 0 : index
    %c0_75 = arith.constant 0 : index
    %120 = vector.load %arg10[%c0_74, %c0_75] : memref<512x256xi8, #tpu.memory_space<vmem>>, vector<512x256xi8>
    %121 = arith.sitofp %120 : vector<512x256xi8> to vector<512x256xf32>
    %c0_76 = arith.constant 0 : index
    %c0_77 = arith.constant 0 : index
    %122 = vector.load %arg20[%c0_76, %c0_77] : memref<1x256xf32, #tpu.memory_space<vmem>>, vector<1x256xf32>
    %123 = vector.broadcast %122 : vector<1x256xf32> to vector<512x256xf32>
    %124 = arith.mulf %121, %123 : vector<512x256xf32>
    %125 = arith.truncf %124 : vector<512x256xf32> to vector<512x256xbf16>
    %cst_78 = arith.constant dense<0.000000e+00> : vector<8x256xf32>
    %126 = tpu.matmul %119, %125, %cst_78 {dimension_numbers = #tpu.dot_dimension_numbers<[1], [0], [0], [1], [0, 0, 1, 1], [], []>} : vector<8x512xbf16>, vector<512x256xbf16>, vector<8x256xf32> -> vector<8x256xf32>
    %c0_79 = arith.constant 0 : index
    %c0_80 = arith.constant 0 : index
    %127 = vector.load %arg30[%c0_79, %c0_80] : memref<1x256xf32, #tpu.memory_space<vmem>>, vector<1x256xf32>
    %128 = vector.broadcast %127 : vector<1x256xf32> to vector<8x256xf32>
    %129 = arith.addf %126, %128 : vector<8x256xf32>
    %c0_81 = arith.constant 0 : index
    %c0_82 = arith.constant 0 : index
    %130 = vector.load %arg32[%c0_81, %c0_82] : memref<8x256xf32, #tpu.memory_space<vmem>>, vector<8x256xf32>
    tpu.vector_store %arg32[%c0_81, %c0_82], %129 {strides = array<i32>} : memref<8x256xf32, #tpu.memory_space<vmem>>, vector<8x256xf32>,
    return
  }
}

</mosaic_0001>

<llo_original>
// kernel: autoencoder_apply.1
$region0: #{autoencoder_apply.1}
  #allocation0 [shape = 'u32[]', space=smem, size = 0x4, offset = 0x4, fixed_abs, tag = 'smem constant byte address 0x4 - core index']
  #allocation1 [shape = 'u32[144,128]{1,0:T(1,128)}', space=vmem, size = 0x12000, scoped, tag = 'internal scratch']
  %s0 = inlined_call_operand.smem [shape: u32[33], index: -1, kind: input, shape index: {}]
  %s1 = sld [smem:[%s0]]
  %s2 = scalar_lea.smem %s0, 1
  %s3 = sld [smem:[%s2]]
  %s4 = scalar_lea.smem %s0, 2
  %s5 = sld [smem:[%s4]]
  %s6 = scalar_lea.smem %s0, 3
  %s7 = sld [smem:[%s6]]
  %s8 = scalar_lea.smem %s0, 4
  %s9 = sld [smem:[%s8]]
  %s10 = scalar_lea.smem %s0, 5
  %s11 = sld [smem:[%s10]]
  %s12 = scalar_lea.smem %s0, 6
  %s13 = sld [smem:[%s12]]
  %s14 = scalar_lea.smem %s0, 7
  %s15 = sld [smem:[%s14]]
  %s16 = scalar_lea.smem %s0, 8
  %s17 = sld [smem:[%s16]]
  %s18 = scalar_lea.smem %s0, 9
  %s19 = sld [smem:[%s18]]
  %s20 = scalar_lea.smem %s0, 10
  %s21 = sld [smem:[%s20]]
  %s22 = scalar_lea.smem %s0, 11
  %s23 = sld [smem:[%s22]]
  %s24 = scalar_lea.smem %s0, 12
  %s25 = sld [smem:[%s24]]
  %s26 = scalar_lea.smem %s0, 13
  %s27 = sld [smem:[%s26]]
  %s28 = scalar_lea.smem %s0, 14
  %s29 = sld [smem:[%s28]]
  %s30 = scalar_lea.smem %s0, 15
  %s31 = sld [smem:[%s30]]
  %s32 = scalar_lea.smem %s0, 16
  %s33 = sld [smem:[%s32]]
  %s34 = scalar_lea.smem %s0, 17
  %s35 = sld [smem:[%s34]]
  %s36 = scalar_lea.smem %s0, 18
  %s37 = sld [smem:[%s36]]
  %s38 = scalar_lea.smem %s0, 19
  %s39 = sld [smem:[%s38]]
  %s40 = scalar_lea.smem %s0, 20
  %s41 = sld [smem:[%s40]]
  %s42 = scalar_lea.smem %s0, 21
  %s43 = sld [smem:[%s42]]
  %s44 = scalar_lea.smem %s0, 22
  %s45 = sld [smem:[%s44]]
  %s46 = scalar_lea.smem %s0, 23
  %s47 = sld [smem:[%s46]]
  %s48 = scalar_lea.smem %s0, 24
  %s49 = sld [smem:[%s48]]
  %s50 = scalar_lea.smem %s0, 25
  %s51 = sld [smem:[%s50]]
  %s52 = scalar_lea.smem %s0, 26
  %s53 = sld [smem:[%s52]]
  %s54 = scalar_lea.smem %s0, 27
  %s55 = sld [smem:[%s54]]
  %s56 = scalar_lea.smem %s0, 28
  %s57 = sld [smem:[%s56]]
  %s58 = scalar_lea.smem %s0, 29
  %s59 = sld [smem:[%s58]]
  %s60 = scalar_lea.smem %s0, 30
  %s61 = sld [smem:[%s60]]
  %s62 = scalar_lea.smem %s0, 31
  %s63 = sld [smem:[%s62]]
  %s64 = scalar_lea.smem %s0, 32
  %s65 = sld [smem:[%s64]]
  %66 = xla_tuple %s63, %s65
  %s67 = sld [smem:[#allocation0]]
  $region182: #{autoencoder_apply.1} parent=0
    _
  %s69 = ssub.s32 1, %s67
  %s70 = scalar_select 0, %s69, %s67
  $region1: #{autoencoder_apply.1} parent=0
    #allocation2 [shape = 'u8[131072]{0}', space=vmem, size = 0x20000, scoped, tag = 'input window, operand 1, single buffered']
    #allocation3 [shape = 's32[1]{0}', space=sflag, size = 0x4, scoped, tag = 'scoped memory for autoencoder_apply.1']
    #allocation4 [shape = 'u8[196608]{0}', space=vmem, size = 0x30000, scoped, tag = 'input window, operand 2, single buffered']
    #allocation5 [shape = 's32[1]{0}', space=sflag, size = 0x4, scoped, tag = 'scoped memory for autoencoder_apply.1']
    #allocation6 [shape = 'u8[98304]{0}', space=vmem, size = 0x18000, scoped, tag = 'input window, operand 3, single buffered']
    #allocation7 [shape = 'u8[65536]{0}', space=vmem, size = 0x10000, scoped, tag = 'input window, operand 4, single buffered']
    #allocation8 [shape = 's32[1]{0}', space=sflag, size = 0x4, scoped, tag = 'scoped memory for autoencoder_apply.1']
    #allocation9 [shape = 'u8[32768]{0}', space=vmem, size = 0x8000, scoped, tag = 'input window, operand 5, single buffered']
    #allocation10 [shape = 'u8[32768]{0}', space=vmem, size = 0x8000, scoped, tag = 'input window, operand 6, single buffered']
    #allocation11 [shape = 's32[1]{0}', space=sflag, size = 0x4, scoped, tag = 'scoped memory for autoencoder_apply.1']
    #allocation12 [shape = 'u8[65536]{0}', space=vmem, size = 0x10000, scoped, tag = 'input window, operand 7, single buffered']
    #allocation13 [shape = 'u8[98304]{0}', space=vmem, size = 0x18000, scoped, tag = 'input window, operand 8, single buffered']
    #allocation14 [shape = 's32[1]{0}', space=sflag, size = 0x4, scoped, tag = 'scoped memory for autoencoder_apply.1']
    #allocation15 [shape = 'u8[196608]{0}', space=vmem, size = 0x30000, scoped, tag = 'input window, operand 9, single buffered']
    #allocation16 [shape = 'u8[131072]{0}', space=vmem, size = 0x20000, scoped, tag = 'input window, operand 10, single buffered']
    #allocation17 [shape = 's32[1]{0}', space=sflag, size = 0x4, scoped, tag = 'scoped memory for autoencoder_apply.1']
    %71 = vsyncpa [#allocation3], 0
    %72 = vsyncpa [#allocation5], 0
    %73 = vsyncpa [#allocation8], 0
    %74 = vsyncpa [#allocation11], 0
    %75 = vsyncpa [#allocation14], 0
    %76 = vsyncpa [#allocation17], 0
    // Predicated region
    $region2: #{autoencoder_apply.1} parent=1 // pred_check
      _
    $region3: #{autoencoder_apply.1} parent=1 // pred_check_branch
      %78 = sbr.rel (0) target = $region5
    $region4: #{autoencoder_apply.1} parent=1 // pred_region
      _
    $region5: #{autoencoder_apply.1} parent=1 // pred_fallthru
      _
    // Predicated region
    $region6: #{autoencoder_apply.1} parent=1 // pred_check
      _
    $region7: #{autoencoder_apply.1} parent=1 // pred_check_branch
      %80 = sbr.rel (0) target = $region9
    $region8: #{autoencoder_apply.1} parent=1 // pred_region
      %s82 = ssub.s32 4096, 4096
      %83 = vsyncadd [#allocation3], %s82
      %s84 = sshll.u32 [#allocation2], 4
      %s85 = int_to_ptr.vmem [resolvable:$true] %s84
      %90 = dma.hbm_to_vmem [thread:$0]  %s3, 4096, %s85, [#allocation3], 512, 512, 32
    $region9: #{autoencoder_apply.1} parent=1 // pred_fallthru
      _
    // Predicated region
    $region10: #{autoencoder_apply.1} parent=1 // pred_check
      _
    $region11: #{autoencoder_apply.1} parent=1 // pred_check_branch
      %92 = sbr.rel (0) target = $region13
    $region12: #{autoencoder_apply.1} parent=1 // pred_region
      %s94 = ssub.s32 6144, 6144
      %95 = vsyncadd [#allocation5], %s94
      %s96 = sshll.u32 [#allocation4], 4
      %s97 = int_to_ptr.vmem [resolvable:$true] %s96
      %102 = dma.hbm_to_vmem [thread:$0]  %s5, 6144, %s97, [#allocation5], 384, 384, 24
    $region13: #{autoencoder_apply.1} parent=1 // pred_fallthru
      _
    // Predicated region
    $region14: #{autoencoder_apply.1} parent=1 // pred_check
      _
    $region15: #{autoencoder_apply.1} parent=1 // pred_check_branch
      %104 = sbr.rel (0) target = $region17
    $region16: #{autoencoder_apply.1} parent=1 // pred_region
      %s106 = ssub.s32 3072, 3072
      %107 = vsyncadd [#allocation5], %s106
      %s108 = sshll.u32 [#allocation6], 4
      %s109 = int_to_ptr.vmem [resolvable:$true] %s108
      %114 = dma.hbm_to_vmem [thread:$0]  %s7, 3072, %s109, [#allocation5], 256, 256, 16
    $region17: #{autoencoder_apply.1} parent=1 // pred_fallthru
      _
    // Predicated region
    $region18: #{autoencoder_apply.1} parent=1 // pred_check
      _
    $region19: #{autoencoder_apply.1} parent=1 // pred_check_branch
      %116 = sbr.rel (0) target = $region21
    $region20: #{autoencoder_apply.1} parent=1 // pred_region
      %s118 = ssub.s32 2048, 2048
      %119 = vsyncadd [#allocation8], %s118
      %s120 = sshll.u32 [#allocation7], 4
      %s121 = int_to_ptr.vmem [resolvable:$true] %s120
      %126 = dma.hbm_to_vmem [thread:$0]  %s9, 2048, %s121, [#allocation8], 256, 256, 16
    $region21: #{autoencoder_apply.1} parent=1 // pred_fallthru
      _
    // Predicated region
    $region22: #{autoencoder_apply.1} parent=1 // pred_check
      _
    $region23: #{autoencoder_apply.1} parent=1 // pred_check_branch
      %128 = sbr.rel (0) target = $region25
    $region24: #{autoencoder_apply.1} parent=1 // pred_region
      %s130 = ssub.s32 1024, 1024
      %131 = vsyncadd [#allocation8], %s130
      %s132 = sshll.u32 [#allocation9], 4
      %s133 = int_to_ptr.vmem [resolvable:$true] %s132
      %138 = dma.hbm_to_vmem [thread:$0]  %s11, 1024, %s133, [#allocation8], 128, 128, 8
    $region25: #{autoencoder_apply.1} parent=1 // pred_fallthru
      _
    // Predicated region
    $region26: #{autoencoder_apply.1} parent=1 // pred_check
      _
    $region27: #{autoencoder_apply.1} parent=1 // pred_check_branch
      %140 = sbr.rel (0) target = $region29
    $region28: #{autoencoder_apply.1} parent=1 // pred_region
      %s142 = ssub.s32 1024, 1024
      %143 = vsyncadd [#allocation11], %s142
      %s144 = sshll.u32 [#allocation10], 4
      %s145 = int_to_ptr.vmem [resolvable:$true] %s144
      %150 = dma.hbm_to_vmem [thread:$0]  %s13, 1024, %s145, [#allocation11], 256, 256, 16
    $region29: #{autoencoder_apply.1} parent=1 // pred_fallthru
      _
    // Predicated region
    $region30: #{autoencoder_apply.1} parent=1 // pred_check
      _
    $region31: #{autoencoder_apply.1} parent=1 // pred_check_branch
      %152 = sbr.rel (0) target = $region33
    $region32: #{autoencoder_apply.1} parent=1 // pred_region
      %s154 = ssub.s32 2048, 2048
      %155 = vsyncadd [#allocation11], %s154
      %s156 = sshll.u32 [#allocation12], 4
      %s157 = int_to_ptr.vmem [resolvable:$true] %s156
      %162 = dma.hbm_to_vmem [thread:$0]  %s15, 2048, %s157, [#allocation11], 256, 256, 16
    $region33: #{autoencoder_apply.1} parent=1 // pred_fallthru
      _
    // Predicated region
    $region34: #{autoencoder_apply.1} parent=1 // pred_check
      _
    $region35: #{autoencoder_apply.1} parent=1 // pred_check_branch
      %164 = sbr.rel (0) target = $region37
    $region36: #{autoencoder_apply.1} parent=1 // pred_region
      %s166 = ssub.s32 3072, 3072
      %167 = vsyncadd [#allocation14], %s166
      %s168 = sshll.u32 [#allocation13], 4
      %s169 = int_to_ptr.vmem [resolvable:$true] %s168
      %174 = dma.hbm_to_vmem [thread:$0]  %s17, 3072, %s169, [#allocation14], 384, 384, 24
    $region37: #{autoencoder_apply.1} parent=1 // pred_fallthru
      _
    // Predicated region
    $region38: #{autoencoder_apply.1} parent=1 // pred_check
      _
    $region39: #{autoencoder_apply.1} parent=1 // pred_check_branch
      %176 = sbr.rel (0) target = $region41
    $region40: #{autoencoder_apply.1} parent=1 // pred_region
      %s178 = ssub.s32 6144, 6144
      %179 = vsyncadd [#allocation14], %s178
      %s180 = sshll.u32 [#allocation15], 4
      %s181 = int_to_ptr.vmem [resolvable:$true] %s180
      %186 = dma.hbm_to_vmem [thread:$0]  %s19, 6144, %s181, [#allocation14], 512, 512, 32
    $region41: #{autoencoder_apply.1} parent=1 // pred_fallthru
      _
    // Predicated region
    $region42: #{autoencoder_apply.1} parent=1 // pred_check
      _
    $region43: #{autoencoder_apply.1} parent=1 // pred_check_branch
      %188 = sbr.rel (0) target = $region45
    $region44: #{autoencoder_apply.1} parent=1 // pred_region
      %s190 = ssub.s32 4096, 4096
      %191 = vsyncadd [#allocation17], %s190
      %s192 = sshll.u32 [#allocation16], 4
      %s193 = int_to_ptr.vmem [resolvable:$true] %s192
      %198 = dma.hbm_to_vmem [thread:$0]  %s21, 4096, %s193, [#allocation17], 256, 256, 16
    $region45: #{autoencoder_apply.1} parent=1 // pred_fallthru
      _
    // Predicated region
    $region46: #{autoencoder_apply.1} parent=1 // pred_check
      _
    $region47: #{autoencoder_apply.1} parent=1 // pred_check_branch
      %200 = sbr.rel (0) target = $region49
    $region48: #{autoencoder_apply.1} parent=1 // pred_region
      _
    $region49: #{autoencoder_apply.1} parent=1 // pred_fallthru
      _
    // Predicated region
    $region50: #{autoencoder_apply.1} parent=1 // pred_check
      _
    $region51: #{autoencoder_apply.1} parent=1 // pred_check_branch
      %202 = sbr.rel (0) target = $region53
    $region52: #{autoencoder_apply.1} parent=1 // pred_region
      _
    $region53: #{autoencoder_apply.1} parent=1 // pred_fallthru
      _
    // Predicated region
    $region54: #{autoencoder_apply.1} parent=1 // pred_check
      _
    $region55: #{autoencoder_apply.1} parent=1 // pred_check_branch
      %204 = sbr.rel (0) target = $region57
    $region56: #{autoencoder_apply.1} parent=1 // pred_region
      _
    $region57: #{autoencoder_apply.1} parent=1 // pred_fallthru
      _
    // Predicated region
    $region58: #{autoencoder_apply.1} parent=1 // pred_check
      _
    $region59: #{autoencoder_apply.1} parent=1 // pred_check_branch
      %206 = sbr.rel (0) target = $region61
    $region60: #{autoencoder_apply.1} parent=1 // pred_region
      _
    $region61: #{autoencoder_apply.1} parent=1 // pred_fallthru
      _
    // Predicated region
    $region62: #{autoencoder_apply.1} parent=1 // pred_check
      _
    $region63: #{autoencoder_apply.1} parent=1 // pred_check_branch
      %208 = sbr.rel (0) target = $region65
    $region64: #{autoencoder_apply.1} parent=1 // pred_region
      _
    $region65: #{autoencoder_apply.1} parent=1 // pred_fallthru
      _
    // Predicated region
    $region66: #{autoencoder_apply.1} parent=1 // pred_check
      _
    $region67: #{autoencoder_apply.1} parent=1 // pred_check_branch
      %210 = sbr.rel (0) target = $region69
    $region68: #{autoencoder_apply.1} parent=1 // pred_region
      _
    $region69: #{autoencoder_apply.1} parent=1 // pred_fallthru
      _
    // Predicated region
    $region70: #{autoencoder_apply.1} parent=1 // pred_check
      _
    $region71: #{autoencoder_apply.1} parent=1 // pred_check_branch
      %212 = sbr.rel (0) target = $region73
    $region72: #{autoencoder_apply.1} parent=1 // pred_region
      _
    $region73: #{autoencoder_apply.1} parent=1 // pred_fallthru
      _
    // Predicated region
    $region74: #{autoencoder_apply.1} parent=1 // pred_check
      _
    $region75: #{autoencoder_apply.1} parent=1 // pred_check_branch
      %214 = sbr.rel (0) target = $region77
    $region76: #{autoencoder_apply.1} parent=1 // pred_region
      _
    $region77: #{autoencoder_apply.1} parent=1 // pred_fallthru
      _
    // Predicated region
    $region78: #{autoencoder_apply.1} parent=1 // pred_check
      _
    $region79: #{autoencoder_apply.1} parent=1 // pred_check_branch
      %216 = sbr.rel (0) target = $region81
    $region80: #{autoencoder_apply.1} parent=1 // pred_region
      _
    $region81: #{autoencoder_apply.1} parent=1 // pred_fallthru
      _
    // Predicated region
    $region82: #{autoencoder_apply.1} parent=1 // pred_check
      _
    $region83: #{autoencoder_apply.1} parent=1 // pred_check_branch
      %218 = sbr.rel (0) target = $region85
    $region84: #{autoencoder_apply.1} parent=1 // pred_region
      _
    $region85: #{autoencoder_apply.1} parent=1 // pred_fallthru
      _
    // Predicated region
    $region86: #{autoencoder_apply.1} parent=1 // pred_check
      _
    $region87: #{autoencoder_apply.1} parent=1 // pred_check_branch
      %220 = sbr.rel (0) target = $region89
    $region88: #{autoencoder_apply.1} parent=1 // pred_region
      _
    $region89: #{autoencoder_apply.1} parent=1 // pred_fallthru
      _
    // Predicated region
    $region90: #{autoencoder_apply.1} parent=1 // pred_check
      _
    $region91: #{autoencoder_apply.1} parent=1 // pred_check_branch
      %222 = sbr.rel (0) target = $region93
    $region92: #{autoencoder_apply.1} parent=1 // pred_region
      _
    $region93: #{autoencoder_apply.1} parent=1 // pred_fallthru
      _
    // Predicated region
    $region94: #{autoencoder_apply.1} parent=1 // pred_check
      _
    $region95: #{autoencoder_apply.1} parent=1 // pred_check_branch
      %224 = sbr.rel (0) target = $region97
    $region96: #{autoencoder_apply.1} parent=1 // pred_region
      _
    $region97: #{autoencoder_apply.1} parent=1 // pred_fallthru
      _
    // Predicated region
    $region98: #{autoencoder_apply.1} parent=1 // pred_check
      _
    $region99: #{autoencoder_apply.1} parent=1 // pred_check_branch
      %226 = sbr.rel (0) target = $region101
    $region100: #{autoencoder_apply.1} parent=1 // pred_region
      _
    $region101: #{autoencoder_apply.1} parent=1 // pred_fallthru
      _
    // Predicated region
    $region102: #{autoencoder_apply.1} parent=1 // pred_check
      _
    $region103: #{autoencoder_apply.1} parent=1 // pred_check_branch
      %228 = sbr.rel (0) target = $region105
    $region104: #{autoencoder_apply.1} parent=1 // pred_region
      _
    $region105: #{autoencoder_apply.1} parent=1 // pred_fallthru
      _
    // Predicated region
    $region106: #{autoencoder_apply.1} parent=1 // pred_check
      _
    $region107: #{autoencoder_apply.1} parent=1 // pred_check_branch
      %230 = sbr.rel (0) target = $region109
    $region108: #{autoencoder_apply.1} parent=1 // pred_region
      _
    $region109: #{autoencoder_apply.1} parent=1 // pred_fallthru
      _
    // Predicated region
    $region110: #{autoencoder_apply.1} parent=1 // pred_check
      _
    $region111: #{autoencoder_apply.1} parent=1 // pred_check_branch
      %232 = sbr.rel (0) target = $region113
    $region112: #{autoencoder_apply.1} parent=1 // pred_region
      _
    $region113: #{autoencoder_apply.1} parent=1 // pred_fallthru
      _
    // Predicated region
    $region114: #{autoencoder_apply.1} parent=1 // pred_check
      _
    $region115: #{autoencoder_apply.1} parent=1 // pred_check_branch
      %234 = sbr.rel (0) target = $region117
    $region116: #{autoencoder_apply.1} parent=1 // pred_region
      _
    $region117: #{autoencoder_apply.1} parent=1 // pred_fallthru
      _
    // Predicated region
    $region118: #{autoencoder_apply.1} parent=1 // pred_check
      _
    $region119: #{autoencoder_apply.1} parent=1 // pred_check_branch
      %236 = sbr.rel (0) target = $region121
    $region120: #{autoencoder_apply.1} parent=1 // pred_region
      _
    $region121: #{autoencoder_apply.1} parent=1 // pred_fallthru
      _
    // Predicated region
    $region122: #{autoencoder_apply.1} parent=1 // pred_check
      _
    $region123: #{autoencoder_apply.1} parent=1 // pred_check_branch
      %238 = sbr.rel (0) target = $region125
    $region124: #{autoencoder_apply.1} parent=1 // pred_region
      _
    $region125: #{autoencoder_apply.1} parent=1 // pred_fallthru
      _
    // Predicated region
    $region126: #{autoencoder_apply.1} parent=1 // pred_check
      _
    $region127: #{autoencoder_apply.1} parent=1 // pred_check_branch
      %240 = sbr.rel (0) target = $region129
    $region128: #{autoencoder_apply.1} parent=1 // pred_region
      %241 = dma.done [#allocation3], 4096
    $region129: #{autoencoder_apply.1} parent=1 // pred_fallthru
      _
    // Predicated region
    $region130: #{autoencoder_apply.1} parent=1 // pred_check
      _
    $region131: #{autoencoder_apply.1} parent=1 // pred_check_branch
      %243 = sbr.rel (0) target = $region133
    $region132: #{autoencoder_apply.1} parent=1 // pred_region
      %244 = dma.done [#allocation5], 6144
    $region133: #{autoencoder_apply.1} parent=1 // pred_fallthru
      _
    // Predicated region
    $region134: #{autoencoder_apply.1} parent=1 // pred_check
      _
    $region135: #{autoencoder_apply.1} parent=1 // pred_check_branch
      %246 = sbr.rel (0) target = $region137
    $region136: #{autoencoder_apply.1} parent=1 // pred_region
      %247 = dma.done [#allocation5], 3072
    $region137: #{autoencoder_apply.1} parent=1 // pred_fallthru
      _
    // Predicated region
    $region138: #{autoencoder_apply.1} parent=1 // pred_check
      _
    $region139: #{autoencoder_apply.1} parent=1 // pred_check_branch
      %249 = sbr.rel (0) target = $region141
    $region140: #{autoencoder_apply.1} parent=1 // pred_region
      %250 = dma.done [#allocation8], 2048
    $region141: #{autoencoder_apply.1} parent=1 // pred_fallthru
      _
    // Predicated region
    $region142: #{autoencoder_apply.1} parent=1 // pred_check
      _
    $region143: #{autoencoder_apply.1} parent=1 // pred_check_branch
      %252 = sbr.rel (0) target = $region145
    $region144: #{autoencoder_apply.1} parent=1 // pred_region
      %253 = dma.done [#allocation8], 1024
    $region145: #{autoencoder_apply.1} parent=1 // pred_fallthru
      _
    // Predicated region
    $region146: #{autoencoder_apply.1} parent=1 // pred_check
      _
    $region147: #{autoencoder_apply.1} parent=1 // pred_check_branch
      %255 = sbr.rel (0) target = $region149
    $region148: #{autoencoder_apply.1} parent=1 // pred_region
      %256 = dma.done [#allocation11], 1024
    $region149: #{autoencoder_apply.1} parent=1 // pred_fallthru
      _
    // Predicated region
    $region150: #{autoencoder_apply.1} parent=1 // pred_check
      _
    $region151: #{autoencoder_apply.1} parent=1 // pred_check_branch
      %258 = sbr.rel (0) target = $region153
    $region152: #{autoencoder_apply.1} parent=1 // pred_region
      %259 = dma.done [#allocation11], 2048
    $region153: #{autoencoder_apply.1} parent=1 // pred_fallthru
      _
    // Predicated region
    $region154: #{autoencoder_apply.1} parent=1 // pred_check
      _
    $region155: #{autoencoder_apply.1} parent=1 // pred_check_branch
      %261 = sbr.rel (0) target = $region157
    $region156: #{autoencoder_apply.1} parent=1 // pred_region
      %262 = dma.done [#allocation14], 3072
    $region157: #{autoencoder_apply.1} parent=1 // pred_fallthru
      _
    // Predicated region
    $region158: #{autoencoder_apply.1} parent=1 // pred_check
      _
    $region159: #{autoencoder_apply.1} parent=1 // pred_check_branch
      %264 = sbr.rel (0) target = $region161
    $region160: #{autoencoder_apply.1} parent=1 // pred_region
      %265 = dma.done [#allocation14], 6144
    $region161: #{autoencoder_apply.1} parent=1 // pred_fallthru
      _
    // Predicated region
    $region162: #{autoencoder_apply.1} parent=1 // pred_check
      _
    $region163: #{autoencoder_apply.1} parent=1 // pred_check_branch
      %267 = sbr.rel (0) target = $region165
    $region164: #{autoencoder_apply.1} parent=1 // pred_region
      %268 = dma.done [#allocation17], 4096
    $region165: #{autoencoder_apply.1} parent=1 // pred_fallthru
      _
    %v270 = vld [vmem:[%s1] sm:$0xff]
    %v271 = vld [vmem:[%s1 + $0x8] sm:$0xff]
    %v272 = vpack.c.bf16 %v270, %v270
    %v273 = vpack.c.bf16 %v271, %v271
    %v274 = vld [vmem:[#allocation2] sm:$0xff]
    %v275 = vld [vmem:[#allocation2 + $0x8] sm:$0xff]
    %v276 = vld [vmem:[#allocation2 + $0x10] sm:$0xff]
    %v277 = vld [vmem:[#allocation2 + $0x18] sm:$0xff]
    %v278 = vld [vmem:[#allocation2 + $0x20] sm:$0xff]
    %v279 = vld [vmem:[#allocation2 + $0x28] sm:$0xff]
    %v280 = vld [vmem:[#allocation2 + $0x30] sm:$0xff]
    %v281 = vld [vmem:[#allocation2 + $0x38] sm:$0xff]
    %v282 = vld [vmem:[#allocation2 + $0x40] sm:$0xff]
    %v283 = vld [vmem:[#allocation2 + $0x48] sm:$0xff]
    %v284 = vld [vmem:[#allocation2 + $0x50] sm:$0xff]
    %v285 = vld [vmem:[#allocation2 + $0x58] sm:$0xff]
    %v286 = vld [vmem:[#allocation2 + $0x60] sm:$0xff]
    %v287 = vld [vmem:[#allocation2 + $0x68] sm:$0xff]
    %v288 = vld [vmem:[#allocation2 + $0x70] sm:$0xff]
    %v289 = vld [vmem:[#allocation2 + $0x78] sm:$0xff]
    %v290 = vld [vmem:[#allocation2 + $0x80] sm:$0xff]
    %v291 = vld [vmem:[#allocation2 + $0x88] sm:$0xff]
    %v292 = vld [vmem:[#allocation2 + $0x90] sm:$0xff]
    %v293 = vld [vmem:[#allocation2 + $0x98] sm:$0xff]
    %v294 = vld [vmem:[#allocation2 + $0xa0] sm:$0xff]
    %v295 = vld [vmem:[#allocation2 + $0xa8] sm:$0xff]
    %v296 = vld [vmem:[#allocation2 + $0xb0] sm:$0xff]
    %v297 = vld [vmem:[#allocation2 + $0xb8] sm:$0xff]
    %v298 = vld [vmem:[#allocation2 + $0xc0] sm:$0xff]
    %v299 = vld [vmem:[#allocation2 + $0xc8] sm:$0xff]
    %v300 = vld [vmem:[#allocation2 + $0xd0] sm:$0xff]
    %v301 = vld [vmem:[#allocation2 + $0xd8] sm:$0xff]
    %v302 = vld [vmem:[#allocation2 + $0xe0] sm:$0xff]
    %v303 = vld [vmem:[#allocation2 + $0xe8] sm:$0xff]
    %v304 = vld [vmem:[#allocation2 + $0xf0] sm:$0xff]
    %v305 = vld [vmem:[#allocation2 + $0xf8] sm:$0xff]
    %v306 = vunpack.c.0.s8 %v274
    %v307 = vunpack.c.0.s8 %v275
    %v308 = vunpack.c.0.s8 %v276
    %v309 = vunpack.c.0.s8 %v277
    %v310 = vunpack.c.1.s8 %v274
    %v311 = vunpack.c.1.s8 %v275
    %v312 = vunpack.c.1.s8 %v276
    %v313 = vunpack.c.1.s8 %v277
    %v314 = vunpack.c.2.s8 %v274
    %v315 = vunpack.c.2.s8 %v275
    %v316 = vunpack.c.2.s8 %v276
    %v317 = vunpack.c.2.s8 %v277
    %v318 = vunpack.c.3.s8 %v274
    %v319 = vunpack.c.3.s8 %v275
    %v320 = vunpack.c.3.s8 %v276
    %v321 = vunpack.c.3.s8 %v277
    %v322 = vunpack.c.0.s8 %v278
    %v323 = vunpack.c.0.s8 %v279
    %v324 = vunpack.c.0.s8 %v280
    %v325 = vunpack.c.0.s8 %v281
    %v326 = vunpack.c.1.s8 %v278
    %v327 = vunpack.c.1.s8 %v279
    %v328 = vunpack.c.1.s8 %v280
    %v329 = vunpack.c.1.s8 %v281
    %v330 = vunpack.c.2.s8 %v278
    %v331 = vunpack.c.2.s8 %v279
    %v332 = vunpack.c.2.s8 %v280
    %v333 = vunpack.c.2.s8 %v281
    %v334 = vunpack.c.3.s8 %v278
    %v335 = vunpack.c.3.s8 %v279
    %v336 = vunpack.c.3.s8 %v280
    %v337 = vunpack.c.3.s8 %v281
    %v338 = vunpack.c.0.s8 %v282
    %v339 = vunpack.c.0.s8 %v283
    %v340 = vunpack.c.0.s8 %v284
    %v341 = vunpack.c.0.s8 %v285
    %v342 = vunpack.c.1.s8 %v282
    %v343 = vunpack.c.1.s8 %v283
    %v344 = vunpack.c.1.s8 %v284
    %v345 = vunpack.c.1.s8 %v285
    %v346 = vunpack.c.2.s8 %v282
    %v347 = vunpack.c.2.s8 %v283
    %v348 = vunpack.c.2.s8 %v284
    %v349 = vunpack.c.2.s8 %v285
    %v350 = vunpack.c.3.s8 %v282
    %v351 = vunpack.c.3.s8 %v283
    %v352 = vunpack.c.3.s8 %v284
    %v353 = vunpack.c.3.s8 %v285
    %v354 = vunpack.c.0.s8 %v286
    %v355 = vunpack.c.0.s8 %v287
    %v356 = vunpack.c.0.s8 %v288
    %v357 = vunpack.c.0.s8 %v289
    %v358 = vunpack.c.1.s8 %v286
    %v359 = vunpack.c.1.s8 %v287
    %v360 = vunpack.c.1.s8 %v288
    %v361 = vunpack.c.1.s8 %v289
    %v362 = vunpack.c.2.s8 %v286
    %v363 = vunpack.c.2.s8 %v287
    %v364 = vunpack.c.2.s8 %v288
    %v365 = vunpack.c.2.s8 %v289
    %v366 = vunpack.c.3.s8 %v286
    %v367 = vunpack.c.3.s8 %v287
    %v368 = vunpack.c.3.s8 %v288
    %v369 = vunpack.c.3.s8 %v289
    %v370 = vunpack.c.0.s8 %v290
    %v371 = vunpack.c.0.s8 %v291
    %v372 = vunpack.c.0.s8 %v292
    %v373 = vunpack.c.0.s8 %v293
    %v374 = vunpack.c.1.s8 %v290
    %v375 = vunpack.c.1.s8 %v291
    %v376 = vunpack.c.1.s8 %v292
    %v377 = vunpack.c.1.s8 %v293
    %v378 = vunpack.c.2.s8 %v290
    %v379 = vunpack.c.2.s8 %v291
    %v380 = vunpack.c.2.s8 %v292
    %v381 = vunpack.c.2.s8 %v293
    %v382 = vunpack.c.3.s8 %v290
    %v383 = vunpack.c.3.s8 %v291
    %v384 = vunpack.c.3.s8 %v292
    %v385 = vunpack.c.3.s8 %v293
    %v386 = vunpack.c.0.s8 %v294
    %v387 = vunpack.c.0.s8 %v295
    %v388 = vunpack.c.0.s8 %v296
    %v389 = vunpack.c.0.s8 %v297
    %v390 = vunpack.c.1.s8 %v294
    %v391 = vunpack.c.1.s8 %v295
    %v392 = vunpack.c.1.s8 %v296
    %v393 = vunpack.c.1.s8 %v297
    %v394 = vunpack.c.2.s8 %v294
    %v395 = vunpack.c.2.s8 %v295
    %v396 = vunpack.c.2.s8 %v296
    %v397 = vunpack.c.2.s8 %v297
    %v398 = vunpack.c.3.s8 %v294
    %v399 = vunpack.c.3.s8 %v295
    %v400 = vunpack.c.3.s8 %v296
    %v401 = vunpack.c.3.s8 %v297
    %v402 = vunpack.c.0.s8 %v298
    %v403 = vunpack.c.0.s8 %v299
    %v404 = vunpack.c.0.s8 %v300
    %v405 = vunpack.c.0.s8 %v301
    %v406 = vunpack.c.1.s8 %v298
    %v407 = vunpack.c.1.s8 %v299
    %v408 = vunpack.c.1.s8 %v300
    %v409 = vunpack.c.1.s8 %v301
    %v410 = vunpack.c.2.s8 %v298
    %v411 = vunpack.c.2.s8 %v299
    %v412 = vunpack.c.2.s8 %v300
    %v413 = vunpack.c.2.s8 %v301
    %v414 = vunpack.c.3.s8 %v298
    %v415 = vunpack.c.3.s8 %v299
    %v416 = vunpack.c.3.s8 %v300
    %v417 = vunpack.c.3.s8 %v301
    %v418 = vunpack.c.0.s8 %v302
    %v419 = vunpack.c.0.s8 %v303
    %v420 = vunpack.c.0.s8 %v304
    %v421 = vunpack.c.0.s8 %v305
    %v422 = vunpack.c.1.s8 %v302
    %v423 = vunpack.c.1.s8 %v303
    %v424 = vunpack.c.1.s8 %v304
    %v425 = vunpack.c.1.s8 %v305
    %v426 = vunpack.c.2.s8 %v302
    %v427 = vunpack.c.2.s8 %v303
    %v428 = vunpack.c.2.s8 %v304
    %v429 = vunpack.c.2.s8 %v305
    %v430 = vunpack.c.3.s8 %v302
    %v431 = vunpack.c.3.s8 %v303
    %v432 = vunpack.c.3.s8 %v304
    %v433 = vunpack.c.3.s8 %v305
    %v434 = vcvt.s32.f32 %v306
    %v435 = vcvt.s32.f32 %v307
    %v436 = vcvt.s32.f32 %v308
    %v437 = vcvt.s32.f32 %v309
    %v438 = vcvt.s32.f32 %v310
    %v439 = vcvt.s32.f32 %v311
    %v440 = vcvt.s32.f32 %v312
    %v441 = vcvt.s32.f32 %v313
    %v442 = vcvt.s32.f32 %v314
    %v443 = vcvt.s32.f32 %v315
    %v444 = vcvt.s32.f32 %v316
    %v445 = vcvt.s32.f32 %v317
    %v446 = vcvt.s32.f32 %v318
    %v447 = vcvt.s32.f32 %v319
    %v448 = vcvt.s32.f32 %v320
    %v449 = vcvt.s32.f32 %v321
    %v450 = vcvt.s32.f32 %v322
    %v451 = vcvt.s32.f32 %v323
    %v452 = vcvt.s32.f32 %v324
    %v453 = vcvt.s32.f32 %v325
    %v454 = vcvt.s32.f32 %v326
    %v455 = vcvt.s32.f32 %v327
    %v456 = vcvt.s32.f32 %v328
    %v457 = vcvt.s32.f32 %v329
    %v458 = vcvt.s32.f32 %v330
    %v459 = vcvt.s32.f32 %v331
    %v460 = vcvt.s32.f32 %v332
    %v461 = vcvt.s32.f32 %v333
    %v462 = vcvt.s32.f32 %v334
    %v463 = vcvt.s32.f32 %v335
    %v464 = vcvt.s32.f32 %v336
    %v465 = vcvt.s32.f32 %v337
    %v466 = vcvt.s32.f32 %v338
    %v467 = vcvt.s32.f32 %v339
    %v468 = vcvt.s32.f32 %v340
    %v469 = vcvt.s32.f32 %v341
    %v470 = vcvt.s32.f32 %v342
    %v471 = vcvt.s32.f32 %v343
    %v472 = vcvt.s32.f32 %v344
    %v473 = vcvt.s32.f32 %v345
    %v474 = vcvt.s32.f32 %v346
    %v475 = vcvt.s32.f32 %v347
    %v476 = vcvt.s32.f32 %v348
    %v477 = vcvt.s32.f32 %v349
    %v478 = vcvt.s32.f32 %v350
    %v479 = vcvt.s32.f32 %v351
    %v480 = vcvt.s32.f32 %v352
    %v481 = vcvt.s32.f32 %v353
    %v482 = vcvt.s32.f32 %v354
    %v483 = vcvt.s32.f32 %v355
    %v484 = vcvt.s32.f32 %v356
    %v485 = vcvt.s32.f32 %v357
    %v486 = vcvt.s32.f32 %v358
    %v487 = vcvt.s32.f32 %v359
    %v488 = vcvt.s32.f32 %v360
    %v489 = vcvt.s32.f32 %v361
    %v490 = vcvt.s32.f32 %v362
    %v491 = vcvt.s32.f32 %v363
    %v492 = vcvt.s32.f32 %v364
    %v493 = vcvt.s32.f32 %v365
    %v494 = vcvt.s32.f32 %v366
    %v495 = vcvt.s32.f32 %v367
    %v496 = vcvt.s32.f32 %v368
    %v497 = vcvt.s32.f32 %v369
    %v498 = vcvt.s32.f32 %v370
    %v499 = vcvt.s32.f32 %v371
    %v500 = vcvt.s32.f32 %v372
    %v501 = vcvt.s32.f32 %v373
    %v502 = vcvt.s32.f32 %v374
    %v503 = vcvt.s32.f32 %v375
    %v504 = vcvt.s32.f32 %v376
    %v505 = vcvt.s32.f32 %v377
    %v506 = vcvt.s32.f32 %v378
    %v507 = vcvt.s32.f32 %v379
    %v508 = vcvt.s32.f32 %v380
    %v509 = vcvt.s32.f32 %v381
    %v510 = vcvt.s32.f32 %v382
    %v511 = vcvt.s32.f32 %v383
    %v512 = vcvt.s32.f32 %v384
    %v513 = vcvt.s32.f32 %v385
    %v514 = vcvt.s32.f32 %v386
    %v515 = vcvt.s32.f32 %v387
    %v516 = vcvt.s32.f32 %v388
    %v517 = vcvt.s32.f32 %v389
    %v518 = vcvt.s32.f32 %v390
    %v519 = vcvt.s32.f32 %v391
    %v520 = vcvt.s32.f32 %v392
    %v521 = vcvt.s32.f32 %v393
    %v522 = vcvt.s32.f32 %v394
    %v523 = vcvt.s32.f32 %v395
    %v524 = vcvt.s32.f32 %v396
    %v525 = vcvt.s32.f32 %v397
    %v526 = vcvt.s32.f32 %v398
    %v527 = vcvt.s32.f32 %v399
    %v528 = vcvt.s32.f32 %v400
    %v529 = vcvt.s32.f32 %v401
    %v530 = vcvt.s32.f32 %v402
    %v531 = vcvt.s32.f32 %v403
    %v532 = vcvt.s32.f32 %v404
    %v533 = vcvt.s32.f32 %v405
    %v534 = vcvt.s32.f32 %v406
    %v535 = vcvt.s32.f32 %v407
    %v536 = vcvt.s32.f32 %v408
    %v537 = vcvt.s32.f32 %v409
    %v538 = vcvt.s32.f32 %v410
    %v539 = vcvt.s32.f32 %v411
    %v540 = vcvt.s32.f32 %v412
    %v541 = vcvt.s32.f32 %v413
    %v542 = vcvt.s32.f32 %v414
    %v543 = vcvt.s32.f32 %v415
    %v544 = vcvt.s32.f32 %v416
    %v545 = vcvt.s32.f32 %v417
    %v546 = vcvt.s32.f32 %v418
    %v547 = vcvt.s32.f32 %v419
    %v548 = vcvt.s32.f32 %v420
    %v549 = vcvt.s32.f32 %v421
    %v550 = vcvt.s32.f32 %v422
    %v551 = vcvt.s32.f32 %v423
    %v552 = vcvt.s32.f32 %v424
    %v553 = vcvt.s32.f32 %v425
    %v554 = vcvt.s32.f32 %v426
    %v555 = vcvt.s32.f32 %v427
    %v556 = vcvt.s32.f32 %v428
    %v557 = vcvt.s32.f32 %v429
    %v558 = vcvt.s32.f32 %v430
    %v559 = vcvt.s32.f32 %v431
    %v560 = vcvt.s32.f32 %v432
    %v561 = vcvt.s32.f32 %v433
    %v562 = vld [vmem:[%s23] sm:$0xf]
    %v564 = vlaneseq
    %v565 = vshrl.u32 %v564, 7
    %v566 = vsub.s32 0, %v565
    %v567 = vrot.slane %v562, %v566
    %v568 = vlaneseq
    %v569 = vshrl.u32 %v568, 7
    %v570 = vsub.s32 1, %v569
    %v571 = vrot.slane %v562, %v570
    %v572 = vlaneseq
    %v573 = vshrl.u32 %v572, 7
    %v574 = vsub.s32 2, %v573
    %v575 = vrot.slane %v562, %v574
    %v576 = vlaneseq
    %v577 = vshrl.u32 %v576, 7
    %v578 = vsub.s32 3, %v577
    %v579 = vrot.slane %v562, %v578
    %v584 = vmul.f32 %v434, %v567
    %v585 = vmul.f32 %v435, %v571
    %v586 = vmul.f32 %v436, %v575
    %v587 = vmul.f32 %v437, %v579
    %v588 = vmul.f32 %v438, %v567
    %v589 = vmul.f32 %v439, %v571
    %v590 = vmul.f32 %v440, %v575
    %v591 = vmul.f32 %v441, %v579
    %v592 = vmul.f32 %v442, %v567
    %v593 = vmul.f32 %v443, %v571
    %v594 = vmul.f32 %v444, %v575
    %v595 = vmul.f32 %v445, %v579
    %v596 = vmul.f32 %v446, %v567
    %v597 = vmul.f32 %v447, %v571
    %v598 = vmul.f32 %v448, %v575
    %v599 = vmul.f32 %v449, %v579
    %v600 = vmul.f32 %v450, %v567
    %v601 = vmul.f32 %v451, %v571
    %v602 = vmul.f32 %v452, %v575
    %v603 = vmul.f32 %v453, %v579
    %v604 = vmul.f32 %v454, %v567
    %v605 = vmul.f32 %v455, %v571
    %v606 = vmul.f32 %v456, %v575
    %v607 = vmul.f32 %v457, %v579
    %v608 = vmul.f32 %v458, %v567
    %v609 = vmul.f32 %v459, %v571
    %v610 = vmul.f32 %v460, %v575
    %v611 = vmul.f32 %v461, %v579
    %v612 = vmul.f32 %v462, %v567
    %v613 = vmul.f32 %v463, %v571
    %v614 = vmul.f32 %v464, %v575
    %v615 = vmul.f32 %v465, %v579
    %v616 = vmul.f32 %v466, %v567
    %v617 = vmul.f32 %v467, %v571
    %v618 = vmul.f32 %v468, %v575
    %v619 = vmul.f32 %v469, %v579
    %v620 = vmul.f32 %v470, %v567
    %v621 = vmul.f32 %v471, %v571
    %v622 = vmul.f32 %v472, %v575
    %v623 = vmul.f32 %v473, %v579
    %v624 = vmul.f32 %v474, %v567
    %v625 = vmul.f32 %v475, %v571
    %v626 = vmul.f32 %v476, %v575
    %v627 = vmul.f32 %v477, %v579
    %v628 = vmul.f32 %v478, %v567
    %v629 = vmul.f32 %v479, %v571
    %v630 = vmul.f32 %v480, %v575
    %v631 = vmul.f32 %v481, %v579
    %v632 = vmul.f32 %v482, %v567
    %v633 = vmul.f32 %v483, %v571
    %v634 = vmul.f32 %v484, %v575
    %v635 = vmul.f32 %v485, %v579
    %v636 = vmul.f32 %v486, %v567
    %v637 = vmul.f32 %v487, %v571
    %v638 = vmul.f32 %v488, %v575
    %v639 = vmul.f32 %v489, %v579
    %v640 = vmul.f32 %v490, %v567
    %v641 = vmul.f32 %v491, %v571
    %v642 = vmul.f32 %v492, %v575
    %v643 = vmul.f32 %v493, %v579
    %v644 = vmul.f32 %v494, %v567
    %v645 = vmul.f32 %v495, %v571
    %v646 = vmul.f32 %v496, %v575
    %v647 = vmul.f32 %v497, %v579
    %v648 = vmul.f32 %v498, %v567
    %v649 = vmul.f32 %v499, %v571
    %v650 = vmul.f32 %v500, %v575
    %v651 = vmul.f32 %v501, %v579
    %v652 = vmul.f32 %v502, %v567
    %v653 = vmul.f32 %v503, %v571
    %v654 = vmul.f32 %v504, %v575
    %v655 = vmul.f32 %v505, %v579
    %v656 = vmul.f32 %v506, %v567
    %v657 = vmul.f32 %v507, %v571
    %v658 = vmul.f32 %v508, %v575
    %v659 = vmul.f32 %v509, %v579
    %v660 = vmul.f32 %v510, %v567
    %v661 = vmul.f32 %v511, %v571
    %v662 = vmul.f32 %v512, %v575
    %v663 = vmul.f32 %v513, %v579
    %v664 = vmul.f32 %v514, %v567
    %v665 = vmul.f32 %v515, %v571
    %v666 = vmul.f32 %v516, %v575
    %v667 = vmul.f32 %v517, %v579
    %v668 = vmul.f32 %v518, %v567
    %v669 = vmul.f32 %v519, %v571
    %v670 = vmul.f32 %v520, %v575
    %v671 = vmul.f32 %v521, %v579
    %v672 = vmul.f32 %v522, %v567
    %v673 = vmul.f32 %v523, %v571
    %v674 = vmul.f32 %v524, %v575
    %v675 = vmul.f32 %v525, %v579
    %v676 = vmul.f32 %v526, %v567
    %v677 = vmul.f32 %v527, %v571
    %v678 = vmul.f32 %v528, %v575
    %v679 = vmul.f32 %v529, %v579
    %v680 = vmul.f32 %v530, %v567
    %v681 = vmul.f32 %v531, %v571
    %v682 = vmul.f32 %v532, %v575
    %v683 = vmul.f32 %v533, %v579
    %v684 = vmul.f32 %v534, %v567
    %v685 = vmul.f32 %v535, %v571
    %v686 = vmul.f32 %v536, %v575
    %v687 = vmul.f32 %v537, %v579
    %v688 = vmul.f32 %v538, %v567
    %v689 = vmul.f32 %v539, %v571
    %v690 = vmul.f32 %v540, %v575
    %v691 = vmul.f32 %v541, %v579
    %v692 = vmul.f32 %v542, %v567
    %v693 = vmul.f32 %v543, %v571
    %v694 = vmul.f32 %v544, %v575
    %v695 = vmul.f32 %v545, %v579
    %v696 = vmul.f32 %v546, %v567
    %v697 = vmul.f32 %v547, %v571
    %v698 = vmul.f32 %v548, %v575
    %v699 = vmul.f32 %v549, %v579
    %v700 = vmul.f32 %v550, %v567
    %v701 = vmul.f32 %v551, %v571
    %v702 = vmul.f32 %v552, %v575
    %v703 = vmul.f32 %v553, %v579
    %v704 = vmul.f32 %v554, %v567
    %v705 = vmul.f32 %v555, %v571
    %v706 = vmul.f32 %v556, %v575
    %v707 = vmul.f32 %v557, %v579
    %v708 = vmul.f32 %v558, %v567
    %v709 = vmul.f32 %v559, %v571
    %v710 = vmul.f32 %v560, %v575
    %v711 = vmul.f32 %v561, %v579
    %v712 = vpack.c.bf16 %v588, %v584
    %v713 = vpack.c.bf16 %v589, %v585
    %v714 = vpack.c.bf16 %v590, %v586
    %v715 = vpack.c.bf16 %v591, %v587
    %v716 = vpack.c.bf16 %v596, %v592
    %v717 = vpack.c.bf16 %v597, %v593
    %v718 = vpack.c.bf16 %v598, %v594
    %v719 = vpack.c.bf16 %v599, %v595
    %v720 = vpack.c.bf16 %v604, %v600
    %v721 = vpack.c.bf16 %v605, %v601
    %v722 = vpack.c.bf16 %v606, %v602
    %v723 = vpack.c.bf16 %v607, %v603
    %v724 = vpack.c.bf16 %v612, %v608
    %v725 = vpack.c.bf16 %v613, %v609
    %v726 = vpack.c.bf16 %v614, %v610
    %v727 = vpack.c.bf16 %v615, %v611
    %v728 = vpack.c.bf16 %v620, %v616
    %v729 = vpack.c.bf16 %v621, %v617
    %v730 = vpack.c.bf16 %v622, %v618
    %v731 = vpack.c.bf16 %v623, %v619
    %v732 = vpack.c.bf16 %v628, %v624
    %v733 = vpack.c.bf16 %v629, %v625
    %v734 = vpack.c.bf16 %v630, %v626
    %v735 = vpack.c.bf16 %v631, %v627
    %v736 = vpack.c.bf16 %v636, %v632
    %v737 = vpack.c.bf16 %v637, %v633
    %v738 = vpack.c.bf16 %v638, %v634
    %v739 = vpack.c.bf16 %v639, %v635
    %v740 = vpack.c.bf16 %v644, %v640
    %v741 = vpack.c.bf16 %v645, %v641
    %v742 = vpack.c.bf16 %v646, %v642
    %v743 = vpack.c.bf16 %v647, %v643
    %v744 = vpack.c.bf16 %v652, %v648
    %v745 = vpack.c.bf16 %v653, %v649
    %v746 = vpack.c.bf16 %v654, %v650
    %v747 = vpack.c.bf16 %v655, %v651
    %v748 = vpack.c.bf16 %v660, %v656
    %v749 = vpack.c.bf16 %v661, %v657
    %v750 = vpack.c.bf16 %v662, %v658
    %v751 = vpack.c.bf16 %v663, %v659
    %v752 = vpack.c.bf16 %v668, %v664
    %v753 = vpack.c.bf16 %v669, %v665
    %v754 = vpack.c.bf16 %v670, %v666
    %v755 = vpack.c.bf16 %v671, %v667
    %v756 = vpack.c.bf16 %v676, %v672
    %v757 = vpack.c.bf16 %v677, %v673
    %v758 = vpack.c.bf16 %v678, %v674
    %v759 = vpack.c.bf16 %v679, %v675
    %v760 = vpack.c.bf16 %v684, %v680
    %v761 = vpack.c.bf16 %v685, %v681
    %v762 = vpack.c.bf16 %v686, %v682
    %v763 = vpack.c.bf16 %v687, %v683
    %v764 = vpack.c.bf16 %v692, %v688
    %v765 = vpack.c.bf16 %v693, %v689
    %v766 = vpack.c.bf16 %v694, %v690
    %v767 = vpack.c.bf16 %v695, %v691
    %v768 = vpack.c.bf16 %v700, %v696
    %v769 = vpack.c.bf16 %v701, %v697
    %v770 = vpack.c.bf16 %v702, %v698
    %v771 = vpack.c.bf16 %v703, %v699
    %v772 = vpack.c.bf16 %v708, %v704
    %v773 = vpack.c.bf16 %v709, %v705
    %v774 = vpack.c.bf16 %v710, %v706
    %v775 = vpack.c.bf16 %v711, %v707
    %v776 = vld [vmem:[%s43] sm:$0xf]
    %v778 = vlaneseq
    %v779 = vshrl.u32 %v778, 7
    %v780 = vsub.s32 0, %v779
    %v781 = vrot.slane %v776, %v780
    %v782 = vlaneseq
    %v783 = vshrl.u32 %v782, 7
    %v784 = vsub.s32 1, %v783
    %v785 = vrot.slane %v776, %v784
    %v786 = vlaneseq
    %v787 = vshrl.u32 %v786, 7
    %v788 = vsub.s32 2, %v787
    %v789 = vrot.slane %v776, %v788
    %v790 = vlaneseq
    %v791 = vshrl.u32 %v790, 7
    %v792 = vsub.s32 3, %v791
    %v793 = vrot.slane %v776, %v792
    %798 = vmatprep.subr.bf16.mxu0 %v713
    %799 = vmatpush1.bf16.msra.mxu0 %v712
    %800 = vmatprep.subr.bf16.mxu0 %v717
    %801 = vmatpush1.bf16.msra.mxu0 %v716
    %802 = vmatprep.subr.bf16.mxu0 %v721
    %803 = vmatpush1.bf16.msra.mxu0 %v720
    %804 = vmatprep.subr.bf16.mxu0 %v725
    %805 = vmatpush1.bf16.msra.mxu0 %v724
    %806 = vmatprep.subr.bf16.mxu0 %v729
    %807 = vmatpush1.bf16.msra.mxu0 %v728
    %808 = vmatprep.subr.bf16.mxu0 %v733
    %809 = vmatpush1.bf16.msra.mxu0 %v732
    %810 = vmatprep.subr.bf16.mxu0 %v737
    %811 = vmatpush1.bf16.msra.mxu0 %v736
    %812 = vmatprep.subr.bf16.mxu0 %v741
    %813 = vmatpush1.bf16.msra.mxu0 %v740
    %814 = vmatprep.subr.bf16.mxu0 %v745
    %815 = vmatpush1.bf16.msra.mxu0 %v744
    %816 = vmatprep.subr.bf16.mxu0 %v749
    %817 = vmatpush1.bf16.msra.mxu0 %v748
    %818 = vmatprep.subr.bf16.mxu0 %v753
    %819 = vmatpush1.bf16.msra.mxu0 %v752
    %820 = vmatprep.subr.bf16.mxu0 %v757
    %821 = vmatpush1.bf16.msra.mxu0 %v756
    %822 = vmatprep.subr.bf16.mxu0 %v761
    %823 = vmatpush1.bf16.msra.mxu0 %v760
    %824 = vmatprep.subr.bf16.mxu0 %v765
    %825 = vmatpush1.bf16.msra.mxu0 %v764
    %826 = vmatprep.subr.bf16.mxu0 %v769
    %827 = vmatpush1.bf16.msra.mxu0 %v768
    %828 = vmatprep.subr.bf16.mxu0 %v773
    %829 = vmatpush1.bf16.msra.mxu0 %v772
    %830 = vmatprep.mubr.bf16.mxu0 %v273
    %831 = vmatmul.mubr.bf16.gmra.mrb[0].mxu0 %v272
    %v832 = vpop.f32.mrb[0].mxu0
    %v833 = vadd.f32 %v781, %v832
    %v834 = vpop.f32.mrb[0].mxu0
    %v835 = vadd.f32 %v785, %v834
    %v836 = vpop.f32.mrb[0].mxu0
    %v837 = vpop.f32.mrb[0].mxu0
    %838 = vdwg.mxu0
    %839 = vmatprep.subr.bf16.mxu0 %v715
    %840 = vmatpush1.bf16.msra.mxu0 %v714
    %841 = vmatprep.subr.bf16.mxu0 %v719
    %842 = vmatpush1.bf16.msra.mxu0 %v718
    %843 = vmatprep.subr.bf16.mxu0 %v723
    %844 = vmatpush1.bf16.msra.mxu0 %v722
    %845 = vmatprep.subr.bf16.mxu0 %v727
    %846 = vmatpush1.bf16.msra.mxu0 %v726
    %847 = vmatprep.subr.bf16.mxu0 %v731
    %848 = vmatpush1.bf16.msra.mxu0 %v730
    %849 = vmatprep.subr.bf16.mxu0 %v735
    %850 = vmatpush1.bf16.msra.mxu0 %v734
    %851 = vmatprep.subr.bf16.mxu0 %v739
    %852 = vmatpush1.bf16.msra.mxu0 %v738
    %853 = vmatprep.subr.bf16.mxu0 %v743
    %854 = vmatpush1.bf16.msra.mxu0 %v742
    %855 = vmatprep.subr.bf16.mxu0 %v747
    %856 = vmatpush1.bf16.msra.mxu0 %v746
    %857 = vmatprep.subr.bf16.mxu0 %v751
    %858 = vmatpush1.bf16.msra.mxu0 %v750
    %859 = vmatprep.subr.bf16.mxu0 %v755
    %860 = vmatpush1.bf16.msra.mxu0 %v754
    %861 = vmatprep.subr.bf16.mxu0 %v759
    %862 = vmatpush1.bf16.msra.mxu0 %v758
    %863 = vmatprep.subr.bf16.mxu0 %v763
    %864 = vmatpush1.bf16.msra.mxu0 %v762
    %865 = vmatprep.subr.bf16.mxu0 %v767
    %866 = vmatpush1.bf16.msra.mxu0 %v766
    %867 = vmatprep.subr.bf16.mxu0 %v771
    %868 = vmatpush1.bf16.msra.mxu0 %v770
    %869 = vmatprep.subr.bf16.mxu0 %v775
    %870 = vmatpush1.bf16.msra.mxu0 %v774
    %871 = vmatprep.mubr.bf16.mxu0 %v273
    %872 = vmatmul.mubr.bf16.gmra.mrb[0].mxu0 %v272
    %v873 = vpop.f32.mrb[0].mxu0
    %v874 = vadd.f32 %v789, %v873
    %v875 = vpop.f32.mrb[0].mxu0
    %v876 = vadd.f32 %v793, %v875
    %v877 = vpop.f32.mrb[0].mxu0
    %v878 = vpop.f32.mrb[0].mxu0
    %879 = vdwg.mxu0
    %v880 = vmax.f32 %v833, 0.0
    %v881 = vmax.f32 %v835, 0.0
    %v882 = vmax.f32 %v874, 0.0
    %v883 = vmax.f32 %v876, 0.0
    %v884 = vpack.c.bf16 %v880, %v880
    %v885 = vpack.c.bf16 %v881, %v881
    %v886 = vpack.c.bf16 %v882, %v882
    %v887 = vpack.c.bf16 %v883, %v883
    %v888 = vld [vmem:[#allocation4] sm:$0xff]
    %v889 = vld [vmem:[#allocation4 + $0x8] sm:$0xff]
    %v890 = vld [vmem:[#allocation4 + $0x10] sm:$0xff]
    %v891 = vld [vmem:[#allocation4 + $0x18] sm:$0xff]
    %v892 = vld [vmem:[#allocation4 + $0x20] sm:$0xff]
    %v893 = vld [vmem:[#allocation4 + $0x28] sm:$0xff]
    %v894 = vld [vmem:[#allocation4 + $0x30] sm:$0xff]
    %v895 = vld [vmem:[#allocation4 + $0x38] sm:$0xff]
    %v896 = vld [vmem:[#allocation4 + $0x40] sm:$0xff]
    %v897 = vld [vmem:[#allocation4 + $0x48] sm:$0xff]
    %v898 = vld [vmem:[#allocation4 + $0x50] sm:$0xff]
    %v899 = vld [vmem:[#allocation4 + $0x58] sm:$0xff]
    %v900 = vld [vmem:[#allocation4 + $0x60] sm:$0xff]
    %v901 = vld [vmem:[#allocation4 + $0x68] sm:$0xff]
    %v902 = vld [vmem:[#allocation4 + $0x70] sm:$0xff]
    %v903 = vld [vmem:[#allocation4 + $0x78] sm:$0xff]
    %v904 = vld [vmem:[#allocation4 + $0x80] sm:$0xff]
    %v905 = vld [vmem:[#allocation4 + $0x88] sm:$0xff]
    %v906 = vld [vmem:[#allocation4 + $0x90] sm:$0xff]
    %v907 = vld [vmem:[#allocation4 + $0x98] sm:$0xff]
    %v908 = vld [vmem:[#allocation4 + $0xa0] sm:$0xff]
    %v909 = vld [vmem:[#allocation4 + $0xa8] sm:$0xff]
    %v910 = vld [vmem:[#allocation4 + $0xb0] sm:$0xff]
    %v911 = vld [vmem:[#allocation4 + $0xb8] sm:$0xff]
    %v912 = vld [vmem:[#allocation4 + $0xc0] sm:$0xff]
    %v913 = vld [vmem:[#allocation4 + $0xc8] sm:$0xff]
    %v914 = vld [vmem:[#allocation4 + $0xd0] sm:$0xff]
    %v915 = vld [vmem:[#allocation4 + $0xd8] sm:$0xff]
    %v916 = vld [vmem:[#allocation4 + $0xe0] sm:$0xff]
    %v917 = vld [vmem:[#allocation4 + $0xe8] sm:$0xff]
    %v918 = vld [vmem:[#allocation4 + $0xf0] sm:$0xff]
    %v919 = vld [vmem:[#allocation4 + $0xf8] sm:$0xff]
    %v920 = vld [vmem:[#allocation4 + $0x100] sm:$0xff]
    %v921 = vld [vmem:[#allocation4 + $0x108] sm:$0xff]
    %v922 = vld [vmem:[#allocation4 + $0x110] sm:$0xff]
    %v923 = vld [vmem:[#allocation4 + $0x118] sm:$0xff]
    %v924 = vld [vmem:[#allocation4 + $0x120] sm:$0xff]
    %v925 = vld [vmem:[#allocation4 + $0x128] sm:$0xff]
    %v926 = vld [vmem:[#allocation4 + $0x130] sm:$0xff]
    %v927 = vld [vmem:[#allocation4 + $0x138] sm:$0xff]
    %v928 = vld [vmem:[#allocation4 + $0x140] sm:$0xff]
    %v929 = vld [vmem:[#allocation4 + $0x148] sm:$0xff]
    %v930 = vld [vmem:[#allocation4 + $0x150] sm:$0xff]
    %v931 = vld [vmem:[#allocation4 + $0x158] sm:$0xff]
    %v932 = vld [vmem:[#allocation4 + $0x160] sm:$0xff]
    %v933 = vld [vmem:[#allocation4 + $0x168] sm:$0xff]
    %v934 = vld [vmem:[#allocation4 + $0x170] sm:$0xff]
    %v935 = vld [vmem:[#allocation4 + $0x178] sm:$0xff]
    %v936 = vunpack.c.0.s8 %v888
    %v937 = vunpack.c.0.s8 %v889
    %v938 = vunpack.c.0.s8 %v890
    %v939 = vunpack.c.1.s8 %v888
    %v940 = vunpack.c.1.s8 %v889
    %v941 = vunpack.c.1.s8 %v890
    %v942 = vunpack.c.2.s8 %v888
    %v943 = vunpack.c.2.s8 %v889
    %v944 = vunpack.c.2.s8 %v890
    %v945 = vunpack.c.3.s8 %v888
    %v946 = vunpack.c.3.s8 %v889
    %v947 = vunpack.c.3.s8 %v890
    %v948 = vunpack.c.0.s8 %v891
    %v949 = vunpack.c.0.s8 %v892
    %v950 = vunpack.c.0.s8 %v893
    %v951 = vunpack.c.1.s8 %v891
    %v952 = vunpack.c.1.s8 %v892
    %v953 = vunpack.c.1.s8 %v893
    %v954 = vunpack.c.2.s8 %v891
    %v955 = vunpack.c.2.s8 %v892
    %v956 = vunpack.c.2.s8 %v893
    %v957 = vunpack.c.3.s8 %v891
    %v958 = vunpack.c.3.s8 %v892
    %v959 = vunpack.c.3.s8 %v893
    %v960 = vunpack.c.0.s8 %v894
    %v961 = vunpack.c.0.s8 %v895
    %v962 = vunpack.c.0.s8 %v896
    %v963 = vunpack.c.1.s8 %v894
    %v964 = vunpack.c.1.s8 %v895
    %v965 = vunpack.c.1.s8 %v896
    %v966 = vunpack.c.2.s8 %v894
    %v967 = vunpack.c.2.s8 %v895
    %v968 = vunpack.c.2.s8 %v896
    %v969 = vunpack.c.3.s8 %v894
    %v970 = vunpack.c.3.s8 %v895
    %v971 = vunpack.c.3.s8 %v896
    %v972 = vunpack.c.0.s8 %v897
    %v973 = vunpack.c.0.s8 %v898
    %v974 = vunpack.c.0.s8 %v899
    %v975 = vunpack.c.1.s8 %v897
    %v976 = vunpack.c.1.s8 %v898
    %v977 = vunpack.c.1.s8 %v899
    %v978 = vunpack.c.2.s8 %v897
    %v979 = vunpack.c.2.s8 %v898
    %v980 = vunpack.c.2.s8 %v899
    %v981 = vunpack.c.3.s8 %v897
    %v982 = vunpack.c.3.s8 %v898
    %v983 = vunpack.c.3.s8 %v899
    %v984 = vunpack.c.0.s8 %v900
    %v985 = vunpack.c.0.s8 %v901
    %v986 = vunpack.c.0.s8 %v902
    %v987 = vunpack.c.1.s8 %v900
    %v988 = vunpack.c.1.s8 %v901
    %v989 = vunpack.c.1.s8 %v902
    %v990 = vunpack.c.2.s8 %v900
    %v991 = vunpack.c.2.s8 %v901
    %v992 = vunpack.c.2.s8 %v902
    %v993 = vunpack.c.3.s8 %v900
    %v994 = vunpack.c.3.s8 %v901
    %v995 = vunpack.c.3.s8 %v902
    %v996 = vunpack.c.0.s8 %v903
    %v997 = vunpack.c.0.s8 %v904
    %v998 = vunpack.c.0.s8 %v905
    %v999 = vunpack.c.1.s8 %v903
    %v1000 = vunpack.c.1.s8 %v904
    %v1001 = vunpack.c.1.s8 %v905
    %v1002 = vunpack.c.2.s8 %v903
    %v1003 = vunpack.c.2.s8 %v904
    %v1004 = vunpack.c.2.s8 %v905
    %v1005 = vunpack.c.3.s8 %v903
    %v1006 = vunpack.c.3.s8 %v904
    %v1007 = vunpack.c.3.s8 %v905
    %v1008 = vunpack.c.0.s8 %v906
    %v1009 = vunpack.c.0.s8 %v907
    %v1010 = vunpack.c.0.s8 %v908
    %v1011 = vunpack.c.1.s8 %v906
    %v1012 = vunpack.c.1.s8 %v907
    %v1013 = vunpack.c.1.s8 %v908
    %v1014 = vunpack.c.2.s8 %v906
    %v1015 = vunpack.c.2.s8 %v907
    %v1016 = vunpack.c.2.s8 %v908
    %v1017 = vunpack.c.3.s8 %v906
    %v1018 = vunpack.c.3.s8 %v907
    %v1019 = vunpack.c.3.s8 %v908
    %v1020 = vunpack.c.0.s8 %v909
    %v1021 = vunpack.c.0.s8 %v910
    %v1022 = vunpack.c.0.s8 %v911
    %v1023 = vunpack.c.1.s8 %v909
    %v1024 = vunpack.c.1.s8 %v910
    %v1025 = vunpack.c.1.s8 %v911
    %v1026 = vunpack.c.2.s8 %v909
    %v1027 = vunpack.c.2.s8 %v910
    %v1028 = vunpack.c.2.s8 %v911
    %v1029 = vunpack.c.3.s8 %v909
    %v1030 = vunpack.c.3.s8 %v910
    %v1031 = vunpack.c.3.s8 %v911
    %v1032 = vunpack.c.0.s8 %v912
    %v1033 = vunpack.c.0.s8 %v913
    %v1034 = vunpack.c.0.s8 %v914
    %v1035 = vunpack.c.1.s8 %v912
    %v1036 = vunpack.c.1.s8 %v913
    %v1037 = vunpack.c.1.s8 %v914
    %v1038 = vunpack.c.2.s8 %v912
    %v1039 = vunpack.c.2.s8 %v913
    %v1040 = vunpack.c.2.s8 %v914
    %v1041 = vunpack.c.3.s8 %v912
    %v1042 = vunpack.c.3.s8 %v913
    %v1043 = vunpack.c.3.s8 %v914
    %v1044 = vunpack.c.0.s8 %v915
    %v1045 = vunpack.c.0.s8 %v916
    %v1046 = vunpack.c.0.s8 %v917
    %v1047 = vunpack.c.1.s8 %v915
    %v1048 = vunpack.c.1.s8 %v916
    %v1049 = vunpack.c.1.s8 %v917
    %v1050 = vunpack.c.2.s8 %v915
    %v1051 = vunpack.c.2.s8 %v916
    %v1052 = vunpack.c.2.s8 %v917
    %v1053 = vunpack.c.3.s8 %v915
    %v1054 = vunpack.c.3.s8 %v916
    %v1055 = vunpack.c.3.s8 %v917
    %v1056 = vunpack.c.0.s8 %v918
    %v1057 = vunpack.c.0.s8 %v919
    %v1058 = vunpack.c.0.s8 %v920
    %v1059 = vunpack.c.1.s8 %v918
    %v1060 = vunpack.c.1.s8 %v919
    %v1061 = vunpack.c.1.s8 %v920
    %v1062 = vunpack.c.2.s8 %v918
    %v1063 = vunpack.c.2.s8 %v919
    %v1064 = vunpack.c.2.s8 %v920
    %v1065 = vunpack.c.3.s8 %v918
    %v1066 = vunpack.c.3.s8 %v919
    %v1067 = vunpack.c.3.s8 %v920
    %v1068 = vunpack.c.0.s8 %v921
    %v1069 = vunpack.c.0.s8 %v922
    %v1070 = vunpack.c.0.s8 %v923
    %v1071 = vunpack.c.1.s8 %v921
    %v1072 = vunpack.c.1.s8 %v922
    %v1073 = vunpack.c.1.s8 %v923
    %v1074 = vunpack.c.2.s8 %v921
    %v1075 = vunpack.c.2.s8 %v922
    %v1076 = vunpack.c.2.s8 %v923
    %v1077 = vunpack.c.3.s8 %v921
    %v1078 = vunpack.c.3.s8 %v922
    %v1079 = vunpack.c.3.s8 %v923
    %v1080 = vunpack.c.0.s8 %v924
    %v1081 = vunpack.c.0.s8 %v925
    %v1082 = vunpack.c.0.s8 %v926
    %v1083 = vunpack.c.1.s8 %v924
    %v1084 = vunpack.c.1.s8 %v925
    %v1085 = vunpack.c.1.s8 %v926
    %v1086 = vunpack.c.2.s8 %v924
    %v1087 = vunpack.c.2.s8 %v925
    %v1088 = vunpack.c.2.s8 %v926
    %v1089 = vunpack.c.3.s8 %v924
    %v1090 = vunpack.c.3.s8 %v925
    %v1091 = vunpack.c.3.s8 %v926
    %v1092 = vunpack.c.0.s8 %v927
    %v1093 = vunpack.c.0.s8 %v928
    %v1094 = vunpack.c.0.s8 %v929
    %v1095 = vunpack.c.1.s8 %v927
    %v1096 = vunpack.c.1.s8 %v928
    %v1097 = vunpack.c.1.s8 %v929
    %v1098 = vunpack.c.2.s8 %v927
    %v1099 = vunpack.c.2.s8 %v928
    %v1100 = vunpack.c.2.s8 %v929
    %v1101 = vunpack.c.3.s8 %v927
    %v1102 = vunpack.c.3.s8 %v928
    %v1103 = vunpack.c.3.s8 %v929
    %v1104 = vunpack.c.0.s8 %v930
    %v1105 = vunpack.c.0.s8 %v931
    %v1106 = vunpack.c.0.s8 %v932
    %v1107 = vunpack.c.1.s8 %v930
    %v1108 = vunpack.c.1.s8 %v931
    %v1109 = vunpack.c.1.s8 %v932
    %v1110 = vunpack.c.2.s8 %v930
    %v1111 = vunpack.c.2.s8 %v931
    %v1112 = vunpack.c.2.s8 %v932
    %v1113 = vunpack.c.3.s8 %v930
    %v1114 = vunpack.c.3.s8 %v931
    %v1115 = vunpack.c.3.s8 %v932
    %v1116 = vunpack.c.0.s8 %v933
    %v1117 = vunpack.c.0.s8 %v934
    %v1118 = vunpack.c.0.s8 %v935
    %v1119 = vunpack.c.1.s8 %v933
    %v1120 = vunpack.c.1.s8 %v934
    %v1121 = vunpack.c.1.s8 %v935
    %v1122 = vunpack.c.2.s8 %v933
    %v1123 = vunpack.c.2.s8 %v934
    %v1124 = vunpack.c.2.s8 %v935
    %v1125 = vunpack.c.3.s8 %v933
    %v1126 = vunpack.c.3.s8 %v934
    %v1127 = vunpack.c.3.s8 %v935
    %v1128 = vcvt.s32.f32 %v936
    %v1129 = vcvt.s32.f32 %v937
    %v1130 = vcvt.s32.f32 %v938
    %v1131 = vcvt.s32.f32 %v939
    %v1132 = vcvt.s32.f32 %v940
    %v1133 = vcvt.s32.f32 %v941
    %v1134 = vcvt.s32.f32 %v942
    %v1135 = vcvt.s32.f32 %v943
    %v1136 = vcvt.s32.f32 %v944
    %v1137 = vcvt.s32.f32 %v945
    %v1138 = vcvt.s32.f32 %v946
    %v1139 = vcvt.s32.f32 %v947
    %v1140 = vcvt.s32.f32 %v948
    %v1141 = vcvt.s32.f32 %v949
    %v1142 = vcvt.s32.f32 %v950
    %v1143 = vcvt.s32.f32 %v951
    %v1144 = vcvt.s32.f32 %v952
    %v1145 = vcvt.s32.f32 %v953
    %v1146 = vcvt.s32.f32 %v954
    %v1147 = vcvt.s32.f32 %v955
    %v1148 = vcvt.s32.f32 %v956
    %v1149 = vcvt.s32.f32 %v957
    %v1150 = vcvt.s32.f32 %v958
    %v1151 = vcvt.s32.f32 %v959
    %v1152 = vcvt.s32.f32 %v960
    %v1153 = vcvt.s32.f32 %v961
    %v1154 = vcvt.s32.f32 %v962
    %v1155 = vcvt.s32.f32 %v963
    %v1156 = vcvt.s32.f32 %v964
    %v1157 = vcvt.s32.f32 %v965
    %v1158 = vcvt.s32.f32 %v966
    %v1159 = vcvt.s32.f32 %v967
    %v1160 = vcvt.s32.f32 %v968
    %v1161 = vcvt.s32.f32 %v969
    %v1162 = vcvt.s32.f32 %v970
    %v1163 = vcvt.s32.f32 %v971
    %v1164 = vcvt.s32.f32 %v972
    %v1165 = vcvt.s32.f32 %v973
    %v1166 = vcvt.s32.f32 %v974
    %v1167 = vcvt.s32.f32 %v975
    %v1168 = vcvt.s32.f32 %v976
    %v1169 = vcvt.s32.f32 %v977
    %v1170 = vcvt.s32.f32 %v978
    %v1171 = vcvt.s32.f32 %v979
    %v1172 = vcvt.s32.f32 %v980
    %v1173 = vcvt.s32.f32 %v981
    %v1174 = vcvt.s32.f32 %v982
    %v1175 = vcvt.s32.f32 %v983
    %v1176 = vcvt.s32.f32 %v984
    %v1177 = vcvt.s32.f32 %v985
    %v1178 = vcvt.s32.f32 %v986
    %v1179 = vcvt.s32.f32 %v987
    %v1180 = vcvt.s32.f32 %v988
    %v1181 = vcvt.s32.f32 %v989
    %v1182 = vcvt.s32.f32 %v990
    %v1183 = vcvt.s32.f32 %v991
    %v1184 = vcvt.s32.f32 %v992
    %v1185 = vcvt.s32.f32 %v993
    %v1186 = vcvt.s32.f32 %v994
    %v1187 = vcvt.s32.f32 %v995
    %v1188 = vcvt.s32.f32 %v996
    %v1189 = vcvt.s32.f32 %v997
    %v1190 = vcvt.s32.f32 %v998
    %v1191 = vcvt.s32.f32 %v999
    %v1192 = vcvt.s32.f32 %v1000
    %v1193 = vcvt.s32.f32 %v1001
    %v1194 = vcvt.s32.f32 %v1002
    %v1195 = vcvt.s32.f32 %v1003
    %v1196 = vcvt.s32.f32 %v1004
    %v1197 = vcvt.s32.f32 %v1005
    %v1198 = vcvt.s32.f32 %v1006
    %v1199 = vcvt.s32.f32 %v1007
    %v1200 = vcvt.s32.f32 %v1008
    %v1201 = vcvt.s32.f32 %v1009
    %v1202 = vcvt.s32.f32 %v1010
    %v1203 = vcvt.s32.f32 %v1011
    %v1204 = vcvt.s32.f32 %v1012
    %v1205 = vcvt.s32.f32 %v1013
    %v1206 = vcvt.s32.f32 %v1014
    %v1207 = vcvt.s32.f32 %v1015
    %v1208 = vcvt.s32.f32 %v1016
    %v1209 = vcvt.s32.f32 %v1017
    %v1210 = vcvt.s32.f32 %v1018
    %v1211 = vcvt.s32.f32 %v1019
    %v1212 = vcvt.s32.f32 %v1020
    %v1213 = vcvt.s32.f32 %v1021
    %v1214 = vcvt.s32.f32 %v1022
    %v1215 = vcvt.s32.f32 %v1023
    %v1216 = vcvt.s32.f32 %v1024
    %v1217 = vcvt.s32.f32 %v1025
    %v1218 = vcvt.s32.f32 %v1026
    %v1219 = vcvt.s32.f32 %v1027
    %v1220 = vcvt.s32.f32 %v1028
    %v1221 = vcvt.s32.f32 %v1029
    %v1222 = vcvt.s32.f32 %v1030
    %v1223 = vcvt.s32.f32 %v1031
    %v1224 = vcvt.s32.f32 %v1032
    %v1225 = vcvt.s32.f32 %v1033
    %v1226 = vcvt.s32.f32 %v1034
    %v1227 = vcvt.s32.f32 %v1035
    %v1228 = vcvt.s32.f32 %v1036
    %v1229 = vcvt.s32.f32 %v1037
    %v1230 = vcvt.s32.f32 %v1038
    %v1231 = vcvt.s32.f32 %v1039
    %v1232 = vcvt.s32.f32 %v1040
    %v1233 = vcvt.s32.f32 %v1041
    %v1234 = vcvt.s32.f32 %v1042
    %v1235 = vcvt.s32.f32 %v1043
    %v1236 = vcvt.s32.f32 %v1044
    %v1237 = vcvt.s32.f32 %v1045
    %v1238 = vcvt.s32.f32 %v1046
    %v1239 = vcvt.s32.f32 %v1047
    %v1240 = vcvt.s32.f32 %v1048
    %v1241 = vcvt.s32.f32 %v1049
    %v1242 = vcvt.s32.f32 %v1050
    %v1243 = vcvt.s32.f32 %v1051
    %v1244 = vcvt.s32.f32 %v1052
    %v1245 = vcvt.s32.f32 %v1053
    %v1246 = vcvt.s32.f32 %v1054
    %v1247 = vcvt.s32.f32 %v1055
    %v1248 = vcvt.s32.f32 %v1056
    %v1249 = vcvt.s32.f32 %v1057
    %v1250 = vcvt.s32.f32 %v1058
    %v1251 = vcvt.s32.f32 %v1059
    %v1252 = vcvt.s32.f32 %v1060
    %v1253 = vcvt.s32.f32 %v1061
    %v1254 = vcvt.s32.f32 %v1062
    %v1255 = vcvt.s32.f32 %v1063
    %v1256 = vcvt.s32.f32 %v1064
    %v1257 = vcvt.s32.f32 %v1065
    %v1258 = vcvt.s32.f32 %v1066
    %v1259 = vcvt.s32.f32 %v1067
    %v1260 = vcvt.s32.f32 %v1068
    %v1261 = vcvt.s32.f32 %v1069
    %v1262 = vcvt.s32.f32 %v1070
    %v1263 = vcvt.s32.f32 %v1071
    %v1264 = vcvt.s32.f32 %v1072
    %v1265 = vcvt.s32.f32 %v1073
    %v1266 = vcvt.s32.f32 %v1074
    %v1267 = vcvt.s32.f32 %v1075
    %v1268 = vcvt.s32.f32 %v1076
    %v1269 = vcvt.s32.f32 %v1077
    %v1270 = vcvt.s32.f32 %v1078
    %v1271 = vcvt.s32.f32 %v1079
    %v1272 = vcvt.s32.f32 %v1080
    %v1273 = vcvt.s32.f32 %v1081
    %v1274 = vcvt.s32.f32 %v1082
    %v1275 = vcvt.s32.f32 %v1083
    %v1276 = vcvt.s32.f32 %v1084
    %v1277 = vcvt.s32.f32 %v1085
    %v1278 = vcvt.s32.f32 %v1086
    %v1279 = vcvt.s32.f32 %v1087
    %v1280 = vcvt.s32.f32 %v1088
    %v1281 = vcvt.s32.f32 %v1089
    %v1282 = vcvt.s32.f32 %v1090
    %v1283 = vcvt.s32.f32 %v1091
    %v1284 = vcvt.s32.f32 %v1092
    %v1285 = vcvt.s32.f32 %v1093
    %v1286 = vcvt.s32.f32 %v1094
    %v1287 = vcvt.s32.f32 %v1095
    %v1288 = vcvt.s32.f32 %v1096
    %v1289 = vcvt.s32.f32 %v1097
    %v1290 = vcvt.s32.f32 %v1098
    %v1291 = vcvt.s32.f32 %v1099
    %v1292 = vcvt.s32.f32 %v1100
    %v1293 = vcvt.s32.f32 %v1101
    %v1294 = vcvt.s32.f32 %v1102
    %v1295 = vcvt.s32.f32 %v1103
    %v1296 = vcvt.s32.f32 %v1104
    %v1297 = vcvt.s32.f32 %v1105
    %v1298 = vcvt.s32.f32 %v1106
    %v1299 = vcvt.s32.f32 %v1107
    %v1300 = vcvt.s32.f32 %v1108
    %v1301 = vcvt.s32.f32 %v1109
    %v1302 = vcvt.s32.f32 %v1110
    %v1303 = vcvt.s32.f32 %v1111
    %v1304 = vcvt.s32.f32 %v1112
    %v1305 = vcvt.s32.f32 %v1113
    %v1306 = vcvt.s32.f32 %v1114
    %v1307 = vcvt.s32.f32 %v1115
    %v1308 = vcvt.s32.f32 %v1116
    %v1309 = vcvt.s32.f32 %v1117
    %v1310 = vcvt.s32.f32 %v1118
    %v1311 = vcvt.s32.f32 %v1119
    %v1312 = vcvt.s32.f32 %v1120
    %v1313 = vcvt.s32.f32 %v1121
    %v1314 = vcvt.s32.f32 %v1122
    %v1315 = vcvt.s32.f32 %v1123
    %v1316 = vcvt.s32.f32 %v1124
    %v1317 = vcvt.s32.f32 %v1125
    %v1318 = vcvt.s32.f32 %v1126
    %v1319 = vcvt.s32.f32 %v1127
    %v1320 = vld [vmem:[%s25] sm:$0x7]
    %v1322 = vlaneseq
    %v1323 = vshrl.u32 %v1322, 7
    %v1324 = vsub.s32 0, %v1323
    %v1325 = vrot.slane %v1320, %v1324
    %v1326 = vlaneseq
    %v1327 = vshrl.u32 %v1326, 7
    %v1328 = vsub.s32 1, %v1327
    %v1329 = vrot.slane %v1320, %v1328
    %v1330 = vlaneseq
    %v1331 = vshrl.u32 %v1330, 7
    %v1332 = vsub.s32 2, %v1331
    %v1333 = vrot.slane %v1320, %v1332
    %v1337 = vmul.f32 %v1128, %v1325
    %v1338 = vmul.f32 %v1129, %v1329
    %v1339 = vmul.f32 %v1130, %v1333
    %v1340 = vmul.f32 %v1131, %v1325
    %v1341 = vmul.f32 %v1132, %v1329
    %v1342 = vmul.f32 %v1133, %v1333
    %v1343 = vmul.f32 %v1134, %v1325
    %v1344 = vmul.f32 %v1135, %v1329
    %v1345 = vmul.f32 %v1136, %v1333
    %v1346 = vmul.f32 %v1137, %v1325
    %v1347 = vmul.f32 %v1138, %v1329
    %v1348 = vmul.f32 %v1139, %v1333
    %v1349 = vmul.f32 %v1140, %v1325
    %v1350 = vmul.f32 %v1141, %v1329
    %v1351 = vmul.f32 %v1142, %v1333
    %v1352 = vmul.f32 %v1143, %v1325
    %v1353 = vmul.f32 %v1144, %v1329
    %v1354 = vmul.f32 %v1145, %v1333
    %v1355 = vmul.f32 %v1146, %v1325
    %v1356 = vmul.f32 %v1147, %v1329
    %v1357 = vmul.f32 %v1148, %v1333
    %v1358 = vmul.f32 %v1149, %v1325
    %v1359 = vmul.f32 %v1150, %v1329
    %v1360 = vmul.f32 %v1151, %v1333
    %v1361 = vmul.f32 %v1152, %v1325
    %v1362 = vmul.f32 %v1153, %v1329
    %v1363 = vmul.f32 %v1154, %v1333
    %v1364 = vmul.f32 %v1155, %v1325
    %v1365 = vmul.f32 %v1156, %v1329
    %v1366 = vmul.f32 %v1157, %v1333
    %v1367 = vmul.f32 %v1158, %v1325
    %v1368 = vmul.f32 %v1159, %v1329
    %v1369 = vmul.f32 %v1160, %v1333
    %v1370 = vmul.f32 %v1161, %v1325
    %v1371 = vmul.f32 %v1162, %v1329
    %v1372 = vmul.f32 %v1163, %v1333
    %v1373 = vmul.f32 %v1164, %v1325
    %v1374 = vmul.f32 %v1165, %v1329
    %v1375 = vmul.f32 %v1166, %v1333
    %v1376 = vmul.f32 %v1167, %v1325
    %v1377 = vmul.f32 %v1168, %v1329
    %v1378 = vmul.f32 %v1169, %v1333
    %v1379 = vmul.f32 %v1170, %v1325
    %v1380 = vmul.f32 %v1171, %v1329
    %v1381 = vmul.f32 %v1172, %v1333
    %v1382 = vmul.f32 %v1173, %v1325
    %v1383 = vmul.f32 %v1174, %v1329
    %v1384 = vmul.f32 %v1175, %v1333
    %v1385 = vmul.f32 %v1176, %v1325
    %v1386 = vmul.f32 %v1177, %v1329
    %v1387 = vmul.f32 %v1178, %v1333
    %v1388 = vmul.f32 %v1179, %v1325
    %v1389 = vmul.f32 %v1180, %v1329
    %v1390 = vmul.f32 %v1181, %v1333
    %v1391 = vmul.f32 %v1182, %v1325
    %v1392 = vmul.f32 %v1183, %v1329
    %v1393 = vmul.f32 %v1184, %v1333
    %v1394 = vmul.f32 %v1185, %v1325
    %v1395 = vmul.f32 %v1186, %v1329
    %v1396 = vmul.f32 %v1187, %v1333
    %v1397 = vmul.f32 %v1188, %v1325
    %v1398 = vmul.f32 %v1189, %v1329
    %v1399 = vmul.f32 %v1190, %v1333
    %v1400 = vmul.f32 %v1191, %v1325
    %v1401 = vmul.f32 %v1192, %v1329
    %v1402 = vmul.f32 %v1193, %v1333
    %v1403 = vmul.f32 %v1194, %v1325
    %v1404 = vmul.f32 %v1195, %v1329
    %v1405 = vmul.f32 %v1196, %v1333
    %v1406 = vmul.f32 %v1197, %v1325
    %v1407 = vmul.f32 %v1198, %v1329
    %v1408 = vmul.f32 %v1199, %v1333
    %v1409 = vmul.f32 %v1200, %v1325
    %v1410 = vmul.f32 %v1201, %v1329
    %v1411 = vmul.f32 %v1202, %v1333
    %v1412 = vmul.f32 %v1203, %v1325
    %v1413 = vmul.f32 %v1204, %v1329
    %v1414 = vmul.f32 %v1205, %v1333
    %v1415 = vmul.f32 %v1206, %v1325
    %v1416 = vmul.f32 %v1207, %v1329
    %v1417 = vmul.f32 %v1208, %v1333
    %v1418 = vmul.f32 %v1209, %v1325
    %v1419 = vmul.f32 %v1210, %v1329
    %v1420 = vmul.f32 %v1211, %v1333
    %v1421 = vmul.f32 %v1212, %v1325
    %v1422 = vmul.f32 %v1213, %v1329
    %v1423 = vmul.f32 %v1214, %v1333
    %v1424 = vmul.f32 %v1215, %v1325
    %v1425 = vmul.f32 %v1216, %v1329
    %v1426 = vmul.f32 %v1217, %v1333
    %v1427 = vmul.f32 %v1218, %v1325
    %v1428 = vmul.f32 %v1219, %v1329
    %v1429 = vmul.f32 %v1220, %v1333
    %v1430 = vmul.f32 %v1221, %v1325
    %v1431 = vmul.f32 %v1222, %v1329
    %v1432 = vmul.f32 %v1223, %v1333
    %v1433 = vmul.f32 %v1224, %v1325
    %v1434 = vmul.f32 %v1225, %v1329
    %v1435 = vmul.f32 %v1226, %v1333
    %v1436 = vmul.f32 %v1227, %v1325
    %v1437 = vmul.f32 %v1228, %v1329
    %v1438 = vmul.f32 %v1229, %v1333
    %v1439 = vmul.f32 %v1230, %v1325
    %v1440 = vmul.f32 %v1231, %v1329
    %v1441 = vmul.f32 %v1232, %v1333
    %v1442 = vmul.f32 %v1233, %v1325
    %v1443 = vmul.f32 %v1234, %v1329
    %v1444 = vmul.f32 %v1235, %v1333
    %v1445 = vmul.f32 %v1236, %v1325
    %v1446 = vmul.f32 %v1237, %v1329
    %v1447 = vmul.f32 %v1238, %v1333
    %v1448 = vmul.f32 %v1239, %v1325
    %v1449 = vmul.f32 %v1240, %v1329
    %v1450 = vmul.f32 %v1241, %v1333
    %v1451 = vmul.f32 %v1242, %v1325
    %v1452 = vmul.f32 %v1243, %v1329
    %v1453 = vmul.f32 %v1244, %v1333
    %v1454 = vmul.f32 %v1245, %v1325
    %v1455 = vmul.f32 %v1246, %v1329
    %v1456 = vmul.f32 %v1247, %v1333
    %v1457 = vmul.f32 %v1248, %v1325
    %v1458 = vmul.f32 %v1249, %v1329
    %v1459 = vmul.f32 %v1250, %v1333
    %v1460 = vmul.f32 %v1251, %v1325
    %v1461 = vmul.f32 %v1252, %v1329
    %v1462 = vmul.f32 %v1253, %v1333
    %v1463 = vmul.f32 %v1254, %v1325
    %v1464 = vmul.f32 %v1255, %v1329
    %v1465 = vmul.f32 %v1256, %v1333
    %v1466 = vmul.f32 %v1257, %v1325
    %v1467 = vmul.f32 %v1258, %v1329
    %v1468 = vmul.f32 %v1259, %v1333
    %v1469 = vmul.f32 %v1260, %v1325
    %v1470 = vmul.f32 %v1261, %v1329
    %v1471 = vmul.f32 %v1262, %v1333
    %v1472 = vmul.f32 %v1263, %v1325
    %v1473 = vmul.f32 %v1264, %v1329
    %v1474 = vmul.f32 %v1265, %v1333
    %v1475 = vmul.f32 %v1266, %v1325
    %v1476 = vmul.f32 %v1267, %v1329
    %v1477 = vmul.f32 %v1268, %v1333
    %v1478 = vmul.f32 %v1269, %v1325
    %v1479 = vmul.f32 %v1270, %v1329
    %v1480 = vmul.f32 %v1271, %v1333
    %v1481 = vmul.f32 %v1272, %v1325
    %v1482 = vmul.f32 %v1273, %v1329
    %v1483 = vmul.f32 %v1274, %v1333
    %v1484 = vmul.f32 %v1275, %v1325
    %v1485 = vmul.f32 %v1276, %v1329
    %v1486 = vmul.f32 %v1277, %v1333
    %v1487 = vmul.f32 %v1278, %v1325
    %v1488 = vmul.f32 %v1279, %v1329
    %v1489 = vmul.f32 %v1280, %v1333
    %v1490 = vmul.f32 %v1281, %v1325
    %v1491 = vmul.f32 %v1282, %v1329
    %v1492 = vmul.f32 %v1283, %v1333
    %v1493 = vmul.f32 %v1284, %v1325
    %v1494 = vmul.f32 %v1285, %v1329
    %v1495 = vmul.f32 %v1286, %v1333
    %v1496 = vmul.f32 %v1287, %v1325
    %v1497 = vmul.f32 %v1288, %v1329
    %v1498 = vmul.f32 %v1289, %v1333
    %v1499 = vmul.f32 %v1290, %v1325
    %v1500 = vmul.f32 %v1291, %v1329
    %v1501 = vmul.f32 %v1292, %v1333
    %v1502 = vmul.f32 %v1293, %v1325
    %v1503 = vmul.f32 %v1294, %v1329
    %v1504 = vmul.f32 %v1295, %v1333
    %v1505 = vmul.f32 %v1296, %v1325
    %v1506 = vmul.f32 %v1297, %v1329
    %v1507 = vmul.f32 %v1298, %v1333
    %v1508 = vmul.f32 %v1299, %v1325
    %v1509 = vmul.f32 %v1300, %v1329
    %v1510 = vmul.f32 %v1301, %v1333
    %v1511 = vmul.f32 %v1302, %v1325
    %v1512 = vmul.f32 %v1303, %v1329
    %v1513 = vmul.f32 %v1304, %v1333
    %v1514 = vmul.f32 %v1305, %v1325
    %v1515 = vmul.f32 %v1306, %v1329
    %v1516 = vmul.f32 %v1307, %v1333
    %v1517 = vmul.f32 %v1308, %v1325
    %v1518 = vmul.f32 %v1309, %v1329
    %v1519 = vmul.f32 %v1310, %v1333
    %v1520 = vmul.f32 %v1311, %v1325
    %v1521 = vmul.f32 %v1312, %v1329
    %v1522 = vmul.f32 %v1313, %v1333
    %v1523 = vmul.f32 %v1314, %v1325
    %v1524 = vmul.f32 %v1315, %v1329
    %v1525 = vmul.f32 %v1316, %v1333
    %v1526 = vmul.f32 %v1317, %v1325
    %v1527 = vmul.f32 %v1318, %v1329
    %v1528 = vmul.f32 %v1319, %v1333
    %v1529 = vpack.c.bf16 %v1340, %v1337
    %v1530 = vpack.c.bf16 %v1341, %v1338
    %v1531 = vpack.c.bf16 %v1342, %v1339
    %v1532 = vpack.c.bf16 %v1346, %v1343
    %v1533 = vpack.c.bf16 %v1347, %v1344
    %v1534 = vpack.c.bf16 %v1348, %v1345
    %v1535 = vpack.c.bf16 %v1352, %v1349
    %v1536 = vpack.c.bf16 %v1353, %v1350
    %v1537 = vpack.c.bf16 %v1354, %v1351
    %v1538 = vpack.c.bf16 %v1358, %v1355
    %v1539 = vpack.c.bf16 %v1359, %v1356
    %v1540 = vpack.c.bf16 %v1360, %v1357
    %v1541 = vpack.c.bf16 %v1364, %v1361
    %v1542 = vpack.c.bf16 %v1365, %v1362
    %v1543 = vpack.c.bf16 %v1366, %v1363
    %v1544 = vpack.c.bf16 %v1370, %v1367
    %v1545 = vpack.c.bf16 %v1371, %v1368
    %v1546 = vpack.c.bf16 %v1372, %v1369
    %v1547 = vpack.c.bf16 %v1376, %v1373
    %v1548 = vpack.c.bf16 %v1377, %v1374
    %v1549 = vpack.c.bf16 %v1378, %v1375
    %v1550 = vpack.c.bf16 %v1382, %v1379
    %v1551 = vpack.c.bf16 %v1383, %v1380
    %v1552 = vpack.c.bf16 %v1384, %v1381
    %v1553 = vpack.c.bf16 %v1388, %v1385
    %v1554 = vpack.c.bf16 %v1389, %v1386
    %v1555 = vpack.c.bf16 %v1390, %v1387
    %v1556 = vpack.c.bf16 %v1394, %v1391
    %v1557 = vpack.c.bf16 %v1395, %v1392
    %v1558 = vpack.c.bf16 %v1396, %v1393
    %v1559 = vpack.c.bf16 %v1400, %v1397
    %v1560 = vpack.c.bf16 %v1401, %v1398
    %v1561 = vpack.c.bf16 %v1402, %v1399
    %v1562 = vpack.c.bf16 %v1406, %v1403
    %v1563 = vpack.c.bf16 %v1407, %v1404
    %v1564 = vpack.c.bf16 %v1408, %v1405
    %v1565 = vpack.c.bf16 %v1412, %v1409
    %v1566 = vpack.c.bf16 %v1413, %v1410
    %v1567 = vpack.c.bf16 %v1414, %v1411
    %v1568 = vpack.c.bf16 %v1418, %v1415
    %v1569 = vpack.c.bf16 %v1419, %v1416
    %v1570 = vpack.c.bf16 %v1420, %v1417
    %v1571 = vpack.c.bf16 %v1424, %v1421
    %v1572 = vpack.c.bf16 %v1425, %v1422
    %v1573 = vpack.c.bf16 %v1426, %v1423
    %v1574 = vpack.c.bf16 %v1430, %v1427
    %v1575 = vpack.c.bf16 %v1431, %v1428
    %v1576 = vpack.c.bf16 %v1432, %v1429
    %v1577 = vpack.c.bf16 %v1436, %v1433
    %v1578 = vpack.c.bf16 %v1437, %v1434
    %v1579 = vpack.c.bf16 %v1438, %v1435
    %v1580 = vpack.c.bf16 %v1442, %v1439
    %v1581 = vpack.c.bf16 %v1443, %v1440
    %v1582 = vpack.c.bf16 %v1444, %v1441
    %v1583 = vpack.c.bf16 %v1448, %v1445
    %v1584 = vpack.c.bf16 %v1449, %v1446
    %v1585 = vpack.c.bf16 %v1450, %v1447
    %v1586 = vpack.c.bf16 %v1454, %v1451
    %v1587 = vpack.c.bf16 %v1455, %v1452
    %v1588 = vpack.c.bf16 %v1456, %v1453
    %v1589 = vpack.c.bf16 %v1460, %v1457
    %v1590 = vpack.c.bf16 %v1461, %v1458
    %v1591 = vpack.c.bf16 %v1462, %v1459
    %v1592 = vpack.c.bf16 %v1466, %v1463
    %v1593 = vpack.c.bf16 %v1467, %v1464
    %v1594 = vpack.c.bf16 %v1468, %v1465
    %v1595 = vpack.c.bf16 %v1472, %v1469
    %v1596 = vpack.c.bf16 %v1473, %v1470
    %v1597 = vpack.c.bf16 %v1474, %v1471
    %v1598 = vpack.c.bf16 %v1478, %v1475
    %v1599 = vpack.c.bf16 %v1479, %v1476
    %v1600 = vpack.c.bf16 %v1480, %v1477
    %v1601 = vpack.c.bf16 %v1484, %v1481
    %v1602 = vpack.c.bf16 %v1485, %v1482
    %v1603 = vpack.c.bf16 %v1486, %v1483
    %v1604 = vpack.c.bf16 %v1490, %v1487
    %v1605 = vpack.c.bf16 %v1491, %v1488
    %v1606 = vpack.c.bf16 %v1492, %v1489
    %v1607 = vpack.c.bf16 %v1496, %v1493
    %v1608 = vpack.c.bf16 %v1497, %v1494
    %v1609 = vpack.c.bf16 %v1498, %v1495
    %v1610 = vpack.c.bf16 %v1502, %v1499
    %v1611 = vpack.c.bf16 %v1503, %v1500
    %v1612 = vpack.c.bf16 %v1504, %v1501
    %v1613 = vpack.c.bf16 %v1508, %v1505
    %v1614 = vpack.c.bf16 %v1509, %v1506
    %v1615 = vpack.c.bf16 %v1510, %v1507
    %v1616 = vpack.c.bf16 %v1514, %v1511
    %v1617 = vpack.c.bf16 %v1515, %v1512
    %v1618 = vpack.c.bf16 %v1516, %v1513
    %v1619 = vpack.c.bf16 %v1520, %v1517
    %v1620 = vpack.c.bf16 %v1521, %v1518
    %v1621 = vpack.c.bf16 %v1522, %v1519
    %v1622 = vpack.c.bf16 %v1526, %v1523
    %v1623 = vpack.c.bf16 %v1527, %v1524
    %v1624 = vpack.c.bf16 %v1528, %v1525
    %v1625 = vld [vmem:[%s45] sm:$0x7]
    %v1627 = vlaneseq
    %v1628 = vshrl.u32 %v1627, 7
    %v1629 = vsub.s32 0, %v1628
    %v1630 = vrot.slane %v1625, %v1629
    %v1631 = vlaneseq
    %v1632 = vshrl.u32 %v1631, 7
    %v1633 = vsub.s32 1, %v1632
    %v1634 = vrot.slane %v1625, %v1633
    %v1635 = vlaneseq
    %v1636 = vshrl.u32 %v1635, 7
    %v1637 = vsub.s32 2, %v1636
    %v1638 = vrot.slane %v1625, %v1637
    %1642 = vmatprep.subr.bf16.mxu0 %v1530
    %1643 = vmatpush1.bf16.msra.mxu0 %v1529
    %1644 = vmatprep.subr.bf16.mxu0 %v1533
    %1645 = vmatpush1.bf16.msra.mxu0 %v1532
    %1646 = vmatprep.subr.bf16.mxu0 %v1536
    %1647 = vmatpush1.bf16.msra.mxu0 %v1535
    %1648 = vmatprep.subr.bf16.mxu0 %v1539
    %1649 = vmatpush1.bf16.msra.mxu0 %v1538
    %1650 = vmatprep.subr.bf16.mxu0 %v1542
    %1651 = vmatpush1.bf16.msra.mxu0 %v1541
    %1652 = vmatprep.subr.bf16.mxu0 %v1545
    %1653 = vmatpush1.bf16.msra.mxu0 %v1544
    %1654 = vmatprep.subr.bf16.mxu0 %v1548
    %1655 = vmatpush1.bf16.msra.mxu0 %v1547
    %1656 = vmatprep.subr.bf16.mxu0 %v1551
    %1657 = vmatpush1.bf16.msra.mxu0 %v1550
    %1658 = vmatprep.subr.bf16.mxu0 %v1554
    %1659 = vmatpush1.bf16.msra.mxu0 %v1553
    %1660 = vmatprep.subr.bf16.mxu0 %v1557
    %1661 = vmatpush1.bf16.msra.mxu0 %v1556
    %1662 = vmatprep.subr.bf16.mxu0 %v1560
    %1663 = vmatpush1.bf16.msra.mxu0 %v1559
    %1664 = vmatprep.subr.bf16.mxu0 %v1563
    %1665 = vmatpush1.bf16.msra.mxu0 %v1562
    %1666 = vmatprep.subr.bf16.mxu0 %v1566
    %1667 = vmatpush1.bf16.msra.mxu0 %v1565
    %1668 = vmatprep.subr.bf16.mxu0 %v1569
    %1669 = vmatpush1.bf16.msra.mxu0 %v1568
    %1670 = vmatprep.subr.bf16.mxu0 %v1572
    %1671 = vmatpush1.bf16.msra.mxu0 %v1571
    %1672 = vmatprep.subr.bf16.mxu0 %v1575
    %1673 = vmatpush1.bf16.msra.mxu0 %v1574
    %1674 = vmatprep.mubr.bf16.mxu0 %v885
    %1675 = vmatmul.mubr.bf16.gmra.mrb[0].mxu0 %v884
    %v1676 = vpop.f32.mrb[0].mxu0
    %v1677 = vadd.f32 %v1630, %v1676
    %v1678 = vpop.f32.mrb[0].mxu0
    %v1679 = vadd.f32 %v1634, %v1678
    %v1680 = vpop.f32.mrb[0].mxu0
    %v1681 = vpop.f32.mrb[0].mxu0
    %1682 = vdwg.mxu0
    %1683 = vmatprep.subr.bf16.mxu0 %v1578
    %1684 = vmatpush1.bf16.msra.mxu0 %v1577
    %1685 = vmatprep.subr.bf16.mxu0 %v1581
    %1686 = vmatpush1.bf16.msra.mxu0 %v1580
    %1687 = vmatprep.subr.bf16.mxu0 %v1584
    %1688 = vmatpush1.bf16.msra.mxu0 %v1583
    %1689 = vmatprep.subr.bf16.mxu0 %v1587
    %1690 = vmatpush1.bf16.msra.mxu0 %v1586
    %1691 = vmatprep.subr.bf16.mxu0 %v1590
    %1692 = vmatpush1.bf16.msra.mxu0 %v1589
    %1693 = vmatprep.subr.bf16.mxu0 %v1593
    %1694 = vmatpush1.bf16.msra.mxu0 %v1592
    %1695 = vmatprep.subr.bf16.mxu0 %v1596
    %1696 = vmatpush1.bf16.msra.mxu0 %v1595
    %1697 = vmatprep.subr.bf16.mxu0 %v1599
    %1698 = vmatpush1.bf16.msra.mxu0 %v1598
    %1699 = vmatprep.subr.bf16.mxu0 %v1602
    %1700 = vmatpush1.bf16.msra.mxu0 %v1601
    %1701 = vmatprep.subr.bf16.mxu0 %v1605
    %1702 = vmatpush1.bf16.msra.mxu0 %v1604
    %1703 = vmatprep.subr.bf16.mxu0 %v1608
    %1704 = vmatpush1.bf16.msra.mxu0 %v1607
    %1705 = vmatprep.subr.bf16.mxu0 %v1611
    %1706 = vmatpush1.bf16.msra.mxu0 %v1610
    %1707 = vmatprep.subr.bf16.mxu0 %v1614
    %1708 = vmatpush1.bf16.msra.mxu0 %v1613
    %1709 = vmatprep.subr.bf16.mxu0 %v1617
    %1710 = vmatpush1.bf16.msra.mxu0 %v1616
    %1711 = vmatprep.subr.bf16.mxu0 %v1620
    %1712 = vmatpush1.bf16.msra.mxu0 %v1619
    %1713 = vmatprep.subr.bf16.mxu0 %v1623
    %1714 = vmatpush1.bf16.msra.mxu0 %v1622
    %1715 = vmatprep.mubr.bf16.mxu0 %v887
    %1716 = vmatmul.mubr.bf16.gmra.mrb[0].mxu0 %v886
    %v1717 = vpop.f32.mrb[0].mxu0
    %v1718 = vadd.f32 %v1677, %v1717
    %v1719 = vpop.f32.mrb[0].mxu0
    %v1720 = vadd.f32 %v1679, %v1719
    %v1721 = vpop.f32.mrb[0].mxu0
    %v1722 = vpop.f32.mrb[0].mxu0
    %1723 = vdwg.mxu0
    %1724 = vmatprep.subr.bf16.mxu0 0
    %1725 = vmatpush1.bf16.msra.mxu0 %v1531
    %1726 = vmatprep.subr.bf16.mxu0 0
    %1727 = vmatpush1.bf16.msra.mxu0 %v1534
    %1728 = vmatprep.subr.bf16.mxu0 0
    %1729 = vmatpush1.bf16.msra.mxu0 %v1537
    %1730 = vmatprep.subr.bf16.mxu0 0
    %1731 = vmatpush1.bf16.msra.mxu0 %v1540
    %1732 = vmatprep.subr.bf16.mxu0 0
    %1733 = vmatpush1.bf16.msra.mxu0 %v1543
    %1734 = vmatprep.subr.bf16.mxu0 0
    %1735 = vmatpush1.bf16.msra.mxu0 %v1546
    %1736 = vmatprep.subr.bf16.mxu0 0
    %1737 = vmatpush1.bf16.msra.mxu0 %v1549
    %1738 = vmatprep.subr.bf16.mxu0 0
    %1739 = vmatpush1.bf16.msra.mxu0 %v1552
    %1740 = vmatprep.subr.bf16.mxu0 0
    %1741 = vmatpush1.bf16.msra.mxu0 %v1555
    %1742 = vmatprep.subr.bf16.mxu0 0
    %1743 = vmatpush1.bf16.msra.mxu0 %v1558
    %1744 = vmatprep.subr.bf16.mxu0 0
    %1745 = vmatpush1.bf16.msra.mxu0 %v1561
    %1746 = vmatprep.subr.bf16.mxu0 0
    %1747 = vmatpush1.bf16.msra.mxu0 %v1564
    %1748 = vmatprep.subr.bf16.mxu0 0
    %1749 = vmatpush1.bf16.msra.mxu0 %v1567
    %1750 = vmatprep.subr.bf16.mxu0 0
    %1751 = vmatpush1.bf16.msra.mxu0 %v1570
    %1752 = vmatprep.subr.bf16.mxu0 0
    %1753 = vmatpush1.bf16.msra.mxu0 %v1573
    %1754 = vmatprep.subr.bf16.mxu0 0
    %1755 = vmatpush1.bf16.msra.mxu0 %v1576
    %1756 = vmatprep.mubr.bf16.mxu0 %v885
    %1757 = vmatmul.mubr.bf16.gmra.mrb[0].mxu0 %v884
    %v1758 = vpop.f32.mrb[0].mxu0
    %v1759 = vadd.f32 %v1638, %v1758
    %v1760 = vpop.f32.mrb[0].mxu0
    %v1761 = vpop.f32.mrb[0].mxu0
    %v1762 = vpop.f32.mrb[0].mxu0
    %1763 = vdwg.mxu0
    %1764 = vmatprep.subr.bf16.mxu0 0
    %1765 = vmatpush1.bf16.msra.mxu0 %v1579
    %1766 = vmatprep.subr.bf16.mxu0 0
    %1767 = vmatpush1.bf16.msra.mxu0 %v1582
    %1768 = vmatprep.subr.bf16.mxu0 0
    %1769 = vmatpush1.bf16.msra.mxu0 %v1585
    %1770 = vmatprep.subr.bf16.mxu0 0
    %1771 = vmatpush1.bf16.msra.mxu0 %v1588
    %1772 = vmatprep.subr.bf16.mxu0 0
    %1773 = vmatpush1.bf16.msra.mxu0 %v1591
    %1774 = vmatprep.subr.bf16.mxu0 0
    %1775 = vmatpush1.bf16.msra.mxu0 %v1594
    %1776 = vmatprep.subr.bf16.mxu0 0
    %1777 = vmatpush1.bf16.msra.mxu0 %v1597
    %1778 = vmatprep.subr.bf16.mxu0 0
    %1779 = vmatpush1.bf16.msra.mxu0 %v1600
    %1780 = vmatprep.subr.bf16.mxu0 0
    %1781 = vmatpush1.bf16.msra.mxu0 %v1603
    %1782 = vmatprep.subr.bf16.mxu0 0
    %1783 = vmatpush1.bf16.msra.mxu0 %v1606
    %1784 = vmatprep.subr.bf16.mxu0 0
    %1785 = vmatpush1.bf16.msra.mxu0 %v1609
    %1786 = vmatprep.subr.bf16.mxu0 0
    %1787 = vmatpush1.bf16.msra.mxu0 %v1612
    %1788 = vmatprep.subr.bf16.mxu0 0
    %1789 = vmatpush1.bf16.msra.mxu0 %v1615
    %1790 = vmatprep.subr.bf16.mxu0 0
    %1791 = vmatpush1.bf16.msra.mxu0 %v1618
    %1792 = vmatprep.subr.bf16.mxu0 0
    %1793 = vmatpush1.bf16.msra.mxu0 %v1621
    %1794 = vmatprep.subr.bf16.mxu0 0
    %1795 = vmatpush1.bf16.msra.mxu0 %v1624
    %1796 = vmatprep.mubr.bf16.mxu0 %v887
    %1797 = vmatmul.mubr.bf16.gmra.mrb[0].mxu0 %v886
    %v1798 = vpop.f32.mrb[0].mxu0
    %v1799 = vadd.f32 %v1759, %v1798
    %v1800 = vpop.f32.mrb[0].mxu0
    %v1801 = vpop.f32.mrb[0].mxu0
    %v1802 = vpop.f32.mrb[0].mxu0
    %1803 = vdwg.mxu0
    %v1804 = vmax.f32 %v1718, 0.0
    %v1805 = vmax.f32 %v1720, 0.0
    %v1806 = vmax.f32 %v1799, 0.0
    %v1807 = vpack.c.bf16 %v1804, %v1804
    %v1808 = vpack.c.bf16 %v1805, %v1805
    %v1809 = vpack.c.bf16 %v1806, %v1806
    %v1810 = vld [vmem:[#allocation6] sm:$0xff]
    %v1811 = vld [vmem:[#allocation6 + $0x8] sm:$0xff]
    %v1812 = vld [vmem:[#allocation6 + $0x10] sm:$0xff]
    %v1813 = vld [vmem:[#allocation6 + $0x18] sm:$0xff]
    %v1814 = vld [vmem:[#allocation6 + $0x20] sm:$0xff]
    %v1815 = vld [vmem:[#allocation6 + $0x28] sm:$0xff]
    %v1816 = vld [vmem:[#allocation6 + $0x30] sm:$0xff]
    %v1817 = vld [vmem:[#allocation6 + $0x38] sm:$0xff]
    %v1818 = vld [vmem:[#allocation6 + $0x40] sm:$0xff]
    %v1819 = vld [vmem:[#allocation6 + $0x48] sm:$0xff]
    %v1820 = vld [vmem:[#allocation6 + $0x50] sm:$0xff]
    %v1821 = vld [vmem:[#allocation6 + $0x58] sm:$0xff]
    %v1822 = vld [vmem:[#allocation6 + $0x60] sm:$0xff]
    %v1823 = vld [vmem:[#allocation6 + $0x68] sm:$0xff]
    %v1824 = vld [vmem:[#allocation6 + $0x70] sm:$0xff]
    %v1825 = vld [vmem:[#allocation6 + $0x78] sm:$0xff]
    %v1826 = vld [vmem:[#allocation6 + $0x80] sm:$0xff]
    %v1827 = vld [vmem:[#allocation6 + $0x88] sm:$0xff]
    %v1828 = vld [vmem:[#allocation6 + $0x90] sm:$0xff]
    %v1829 = vld [vmem:[#allocation6 + $0x98] sm:$0xff]
    %v1830 = vld [vmem:[#allocation6 + $0xa0] sm:$0xff]
    %v1831 = vld [vmem:[#allocation6 + $0xa8] sm:$0xff]
    %v1832 = vld [vmem:[#allocation6 + $0xb0] sm:$0xff]
    %v1833 = vld [vmem:[#allocation6 + $0xb8] sm:$0xff]
    %v1834 = vunpack.c.0.s8 %v1810
    %v1835 = vunpack.c.0.s8 %v1811
    %v1836 = vunpack.c.1.s8 %v1810
    %v1837 = vunpack.c.1.s8 %v1811
    %v1838 = vunpack.c.2.s8 %v1810
    %v1839 = vunpack.c.2.s8 %v1811
    %v1840 = vunpack.c.3.s8 %v1810
    %v1841 = vunpack.c.3.s8 %v1811
    %v1842 = vunpack.c.0.s8 %v1812
    %v1843 = vunpack.c.0.s8 %v1813
    %v1844 = vunpack.c.1.s8 %v1812
    %v1845 = vunpack.c.1.s8 %v1813
    %v1846 = vunpack.c.2.s8 %v1812
    %v1847 = vunpack.c.2.s8 %v1813
    %v1848 = vunpack.c.3.s8 %v1812
    %v1849 = vunpack.c.3.s8 %v1813
    %v1850 = vunpack.c.0.s8 %v1814
    %v1851 = vunpack.c.0.s8 %v1815
    %v1852 = vunpack.c.1.s8 %v1814
    %v1853 = vunpack.c.1.s8 %v1815
    %v1854 = vunpack.c.2.s8 %v1814
    %v1855 = vunpack.c.2.s8 %v1815
    %v1856 = vunpack.c.3.s8 %v1814
    %v1857 = vunpack.c.3.s8 %v1815
    %v1858 = vunpack.c.0.s8 %v1816
    %v1859 = vunpack.c.0.s8 %v1817
    %v1860 = vunpack.c.1.s8 %v1816
    %v1861 = vunpack.c.1.s8 %v1817
    %v1862 = vunpack.c.2.s8 %v1816
    %v1863 = vunpack.c.2.s8 %v1817
    %v1864 = vunpack.c.3.s8 %v1816
    %v1865 = vunpack.c.3.s8 %v1817
    %v1866 = vunpack.c.0.s8 %v1818
    %v1867 = vunpack.c.0.s8 %v1819
    %v1868 = vunpack.c.1.s8 %v1818
    %v1869 = vunpack.c.1.s8 %v1819
    %v1870 = vunpack.c.2.s8 %v1818
    %v1871 = vunpack.c.2.s8 %v1819
    %v1872 = vunpack.c.3.s8 %v1818
    %v1873 = vunpack.c.3.s8 %v1819
    %v1874 = vunpack.c.0.s8 %v1820
    %v1875 = vunpack.c.0.s8 %v1821
    %v1876 = vunpack.c.1.s8 %v1820
    %v1877 = vunpack.c.1.s8 %v1821
    %v1878 = vunpack.c.2.s8 %v1820
    %v1879 = vunpack.c.2.s8 %v1821
    %v1880 = vunpack.c.3.s8 %v1820
    %v1881 = vunpack.c.3.s8 %v1821
    %v1882 = vunpack.c.0.s8 %v1822
    %v1883 = vunpack.c.0.s8 %v1823
    %v1884 = vunpack.c.1.s8 %v1822
    %v1885 = vunpack.c.1.s8 %v1823
    %v1886 = vunpack.c.2.s8 %v1822
    %v1887 = vunpack.c.2.s8 %v1823
    %v1888 = vunpack.c.3.s8 %v1822
    %v1889 = vunpack.c.3.s8 %v1823
    %v1890 = vunpack.c.0.s8 %v1824
    %v1891 = vunpack.c.0.s8 %v1825
    %v1892 = vunpack.c.1.s8 %v1824
    %v1893 = vunpack.c.1.s8 %v1825
    %v1894 = vunpack.c.2.s8 %v1824
    %v1895 = vunpack.c.2.s8 %v1825
    %v1896 = vunpack.c.3.s8 %v1824
    %v1897 = vunpack.c.3.s8 %v1825
    %v1898 = vunpack.c.0.s8 %v1826
    %v1899 = vunpack.c.0.s8 %v1827
    %v1900 = vunpack.c.1.s8 %v1826
    %v1901 = vunpack.c.1.s8 %v1827
    %v1902 = vunpack.c.2.s8 %v1826
    %v1903 = vunpack.c.2.s8 %v1827
    %v1904 = vunpack.c.3.s8 %v1826
    %v1905 = vunpack.c.3.s8 %v1827
    %v1906 = vunpack.c.0.s8 %v1828
    %v1907 = vunpack.c.0.s8 %v1829
    %v1908 = vunpack.c.1.s8 %v1828
    %v1909 = vunpack.c.1.s8 %v1829
    %v1910 = vunpack.c.2.s8 %v1828
    %v1911 = vunpack.c.2.s8 %v1829
    %v1912 = vunpack.c.3.s8 %v1828
    %v1913 = vunpack.c.3.s8 %v1829
    %v1914 = vunpack.c.0.s8 %v1830
    %v1915 = vunpack.c.0.s8 %v1831
    %v1916 = vunpack.c.1.s8 %v1830
    %v1917 = vunpack.c.1.s8 %v1831
    %v1918 = vunpack.c.2.s8 %v1830
    %v1919 = vunpack.c.2.s8 %v1831
    %v1920 = vunpack.c.3.s8 %v1830
    %v1921 = vunpack.c.3.s8 %v1831
    %v1922 = vunpack.c.0.s8 %v1832
    %v1923 = vunpack.c.0.s8 %v1833
    %v1924 = vunpack.c.1.s8 %v1832
    %v1925 = vunpack.c.1.s8 %v1833
    %v1926 = vunpack.c.2.s8 %v1832
    %v1927 = vunpack.c.2.s8 %v1833
    %v1928 = vunpack.c.3.s8 %v1832
    %v1929 = vunpack.c.3.s8 %v1833
    %v1930 = vcvt.s32.f32 %v1834
    %v1931 = vcvt.s32.f32 %v1835
    %v1932 = vcvt.s32.f32 %v1836
    %v1933 = vcvt.s32.f32 %v1837
    %v1934 = vcvt.s32.f32 %v1838
    %v1935 = vcvt.s32.f32 %v1839
    %v1936 = vcvt.s32.f32 %v1840
    %v1937 = vcvt.s32.f32 %v1841
    %v1938 = vcvt.s32.f32 %v1842
    %v1939 = vcvt.s32.f32 %v1843
    %v1940 = vcvt.s32.f32 %v1844
    %v1941 = vcvt.s32.f32 %v1845
    %v1942 = vcvt.s32.f32 %v1846
    %v1943 = vcvt.s32.f32 %v1847
    %v1944 = vcvt.s32.f32 %v1848
    %v1945 = vcvt.s32.f32 %v1849
    %v1946 = vcvt.s32.f32 %v1850
    %v1947 = vcvt.s32.f32 %v1851
    %v1948 = vcvt.s32.f32 %v1852
    %v1949 = vcvt.s32.f32 %v1853
    %v1950 = vcvt.s32.f32 %v1854
    %v1951 = vcvt.s32.f32 %v1855
    %v1952 = vcvt.s32.f32 %v1856
    %v1953 = vcvt.s32.f32 %v1857
    %v1954 = vcvt.s32.f32 %v1858
    %v1955 = vcvt.s32.f32 %v1859
    %v1956 = vcvt.s32.f32 %v1860
    %v1957 = vcvt.s32.f32 %v1861
    %v1958 = vcvt.s32.f32 %v1862
    %v1959 = vcvt.s32.f32 %v1863
    %v1960 = vcvt.s32.f32 %v1864
    %v1961 = vcvt.s32.f32 %v1865
    %v1962 = vcvt.s32.f32 %v1866
    %v1963 = vcvt.s32.f32 %v1867
    %v1964 = vcvt.s32.f32 %v1868
    %v1965 = vcvt.s32.f32 %v1869
    %v1966 = vcvt.s32.f32 %v1870
    %v1967 = vcvt.s32.f32 %v1871
    %v1968 = vcvt.s32.f32 %v1872
    %v1969 = vcvt.s32.f32 %v1873
    %v1970 = vcvt.s32.f32 %v1874
    %v1971 = vcvt.s32.f32 %v1875
    %v1972 = vcvt.s32.f32 %v1876
    %v1973 = vcvt.s32.f32 %v1877
    %v1974 = vcvt.s32.f32 %v1878
    %v1975 = vcvt.s32.f32 %v1879
    %v1976 = vcvt.s32.f32 %v1880
    %v1977 = vcvt.s32.f32 %v1881
    %v1978 = vcvt.s32.f32 %v1882
    %v1979 = vcvt.s32.f32 %v1883
    %v1980 = vcvt.s32.f32 %v1884
    %v1981 = vcvt.s32.f32 %v1885
    %v1982 = vcvt.s32.f32 %v1886
    %v1983 = vcvt.s32.f32 %v1887
    %v1984 = vcvt.s32.f32 %v1888
    %v1985 = vcvt.s32.f32 %v1889
    %v1986 = vcvt.s32.f32 %v1890
    %v1987 = vcvt.s32.f32 %v1891
    %v1988 = vcvt.s32.f32 %v1892
    %v1989 = vcvt.s32.f32 %v1893
    %v1990 = vcvt.s32.f32 %v1894
    %v1991 = vcvt.s32.f32 %v1895
    %v1992 = vcvt.s32.f32 %v1896
    %v1993 = vcvt.s32.f32 %v1897
    %v1994 = vcvt.s32.f32 %v1898
    %v1995 = vcvt.s32.f32 %v1899
    %v1996 = vcvt.s32.f32 %v1900
    %v1997 = vcvt.s32.f32 %v1901
    %v1998 = vcvt.s32.f32 %v1902
    %v1999 = vcvt.s32.f32 %v1903
    %v2000 = vcvt.s32.f32 %v1904
    %v2001 = vcvt.s32.f32 %v1905
    %v2002 = vcvt.s32.f32 %v1906
    %v2003 = vcvt.s32.f32 %v1907
    %v2004 = vcvt.s32.f32 %v1908
    %v2005 = vcvt.s32.f32 %v1909
    %v2006 = vcvt.s32.f32 %v1910
    %v2007 = vcvt.s32.f32 %v1911
    %v2008 = vcvt.s32.f32 %v1912
    %v2009 = vcvt.s32.f32 %v1913
    %v2010 = vcvt.s32.f32 %v1914
    %v2011 = vcvt.s32.f32 %v1915
    %v2012 = vcvt.s32.f32 %v1916
    %v2013 = vcvt.s32.f32 %v1917
    %v2014 = vcvt.s32.f32 %v1918
    %v2015 = vcvt.s32.f32 %v1919
    %v2016 = vcvt.s32.f32 %v1920
    %v2017 = vcvt.s32.f32 %v1921
    %v2018 = vcvt.s32.f32 %v1922
    %v2019 = vcvt.s32.f32 %v1923
    %v2020 = vcvt.s32.f32 %v1924
    %v2021 = vcvt.s32.f32 %v1925
    %v2022 = vcvt.s32.f32 %v1926
    %v2023 = vcvt.s32.f32 %v1927
    %v2024 = vcvt.s32.f32 %v1928
    %v2025 = vcvt.s32.f32 %v1929
    %v2026 = vld [vmem:[%s27] sm:$0x3]
    %v2028 = vlaneseq
    %v2029 = vshrl.u32 %v2028, 7
    %v2030 = vsub.s32 0, %v2029
    %v2031 = vrot.slane %v2026, %v2030
    %v2032 = vlaneseq
    %v2033 = vshrl.u32 %v2032, 7
    %v2034 = vsub.s32 1, %v2033
    %v2035 = vrot.slane %v2026, %v2034
    %v2038 = vmul.f32 %v1930, %v2031
    %v2039 = vmul.f32 %v1931, %v2035
    %v2040 = vmul.f32 %v1932, %v2031
    %v2041 = vmul.f32 %v1933, %v2035
    %v2042 = vmul.f32 %v1934, %v2031
    %v2043 = vmul.f32 %v1935, %v2035
    %v2044 = vmul.f32 %v1936, %v2031
    %v2045 = vmul.f32 %v1937, %v2035
    %v2046 = vmul.f32 %v1938, %v2031
    %v2047 = vmul.f32 %v1939, %v2035
    %v2048 = vmul.f32 %v1940, %v2031
    %v2049 = vmul.f32 %v1941, %v2035
    %v2050 = vmul.f32 %v1942, %v2031
    %v2051 = vmul.f32 %v1943, %v2035
    %v2052 = vmul.f32 %v1944, %v2031
    %v2053 = vmul.f32 %v1945, %v2035
    %v2054 = vmul.f32 %v1946, %v2031
    %v2055 = vmul.f32 %v1947, %v2035
    %v2056 = vmul.f32 %v1948, %v2031
    %v2057 = vmul.f32 %v1949, %v2035
    %v2058 = vmul.f32 %v1950, %v2031
    %v2059 = vmul.f32 %v1951, %v2035
    %v2060 = vmul.f32 %v1952, %v2031
    %v2061 = vmul.f32 %v1953, %v2035
    %v2062 = vmul.f32 %v1954, %v2031
    %v2063 = vmul.f32 %v1955, %v2035
    %v2064 = vmul.f32 %v1956, %v2031
    %v2065 = vmul.f32 %v1957, %v2035
    %v2066 = vmul.f32 %v1958, %v2031
    %v2067 = vmul.f32 %v1959, %v2035
    %v2068 = vmul.f32 %v1960, %v2031
    %v2069 = vmul.f32 %v1961, %v2035
    %v2070 = vmul.f32 %v1962, %v2031
    %v2071 = vmul.f32 %v1963, %v2035
    %v2072 = vmul.f32 %v1964, %v2031
    %v2073 = vmul.f32 %v1965, %v2035
    %v2074 = vmul.f32 %v1966, %v2031
    %v2075 = vmul.f32 %v1967, %v2035
    %v2076 = vmul.f32 %v1968, %v2031
    %v2077 = vmul.f32 %v1969, %v2035
    %v2078 = vmul.f32 %v1970, %v2031
    %v2079 = vmul.f32 %v1971, %v2035
    %v2080 = vmul.f32 %v1972, %v2031
    %v2081 = vmul.f32 %v1973, %v2035
    %v2082 = vmul.f32 %v1974, %v2031
    %v2083 = vmul.f32 %v1975, %v2035
    %v2084 = vmul.f32 %v1976, %v2031
    %v2085 = vmul.f32 %v1977, %v2035
    %v2086 = vmul.f32 %v1978, %v2031
    %v2087 = vmul.f32 %v1979, %v2035
    %v2088 = vmul.f32 %v1980, %v2031
    %v2089 = vmul.f32 %v1981, %v2035
    %v2090 = vmul.f32 %v1982, %v2031
    %v2091 = vmul.f32 %v1983, %v2035
    %v2092 = vmul.f32 %v1984, %v2031
    %v2093 = vmul.f32 %v1985, %v2035
    %v2094 = vmul.f32 %v1986, %v2031
    %v2095 = vmul.f32 %v1987, %v2035
    %v2096 = vmul.f32 %v1988, %v2031
    %v2097 = vmul.f32 %v1989, %v2035
    %v2098 = vmul.f32 %v1990, %v2031
    %v2099 = vmul.f32 %v1991, %v2035
    %v2100 = vmul.f32 %v1992, %v2031
    %v2101 = vmul.f32 %v1993, %v2035
    %v2102 = vmul.f32 %v1994, %v2031
    %v2103 = vmul.f32 %v1995, %v2035
    %v2104 = vmul.f32 %v1996, %v2031
    %v2105 = vmul.f32 %v1997, %v2035
    %v2106 = vmul.f32 %v1998, %v2031
    %v2107 = vmul.f32 %v1999, %v2035
    %v2108 = vmul.f32 %v2000, %v2031
    %v2109 = vmul.f32 %v2001, %v2035
    %v2110 = vmul.f32 %v2002, %v2031
    %v2111 = vmul.f32 %v2003, %v2035
    %v2112 = vmul.f32 %v2004, %v2031
    %v2113 = vmul.f32 %v2005, %v2035
    %v2114 = vmul.f32 %v2006, %v2031
    %v2115 = vmul.f32 %v2007, %v2035
    %v2116 = vmul.f32 %v2008, %v2031
    %v2117 = vmul.f32 %v2009, %v2035
    %v2118 = vmul.f32 %v2010, %v2031
    %v2119 = vmul.f32 %v2011, %v2035
    %v2120 = vmul.f32 %v2012, %v2031
    %v2121 = vmul.f32 %v2013, %v2035
    %v2122 = vmul.f32 %v2014, %v2031
    %v2123 = vmul.f32 %v2015, %v2035
    %v2124 = vmul.f32 %v2016, %v2031
    %v2125 = vmul.f32 %v2017, %v2035
    %v2126 = vmul.f32 %v2018, %v2031
    %v2127 = vmul.f32 %v2019, %v2035
    %v2128 = vmul.f32 %v2020, %v2031
    %v2129 = vmul.f32 %v2021, %v2035
    %v2130 = vmul.f32 %v2022, %v2031
    %v2131 = vmul.f32 %v2023, %v2035
    %v2132 = vmul.f32 %v2024, %v2031
    %v2133 = vmul.f32 %v2025, %v2035
    %v2134 = vpack.c.bf16 %v2040, %v2038
    %v2135 = vpack.c.bf16 %v2041, %v2039
    %v2136 = vpack.c.bf16 %v2044, %v2042
    %v2137 = vpack.c.bf16 %v2045, %v2043
    %v2138 = vpack.c.bf16 %v2048, %v2046
    %v2139 = vpack.c.bf16 %v2049, %v2047
    %v2140 = vpack.c.bf16 %v2052, %v2050
    %v2141 = vpack.c.bf16 %v2053, %v2051
    %v2142 = vpack.c.bf16 %v2056, %v2054
    %v2143 = vpack.c.bf16 %v2057, %v2055
    %v2144 = vpack.c.bf16 %v2060, %v2058
    %v2145 = vpack.c.bf16 %v2061, %v2059
    %v2146 = vpack.c.bf16 %v2064, %v2062
    %v2147 = vpack.c.bf16 %v2065, %v2063
    %v2148 = vpack.c.bf16 %v2068, %v2066
    %v2149 = vpack.c.bf16 %v2069, %v2067
    %v2150 = vpack.c.bf16 %v2072, %v2070
    %v2151 = vpack.c.bf16 %v2073, %v2071
    %v2152 = vpack.c.bf16 %v2076, %v2074
    %v2153 = vpack.c.bf16 %v2077, %v2075
    %v2154 = vpack.c.bf16 %v2080, %v2078
    %v2155 = vpack.c.bf16 %v2081, %v2079
    %v2156 = vpack.c.bf16 %v2084, %v2082
    %v2157 = vpack.c.bf16 %v2085, %v2083
    %v2158 = vpack.c.bf16 %v2088, %v2086
    %v2159 = vpack.c.bf16 %v2089, %v2087
    %v2160 = vpack.c.bf16 %v2092, %v2090
    %v2161 = vpack.c.bf16 %v2093, %v2091
    %v2162 = vpack.c.bf16 %v2096, %v2094
    %v2163 = vpack.c.bf16 %v2097, %v2095
    %v2164 = vpack.c.bf16 %v2100, %v2098
    %v2165 = vpack.c.bf16 %v2101, %v2099
    %v2166 = vpack.c.bf16 %v2104, %v2102
    %v2167 = vpack.c.bf16 %v2105, %v2103
    %v2168 = vpack.c.bf16 %v2108, %v2106
    %v2169 = vpack.c.bf16 %v2109, %v2107
    %v2170 = vpack.c.bf16 %v2112, %v2110
    %v2171 = vpack.c.bf16 %v2113, %v2111
    %v2172 = vpack.c.bf16 %v2116, %v2114
    %v2173 = vpack.c.bf16 %v2117, %v2115
    %v2174 = vpack.c.bf16 %v2120, %v2118
    %v2175 = vpack.c.bf16 %v2121, %v2119
    %v2176 = vpack.c.bf16 %v2124, %v2122
    %v2177 = vpack.c.bf16 %v2125, %v2123
    %v2178 = vpack.c.bf16 %v2128, %v2126
    %v2179 = vpack.c.bf16 %v2129, %v2127
    %v2180 = vpack.c.bf16 %v2132, %v2130
    %v2181 = vpack.c.bf16 %v2133, %v2131
    %v2182 = vld [vmem:[%s47] sm:$0x3]
    %v2184 = vlaneseq
    %v2185 = vshrl.u32 %v2184, 7
    %v2186 = vsub.s32 0, %v2185
    %v2187 = vrot.slane %v2182, %v2186
    %v2188 = vlaneseq
    %v2189 = vshrl.u32 %v2188, 7
    %v2190 = vsub.s32 1, %v2189
    %v2191 = vrot.slane %v2182, %v2190
    %2194 = vmatprep.subr.bf16.mxu0 %v2135
    %2195 = vmatpush1.bf16.msra.mxu0 %v2134
    %2196 = vmatprep.subr.bf16.mxu0 %v2137
    %2197 = vmatpush1.bf16.msra.mxu0 %v2136
    %2198 = vmatprep.subr.bf16.mxu0 %v2139
    %2199 = vmatpush1.bf16.msra.mxu0 %v2138
    %2200 = vmatprep.subr.bf16.mxu0 %v2141
    %2201 = vmatpush1.bf16.msra.mxu0 %v2140
    %2202 = vmatprep.subr.bf16.mxu0 %v2143
    %2203 = vmatpush1.bf16.msra.mxu0 %v2142
    %2204 = vmatprep.subr.bf16.mxu0 %v2145
    %2205 = vmatpush1.bf16.msra.mxu0 %v2144
    %2206 = vmatprep.subr.bf16.mxu0 %v2147
    %2207 = vmatpush1.bf16.msra.mxu0 %v2146
    %2208 = vmatprep.subr.bf16.mxu0 %v2149
    %2209 = vmatpush1.bf16.msra.mxu0 %v2148
    %2210 = vmatprep.subr.bf16.mxu0 %v2151
    %2211 = vmatpush1.bf16.msra.mxu0 %v2150
    %2212 = vmatprep.subr.bf16.mxu0 %v2153
    %2213 = vmatpush1.bf16.msra.mxu0 %v2152
    %2214 = vmatprep.subr.bf16.mxu0 %v2155
    %2215 = vmatpush1.bf16.msra.mxu0 %v2154
    %2216 = vmatprep.subr.bf16.mxu0 %v2157
    %2217 = vmatpush1.bf16.msra.mxu0 %v2156
    %2218 = vmatprep.subr.bf16.mxu0 %v2159
    %2219 = vmatpush1.bf16.msra.mxu0 %v2158
    %2220 = vmatprep.subr.bf16.mxu0 %v2161
    %2221 = vmatpush1.bf16.msra.mxu0 %v2160
    %2222 = vmatprep.subr.bf16.mxu0 %v2163
    %2223 = vmatpush1.bf16.msra.mxu0 %v2162
    %2224 = vmatprep.subr.bf16.mxu0 %v2165
    %2225 = vmatpush1.bf16.msra.mxu0 %v2164
    %2226 = vmatprep.mubr.bf16.mxu0 %v1808
    %2227 = vmatmul.mubr.bf16.gmra.mrb[0].mxu0 %v1807
    %v2228 = vpop.f32.mrb[0].mxu0
    %v2229 = vadd.f32 %v2187, %v2228
    %v2230 = vpop.f32.mrb[0].mxu0
    %v2231 = vadd.f32 %v2191, %v2230
    %v2232 = vpop.f32.mrb[0].mxu0
    %v2233 = vpop.f32.mrb[0].mxu0
    %2234 = vdwg.mxu0
    %2235 = vmatprep.subr.bf16.mxu0 %v2167
    %2236 = vmatpush1.bf16.msra.mxu0 %v2166
    %2237 = vmatprep.subr.bf16.mxu0 %v2169
    %2238 = vmatpush1.bf16.msra.mxu0 %v2168
    %2239 = vmatprep.subr.bf16.mxu0 %v2171
    %2240 = vmatpush1.bf16.msra.mxu0 %v2170
    %2241 = vmatprep.subr.bf16.mxu0 %v2173
    %2242 = vmatpush1.bf16.msra.mxu0 %v2172
    %2243 = vmatprep.subr.bf16.mxu0 %v2175
    %2244 = vmatpush1.bf16.msra.mxu0 %v2174
    %2245 = vmatprep.subr.bf16.mxu0 %v2177
    %2246 = vmatpush1.bf16.msra.mxu0 %v2176
    %2247 = vmatprep.subr.bf16.mxu0 %v2179
    %2248 = vmatpush1.bf16.msra.mxu0 %v2178
    %2249 = vmatprep.subr.bf16.mxu0 %v2181
    %2250 = vmatpush1.bf16.msra.mxu0 %v2180
    %2251 = vmatprep.subr.bf16.mxu0 0
    %2252 = vmatpush1.bf16.msra.mxu0 0
    %2253 = vmatprep.subr.bf16.mxu0 0
    %2254 = vmatpush1.bf16.msra.mxu0 0
    %2255 = vmatprep.subr.bf16.mxu0 0
    %2256 = vmatpush1.bf16.msra.mxu0 0
    %2257 = vmatprep.subr.bf16.mxu0 0
    %2258 = vmatpush1.bf16.msra.mxu0 0
    %2259 = vmatprep.subr.bf16.mxu0 0
    %2260 = vmatpush1.bf16.msra.mxu0 0
    %2261 = vmatprep.subr.bf16.mxu0 0
    %2262 = vmatpush1.bf16.msra.mxu0 0
    %2263 = vmatprep.subr.bf16.mxu0 0
    %2264 = vmatpush1.bf16.msra.mxu0 0
    %2265 = vmatprep.subr.bf16.mxu0 0
    %2266 = vmatpush1.bf16.msra.mxu0 0
    %2267 = vmatprep.mubr.bf16.mxu0 0
    %2268 = vmatmul.mubr.bf16.gmra.mrb[0].mxu0 %v1809
    %v2269 = vpop.f32.mrb[0].mxu0
    %v2270 = vadd.f32 %v2229, %v2269
    %v2271 = vpop.f32.mrb[0].mxu0
    %v2272 = vadd.f32 %v2231, %v2271
    %v2273 = vpop.f32.mrb[0].mxu0
    %v2274 = vpop.f32.mrb[0].mxu0
    %2275 = vdwg.mxu0
    %v2276 = vmax.f32 %v2270, 0.0
    %v2277 = vmax.f32 %v2272, 0.0
    %v2278 = vpack.c.bf16 %v2276, %v2276
    %v2279 = vpack.c.bf16 %v2277, %v2277
    %v2280 = vld [vmem:[#allocation7] sm:$0xff]
    %v2281 = vld [vmem:[#allocation7 + $0x8] sm:$0xff]
    %v2282 = vld [vmem:[#allocation7 + $0x10] sm:$0xff]
    %v2283 = vld [vmem:[#allocation7 + $0x18] sm:$0xff]
    %v2284 = vld [vmem:[#allocation7 + $0x20] sm:$0xff]
    %v2285 = vld [vmem:[#allocation7 + $0x28] sm:$0xff]
    %v2286 = vld [vmem:[#allocation7 + $0x30] sm:$0xff]
    %v2287 = vld [vmem:[#allocation7 + $0x38] sm:$0xff]
    %v2288 = vld [vmem:[#allocation7 + $0x40] sm:$0xff]
    %v2289 = vld [vmem:[#allocation7 + $0x48] sm:$0xff]
    %v2290 = vld [vmem:[#allocation7 + $0x50] sm:$0xff]
    %v2291 = vld [vmem:[#allocation7 + $0x58] sm:$0xff]
    %v2292 = vld [vmem:[#allocation7 + $0x60] sm:$0xff]
    %v2293 = vld [vmem:[#allocation7 + $0x68] sm:$0xff]
    %v2294 = vld [vmem:[#allocation7 + $0x70] sm:$0xff]
    %v2295 = vld [vmem:[#allocation7 + $0x78] sm:$0xff]
    %v2296 = vunpack.c.0.s8 %v2280
    %v2297 = vunpack.c.0.s8 %v2281
    %v2298 = vunpack.c.1.s8 %v2280
    %v2299 = vunpack.c.1.s8 %v2281
    %v2300 = vunpack.c.2.s8 %v2280
    %v2301 = vunpack.c.2.s8 %v2281
    %v2302 = vunpack.c.3.s8 %v2280
    %v2303 = vunpack.c.3.s8 %v2281
    %v2304 = vunpack.c.0.s8 %v2282
    %v2305 = vunpack.c.0.s8 %v2283
    %v2306 = vunpack.c.1.s8 %v2282
    %v2307 = vunpack.c.1.s8 %v2283
    %v2308 = vunpack.c.2.s8 %v2282
    %v2309 = vunpack.c.2.s8 %v2283
    %v2310 = vunpack.c.3.s8 %v2282
    %v2311 = vunpack.c.3.s8 %v2283
    %v2312 = vunpack.c.0.s8 %v2284
    %v2313 = vunpack.c.0.s8 %v2285
    %v2314 = vunpack.c.1.s8 %v2284
    %v2315 = vunpack.c.1.s8 %v2285
    %v2316 = vunpack.c.2.s8 %v2284
    %v2317 = vunpack.c.2.s8 %v2285
    %v2318 = vunpack.c.3.s8 %v2284
    %v2319 = vunpack.c.3.s8 %v2285
    %v2320 = vunpack.c.0.s8 %v2286
    %v2321 = vunpack.c.0.s8 %v2287
    %v2322 = vunpack.c.1.s8 %v2286
    %v2323 = vunpack.c.1.s8 %v2287
    %v2324 = vunpack.c.2.s8 %v2286
    %v2325 = vunpack.c.2.s8 %v2287
    %v2326 = vunpack.c.3.s8 %v2286
    %v2327 = vunpack.c.3.s8 %v2287
    %v2328 = vunpack.c.0.s8 %v2288
    %v2329 = vunpack.c.0.s8 %v2289
    %v2330 = vunpack.c.1.s8 %v2288
    %v2331 = vunpack.c.1.s8 %v2289
    %v2332 = vunpack.c.2.s8 %v2288
    %v2333 = vunpack.c.2.s8 %v2289
    %v2334 = vunpack.c.3.s8 %v2288
    %v2335 = vunpack.c.3.s8 %v2289
    %v2336 = vunpack.c.0.s8 %v2290
    %v2337 = vunpack.c.0.s8 %v2291
    %v2338 = vunpack.c.1.s8 %v2290
    %v2339 = vunpack.c.1.s8 %v2291
    %v2340 = vunpack.c.2.s8 %v2290
    %v2341 = vunpack.c.2.s8 %v2291
    %v2342 = vunpack.c.3.s8 %v2290
    %v2343 = vunpack.c.3.s8 %v2291
    %v2344 = vunpack.c.0.s8 %v2292
    %v2345 = vunpack.c.0.s8 %v2293
    %v2346 = vunpack.c.1.s8 %v2292
    %v2347 = vunpack.c.1.s8 %v2293
    %v2348 = vunpack.c.2.s8 %v2292
    %v2349 = vunpack.c.2.s8 %v2293
    %v2350 = vunpack.c.3.s8 %v2292
    %v2351 = vunpack.c.3.s8 %v2293
    %v2352 = vunpack.c.0.s8 %v2294
    %v2353 = vunpack.c.0.s8 %v2295
    %v2354 = vunpack.c.1.s8 %v2294
    %v2355 = vunpack.c.1.s8 %v2295
    %v2356 = vunpack.c.2.s8 %v2294
    %v2357 = vunpack.c.2.s8 %v2295
    %v2358 = vunpack.c.3.s8 %v2294
    %v2359 = vunpack.c.3.s8 %v2295
    %v2360 = vcvt.s32.f32 %v2296
    %v2361 = vcvt.s32.f32 %v2297
    %v2362 = vcvt.s32.f32 %v2298
    %v2363 = vcvt.s32.f32 %v2299
    %v2364 = vcvt.s32.f32 %v2300
    %v2365 = vcvt.s32.f32 %v2301
    %v2366 = vcvt.s32.f32 %v2302
    %v2367 = vcvt.s32.f32 %v2303
    %v2368 = vcvt.s32.f32 %v2304
    %v2369 = vcvt.s32.f32 %v2305
    %v2370 = vcvt.s32.f32 %v2306
    %v2371 = vcvt.s32.f32 %v2307
    %v2372 = vcvt.s32.f32 %v2308
    %v2373 = vcvt.s32.f32 %v2309
    %v2374 = vcvt.s32.f32 %v2310
    %v2375 = vcvt.s32.f32 %v2311
    %v2376 = vcvt.s32.f32 %v2312
    %v2377 = vcvt.s32.f32 %v2313
    %v2378 = vcvt.s32.f32 %v2314
    %v2379 = vcvt.s32.f32 %v2315
    %v2380 = vcvt.s32.f32 %v2316
    %v2381 = vcvt.s32.f32 %v2317
    %v2382 = vcvt.s32.f32 %v2318
    %v2383 = vcvt.s32.f32 %v2319
    %v2384 = vcvt.s32.f32 %v2320
    %v2385 = vcvt.s32.f32 %v2321
    %v2386 = vcvt.s32.f32 %v2322
    %v2387 = vcvt.s32.f32 %v2323
    %v2388 = vcvt.s32.f32 %v2324
    %v2389 = vcvt.s32.f32 %v2325
    %v2390 = vcvt.s32.f32 %v2326
    %v2391 = vcvt.s32.f32 %v2327
    %v2392 = vcvt.s32.f32 %v2328
    %v2393 = vcvt.s32.f32 %v2329
    %v2394 = vcvt.s32.f32 %v2330
    %v2395 = vcvt.s32.f32 %v2331
    %v2396 = vcvt.s32.f32 %v2332
    %v2397 = vcvt.s32.f32 %v2333
    %v2398 = vcvt.s32.f32 %v2334
    %v2399 = vcvt.s32.f32 %v2335
    %v2400 = vcvt.s32.f32 %v2336
    %v2401 = vcvt.s32.f32 %v2337
    %v2402 = vcvt.s32.f32 %v2338
    %v2403 = vcvt.s32.f32 %v2339
    %v2404 = vcvt.s32.f32 %v2340
    %v2405 = vcvt.s32.f32 %v2341
    %v2406 = vcvt.s32.f32 %v2342
    %v2407 = vcvt.s32.f32 %v2343
    %v2408 = vcvt.s32.f32 %v2344
    %v2409 = vcvt.s32.f32 %v2345
    %v2410 = vcvt.s32.f32 %v2346
    %v2411 = vcvt.s32.f32 %v2347
    %v2412 = vcvt.s32.f32 %v2348
    %v2413 = vcvt.s32.f32 %v2349
    %v2414 = vcvt.s32.f32 %v2350
    %v2415 = vcvt.s32.f32 %v2351
    %v2416 = vcvt.s32.f32 %v2352
    %v2417 = vcvt.s32.f32 %v2353
    %v2418 = vcvt.s32.f32 %v2354
    %v2419 = vcvt.s32.f32 %v2355
    %v2420 = vcvt.s32.f32 %v2356
    %v2421 = vcvt.s32.f32 %v2357
    %v2422 = vcvt.s32.f32 %v2358
    %v2423 = vcvt.s32.f32 %v2359
    %v2424 = vld [vmem:[%s29] sm:$0x3]
    %v2426 = vlaneseq
    %v2427 = vshrl.u32 %v2426, 7
    %v2428 = vsub.s32 0, %v2427
    %v2429 = vrot.slane %v2424, %v2428
    %v2430 = vlaneseq
    %v2431 = vshrl.u32 %v2430, 7
    %v2432 = vsub.s32 1, %v2431
    %v2433 = vrot.slane %v2424, %v2432
    %v2436 = vmul.f32 %v2360, %v2429
    %v2437 = vmul.f32 %v2361, %v2433
    %v2438 = vmul.f32 %v2362, %v2429
    %v2439 = vmul.f32 %v2363, %v2433
    %v2440 = vmul.f32 %v2364, %v2429
    %v2441 = vmul.f32 %v2365, %v2433
    %v2442 = vmul.f32 %v2366, %v2429
    %v2443 = vmul.f32 %v2367, %v2433
    %v2444 = vmul.f32 %v2368, %v2429
    %v2445 = vmul.f32 %v2369, %v2433
    %v2446 = vmul.f32 %v2370, %v2429
    %v2447 = vmul.f32 %v2371, %v2433
    %v2448 = vmul.f32 %v2372, %v2429
    %v2449 = vmul.f32 %v2373, %v2433
    %v2450 = vmul.f32 %v2374, %v2429
    %v2451 = vmul.f32 %v2375, %v2433
    %v2452 = vmul.f32 %v2376, %v2429
    %v2453 = vmul.f32 %v2377, %v2433
    %v2454 = vmul.f32 %v2378, %v2429
    %v2455 = vmul.f32 %v2379, %v2433
    %v2456 = vmul.f32 %v2380, %v2429
    %v2457 = vmul.f32 %v2381, %v2433
    %v2458 = vmul.f32 %v2382, %v2429
    %v2459 = vmul.f32 %v2383, %v2433
    %v2460 = vmul.f32 %v2384, %v2429
    %v2461 = vmul.f32 %v2385, %v2433
    %v2462 = vmul.f32 %v2386, %v2429
    %v2463 = vmul.f32 %v2387, %v2433
    %v2464 = vmul.f32 %v2388, %v2429
    %v2465 = vmul.f32 %v2389, %v2433
    %v2466 = vmul.f32 %v2390, %v2429
    %v2467 = vmul.f32 %v2391, %v2433
    %v2468 = vmul.f32 %v2392, %v2429
    %v2469 = vmul.f32 %v2393, %v2433
    %v2470 = vmul.f32 %v2394, %v2429
    %v2471 = vmul.f32 %v2395, %v2433
    %v2472 = vmul.f32 %v2396, %v2429
    %v2473 = vmul.f32 %v2397, %v2433
    %v2474 = vmul.f32 %v2398, %v2429
    %v2475 = vmul.f32 %v2399, %v2433
    %v2476 = vmul.f32 %v2400, %v2429
    %v2477 = vmul.f32 %v2401, %v2433
    %v2478 = vmul.f32 %v2402, %v2429
    %v2479 = vmul.f32 %v2403, %v2433
    %v2480 = vmul.f32 %v2404, %v2429
    %v2481 = vmul.f32 %v2405, %v2433
    %v2482 = vmul.f32 %v2406, %v2429
    %v2483 = vmul.f32 %v2407, %v2433
    %v2484 = vmul.f32 %v2408, %v2429
    %v2485 = vmul.f32 %v2409, %v2433
    %v2486 = vmul.f32 %v2410, %v2429
    %v2487 = vmul.f32 %v2411, %v2433
    %v2488 = vmul.f32 %v2412, %v2429
    %v2489 = vmul.f32 %v2413, %v2433
    %v2490 = vmul.f32 %v2414, %v2429
    %v2491 = vmul.f32 %v2415, %v2433
    %v2492 = vmul.f32 %v2416, %v2429
    %v2493 = vmul.f32 %v2417, %v2433
    %v2494 = vmul.f32 %v2418, %v2429
    %v2495 = vmul.f32 %v2419, %v2433
    %v2496 = vmul.f32 %v2420, %v2429
    %v2497 = vmul.f32 %v2421, %v2433
    %v2498 = vmul.f32 %v2422, %v2429
    %v2499 = vmul.f32 %v2423, %v2433
    %v2500 = vpack.c.bf16 %v2438, %v2436
    %v2501 = vpack.c.bf16 %v2439, %v2437
    %v2502 = vpack.c.bf16 %v2442, %v2440
    %v2503 = vpack.c.bf16 %v2443, %v2441
    %v2504 = vpack.c.bf16 %v2446, %v2444
    %v2505 = vpack.c.bf16 %v2447, %v2445
    %v2506 = vpack.c.bf16 %v2450, %v2448
    %v2507 = vpack.c.bf16 %v2451, %v2449
    %v2508 = vpack.c.bf16 %v2454, %v2452
    %v2509 = vpack.c.bf16 %v2455, %v2453
    %v2510 = vpack.c.bf16 %v2458, %v2456
    %v2511 = vpack.c.bf16 %v2459, %v2457
    %v2512 = vpack.c.bf16 %v2462, %v2460
    %v2513 = vpack.c.bf16 %v2463, %v2461
    %v2514 = vpack.c.bf16 %v2466, %v2464
    %v2515 = vpack.c.bf16 %v2467, %v2465
    %v2516 = vpack.c.bf16 %v2470, %v2468
    %v2517 = vpack.c.bf16 %v2471, %v2469
    %v2518 = vpack.c.bf16 %v2474, %v2472
    %v2519 = vpack.c.bf16 %v2475, %v2473
    %v2520 = vpack.c.bf16 %v2478, %v2476
    %v2521 = vpack.c.bf16 %v2479, %v2477
    %v2522 = vpack.c.bf16 %v2482, %v2480
    %v2523 = vpack.c.bf16 %v2483, %v2481
    %v2524 = vpack.c.bf16 %v2486, %v2484
    %v2525 = vpack.c.bf16 %v2487, %v2485
    %v2526 = vpack.c.bf16 %v2490, %v2488
    %v2527 = vpack.c.bf16 %v2491, %v2489
    %v2528 = vpack.c.bf16 %v2494, %v2492
    %v2529 = vpack.c.bf16 %v2495, %v2493
    %v2530 = vpack.c.bf16 %v2498, %v2496
    %v2531 = vpack.c.bf16 %v2499, %v2497
    %v2532 = vld [vmem:[%s49] sm:$0x3]
    %v2534 = vlaneseq
    %v2535 = vshrl.u32 %v2534, 7
    %v2536 = vsub.s32 0, %v2535
    %v2537 = vrot.slane %v2532, %v2536
    %v2538 = vlaneseq
    %v2539 = vshrl.u32 %v2538, 7
    %v2540 = vsub.s32 1, %v2539
    %v2541 = vrot.slane %v2532, %v2540
    %2544 = vmatprep.subr.bf16.mxu0 %v2501
    %2545 = vmatpush1.bf16.msra.mxu0 %v2500
    %2546 = vmatprep.subr.bf16.mxu0 %v2503
    %2547 = vmatpush1.bf16.msra.mxu0 %v2502
    %2548 = vmatprep.subr.bf16.mxu0 %v2505
    %2549 = vmatpush1.bf16.msra.mxu0 %v2504
    %2550 = vmatprep.subr.bf16.mxu0 %v2507
    %2551 = vmatpush1.bf16.msra.mxu0 %v2506
    %2552 = vmatprep.subr.bf16.mxu0 %v2509
    %2553 = vmatpush1.bf16.msra.mxu0 %v2508
    %2554 = vmatprep.subr.bf16.mxu0 %v2511
    %2555 = vmatpush1.bf16.msra.mxu0 %v2510
    %2556 = vmatprep.subr.bf16.mxu0 %v2513
    %2557 = vmatpush1.bf16.msra.mxu0 %v2512
    %2558 = vmatprep.subr.bf16.mxu0 %v2515
    %2559 = vmatpush1.bf16.msra.mxu0 %v2514
    %2560 = vmatprep.subr.bf16.mxu0 %v2517
    %2561 = vmatpush1.bf16.msra.mxu0 %v2516
    %2562 = vmatprep.subr.bf16.mxu0 %v2519
    %2563 = vmatpush1.bf16.msra.mxu0 %v2518
    %2564 = vmatprep.subr.bf16.mxu0 %v2521
    %2565 = vmatpush1.bf16.msra.mxu0 %v2520
    %2566 = vmatprep.subr.bf16.mxu0 %v2523
    %2567 = vmatpush1.bf16.msra.mxu0 %v2522
    %2568 = vmatprep.subr.bf16.mxu0 %v2525
    %2569 = vmatpush1.bf16.msra.mxu0 %v2524
    %2570 = vmatprep.subr.bf16.mxu0 %v2527
    %2571 = vmatpush1.bf16.msra.mxu0 %v2526
    %2572 = vmatprep.subr.bf16.mxu0 %v2529
    %2573 = vmatpush1.bf16.msra.mxu0 %v2528
    %2574 = vmatprep.subr.bf16.mxu0 %v2531
    %2575 = vmatpush1.bf16.msra.mxu0 %v2530
    %2576 = vmatprep.mubr.bf16.mxu0 %v2279
    %2577 = vmatmul.mubr.bf16.gmra.mrb[0].mxu0 %v2278
    %v2578 = vpop.f32.mrb[0].mxu0
    %v2579 = vadd.f32 %v2537, %v2578
    %v2580 = vpop.f32.mrb[0].mxu0
    %v2581 = vadd.f32 %v2541, %v2580
    %v2582 = vpop.f32.mrb[0].mxu0
    %v2583 = vpop.f32.mrb[0].mxu0
    %2584 = vdwg.mxu0
    %v2585 = vmax.f32 %v2579, 0.0
    %v2586 = vmax.f32 %v2581, 0.0
    %v2587 = vpack.c.bf16 %v2585, %v2585
    %v2588 = vpack.c.bf16 %v2586, %v2586
    %v2589 = vld [vmem:[#allocation9] sm:$0xff]
    %v2590 = vld [vmem:[#allocation9 + $0x8] sm:$0xff]
    %v2591 = vld [vmem:[#allocation9 + $0x10] sm:$0xff]
    %v2592 = vld [vmem:[#allocation9 + $0x18] sm:$0xff]
    %v2593 = vld [vmem:[#allocation9 + $0x20] sm:$0xff]
    %v2594 = vld [vmem:[#allocation9 + $0x28] sm:$0xff]
    %v2595 = vld [vmem:[#allocation9 + $0x30] sm:$0xff]
    %v2596 = vld [vmem:[#allocation9 + $0x38] sm:$0xff]
    %v2597 = vunpack.c.0.s8 %v2589
    %v2598 = vunpack.c.1.s8 %v2589
    %v2599 = vunpack.c.2.s8 %v2589
    %v2600 = vunpack.c.3.s8 %v2589
    %v2601 = vunpack.c.0.s8 %v2590
    %v2602 = vunpack.c.1.s8 %v2590
    %v2603 = vunpack.c.2.s8 %v2590
    %v2604 = vunpack.c.3.s8 %v2590
    %v2605 = vunpack.c.0.s8 %v2591
    %v2606 = vunpack.c.1.s8 %v2591
    %v2607 = vunpack.c.2.s8 %v2591
    %v2608 = vunpack.c.3.s8 %v2591
    %v2609 = vunpack.c.0.s8 %v2592
    %v2610 = vunpack.c.1.s8 %v2592
    %v2611 = vunpack.c.2.s8 %v2592
    %v2612 = vunpack.c.3.s8 %v2592
    %v2613 = vunpack.c.0.s8 %v2593
    %v2614 = vunpack.c.1.s8 %v2593
    %v2615 = vunpack.c.2.s8 %v2593
    %v2616 = vunpack.c.3.s8 %v2593
    %v2617 = vunpack.c.0.s8 %v2594
    %v2618 = vunpack.c.1.s8 %v2594
    %v2619 = vunpack.c.2.s8 %v2594
    %v2620 = vunpack.c.3.s8 %v2594
    %v2621 = vunpack.c.0.s8 %v2595
    %v2622 = vunpack.c.1.s8 %v2595
    %v2623 = vunpack.c.2.s8 %v2595
    %v2624 = vunpack.c.3.s8 %v2595
    %v2625 = vunpack.c.0.s8 %v2596
    %v2626 = vunpack.c.1.s8 %v2596
    %v2627 = vunpack.c.2.s8 %v2596
    %v2628 = vunpack.c.3.s8 %v2596
    %v2629 = vcvt.s32.f32 %v2597
    %v2630 = vcvt.s32.f32 %v2598
    %v2631 = vcvt.s32.f32 %v2599
    %v2632 = vcvt.s32.f32 %v2600
    %v2633 = vcvt.s32.f32 %v2601
    %v2634 = vcvt.s32.f32 %v2602
    %v2635 = vcvt.s32.f32 %v2603
    %v2636 = vcvt.s32.f32 %v2604
    %v2637 = vcvt.s32.f32 %v2605
    %v2638 = vcvt.s32.f32 %v2606
    %v2639 = vcvt.s32.f32 %v2607
    %v2640 = vcvt.s32.f32 %v2608
    %v2641 = vcvt.s32.f32 %v2609
    %v2642 = vcvt.s32.f32 %v2610
    %v2643 = vcvt.s32.f32 %v2611
    %v2644 = vcvt.s32.f32 %v2612
    %v2645 = vcvt.s32.f32 %v2613
    %v2646 = vcvt.s32.f32 %v2614
    %v2647 = vcvt.s32.f32 %v2615
    %v2648 = vcvt.s32.f32 %v2616
    %v2649 = vcvt.s32.f32 %v2617
    %v2650 = vcvt.s32.f32 %v2618
    %v2651 = vcvt.s32.f32 %v2619
    %v2652 = vcvt.s32.f32 %v2620
    %v2653 = vcvt.s32.f32 %v2621
    %v2654 = vcvt.s32.f32 %v2622
    %v2655 = vcvt.s32.f32 %v2623
    %v2656 = vcvt.s32.f32 %v2624
    %v2657 = vcvt.s32.f32 %v2625
    %v2658 = vcvt.s32.f32 %v2626
    %v2659 = vcvt.s32.f32 %v2627
    %v2660 = vcvt.s32.f32 %v2628
    %v2661 = vld [vmem:[%s31] sm:$0x1]
    %v2663 = vlaneseq
    %v2664 = vshrl.u32 %v2663, 7
    %v2665 = vsub.s32 0, %v2664
    %v2666 = vrot.slane %v2661, %v2665
    %v2668 = vmul.f32 %v2629, %v2666
    %v2669 = vmul.f32 %v2630, %v2666
    %v2670 = vmul.f32 %v2631, %v2666
    %v2671 = vmul.f32 %v2632, %v2666
    %v2672 = vmul.f32 %v2633, %v2666
    %v2673 = vmul.f32 %v2634, %v2666
    %v2674 = vmul.f32 %v2635, %v2666
    %v2675 = vmul.f32 %v2636, %v2666
    %v2676 = vmul.f32 %v2637, %v2666
    %v2677 = vmul.f32 %v2638, %v2666
    %v2678 = vmul.f32 %v2639, %v2666
    %v2679 = vmul.f32 %v2640, %v2666
    %v2680 = vmul.f32 %v2641, %v2666
    %v2681 = vmul.f32 %v2642, %v2666
    %v2682 = vmul.f32 %v2643, %v2666
    %v2683 = vmul.f32 %v2644, %v2666
    %v2684 = vmul.f32 %v2645, %v2666
    %v2685 = vmul.f32 %v2646, %v2666
    %v2686 = vmul.f32 %v2647, %v2666
    %v2687 = vmul.f32 %v2648, %v2666
    %v2688 = vmul.f32 %v2649, %v2666
    %v2689 = vmul.f32 %v2650, %v2666
    %v2690 = vmul.f32 %v2651, %v2666
    %v2691 = vmul.f32 %v2652, %v2666
    %v2692 = vmul.f32 %v2653, %v2666
    %v2693 = vmul.f32 %v2654, %v2666
    %v2694 = vmul.f32 %v2655, %v2666
    %v2695 = vmul.f32 %v2656, %v2666
    %v2696 = vmul.f32 %v2657, %v2666
    %v2697 = vmul.f32 %v2658, %v2666
    %v2698 = vmul.f32 %v2659, %v2666
    %v2699 = vmul.f32 %v2660, %v2666
    %v2700 = vpack.c.bf16 %v2669, %v2668
    %v2701 = vpack.c.bf16 %v2671, %v2670
    %v2702 = vpack.c.bf16 %v2673, %v2672
    %v2703 = vpack.c.bf16 %v2675, %v2674
    %v2704 = vpack.c.bf16 %v2677, %v2676
    %v2705 = vpack.c.bf16 %v2679, %v2678
    %v2706 = vpack.c.bf16 %v2681, %v2680
    %v2707 = vpack.c.bf16 %v2683, %v2682
    %v2708 = vpack.c.bf16 %v2685, %v2684
    %v2709 = vpack.c.bf16 %v2687, %v2686
    %v2710 = vpack.c.bf16 %v2689, %v2688
    %v2711 = vpack.c.bf16 %v2691, %v2690
    %v2712 = vpack.c.bf16 %v2693, %v2692
    %v2713 = vpack.c.bf16 %v2695, %v2694
    %v2714 = vpack.c.bf16 %v2697, %v2696
    %v2715 = vpack.c.bf16 %v2699, %v2698
    %v2716 = vld [vmem:[%s51] sm:$0x1]
    %v2718 = vlaneseq
    %v2719 = vshrl.u32 %v2718, 7
    %v2720 = vsub.s32 0, %v2719
    %v2721 = vrot.slane %v2716, %v2720
    %2723 = vmatprep.subr.bf16.mxu0 0
    %2724 = vmatpush1.bf16.msra.mxu0 %v2700
    %2725 = vmatprep.subr.bf16.mxu0 0
    %2726 = vmatpush1.bf16.msra.mxu0 %v2701
    %2727 = vmatprep.subr.bf16.mxu0 0
    %2728 = vmatpush1.bf16.msra.mxu0 %v2702
    %2729 = vmatprep.subr.bf16.mxu0 0
    %2730 = vmatpush1.bf16.msra.mxu0 %v2703
    %2731 = vmatprep.subr.bf16.mxu0 0
    %2732 = vmatpush1.bf16.msra.mxu0 %v2704
    %2733 = vmatprep.subr.bf16.mxu0 0
    %2734 = vmatpush1.bf16.msra.mxu0 %v2705
    %2735 = vmatprep.subr.bf16.mxu0 0
    %2736 = vmatpush1.bf16.msra.mxu0 %v2706
    %2737 = vmatprep.subr.bf16.mxu0 0
    %2738 = vmatpush1.bf16.msra.mxu0 %v2707
    %2739 = vmatprep.subr.bf16.mxu0 0
    %2740 = vmatpush1.bf16.msra.mxu0 %v2708
    %2741 = vmatprep.subr.bf16.mxu0 0
    %2742 = vmatpush1.bf16.msra.mxu0 %v2709
    %2743 = vmatprep.subr.bf16.mxu0 0
    %2744 = vmatpush1.bf16.msra.mxu0 %v2710
    %2745 = vmatprep.subr.bf16.mxu0 0
    %2746 = vmatpush1.bf16.msra.mxu0 %v2711
    %2747 = vmatprep.subr.bf16.mxu0 0
    %2748 = vmatpush1.bf16.msra.mxu0 %v2712
    %2749 = vmatprep.subr.bf16.mxu0 0
    %2750 = vmatpush1.bf16.msra.mxu0 %v2713
    %2751 = vmatprep.subr.bf16.mxu0 0
    %2752 = vmatpush1.bf16.msra.mxu0 %v2714
    %2753 = vmatprep.subr.bf16.mxu0 0
    %2754 = vmatpush1.bf16.msra.mxu0 %v2715
    %2755 = vmatprep.mubr.bf16.mxu0 %v2588
    %2756 = vmatmul.mubr.bf16.gmra.mrb[0].mxu0 %v2587
    %v2757 = vpop.f32.mrb[0].mxu0
    %v2758 = vadd.f32 %v2721, %v2757
    %v2759 = vpop.f32.mrb[0].mxu0
    %v2760 = vpop.f32.mrb[0].mxu0
    %v2761 = vpop.f32.mrb[0].mxu0
    %2762 = vdwg.mxu0
    %v2763 = vmax.f32 %v2758, 0.0
    %2764 = vst [vmem:[%s63] sm:$0xff] %v2763
    %v2765 = vpack.c.bf16 %v2763, %v2763
    %v2766 = vld [vmem:[#allocation10] sm:$0xff]
    %v2767 = vld [vmem:[#allocation10 + $0x8] sm:$0xff]
    %v2768 = vld [vmem:[#allocation10 + $0x10] sm:$0xff]
    %v2769 = vld [vmem:[#allocation10 + $0x18] sm:$0xff]
    %v2770 = vld [vmem:[#allocation10 + $0x20] sm:$0xff]
    %v2771 = vld [vmem:[#allocation10 + $0x28] sm:$0xff]
    %v2772 = vld [vmem:[#allocation10 + $0x30] sm:$0xff]
    %v2773 = vld [vmem:[#allocation10 + $0x38] sm:$0xff]
    %v2774 = vunpack.c.0.s8 %v2766
    %v2775 = vunpack.c.0.s8 %v2767
    %v2776 = vunpack.c.1.s8 %v2766
    %v2777 = vunpack.c.1.s8 %v2767
    %v2778 = vunpack.c.2.s8 %v2766
    %v2779 = vunpack.c.2.s8 %v2767
    %v2780 = vunpack.c.3.s8 %v2766
    %v2781 = vunpack.c.3.s8 %v2767
    %v2782 = vunpack.c.0.s8 %v2768
    %v2783 = vunpack.c.0.s8 %v2769
    %v2784 = vunpack.c.1.s8 %v2768
    %v2785 = vunpack.c.1.s8 %v2769
    %v2786 = vunpack.c.2.s8 %v2768
    %v2787 = vunpack.c.2.s8 %v2769
    %v2788 = vunpack.c.3.s8 %v2768
    %v2789 = vunpack.c.3.s8 %v2769
    %v2790 = vunpack.c.0.s8 %v2770
    %v2791 = vunpack.c.0.s8 %v2771
    %v2792 = vunpack.c.1.s8 %v2770
    %v2793 = vunpack.c.1.s8 %v2771
    %v2794 = vunpack.c.2.s8 %v2770
    %v2795 = vunpack.c.2.s8 %v2771
    %v2796 = vunpack.c.3.s8 %v2770
    %v2797 = vunpack.c.3.s8 %v2771
    %v2798 = vunpack.c.0.s8 %v2772
    %v2799 = vunpack.c.0.s8 %v2773
    %v2800 = vunpack.c.1.s8 %v2772
    %v2801 = vunpack.c.1.s8 %v2773
    %v2802 = vunpack.c.2.s8 %v2772
    %v2803 = vunpack.c.2.s8 %v2773
    %v2804 = vunpack.c.3.s8 %v2772
    %v2805 = vunpack.c.3.s8 %v2773
    %v2806 = vcvt.s32.f32 %v2774
    %v2807 = vcvt.s32.f32 %v2775
    %v2808 = vcvt.s32.f32 %v2776
    %v2809 = vcvt.s32.f32 %v2777
    %v2810 = vcvt.s32.f32 %v2778
    %v2811 = vcvt.s32.f32 %v2779
    %v2812 = vcvt.s32.f32 %v2780
    %v2813 = vcvt.s32.f32 %v2781
    %v2814 = vcvt.s32.f32 %v2782
    %v2815 = vcvt.s32.f32 %v2783
    %v2816 = vcvt.s32.f32 %v2784
    %v2817 = vcvt.s32.f32 %v2785
    %v2818 = vcvt.s32.f32 %v2786
    %v2819 = vcvt.s32.f32 %v2787
    %v2820 = vcvt.s32.f32 %v2788
    %v2821 = vcvt.s32.f32 %v2789
    %v2822 = vcvt.s32.f32 %v2790
    %v2823 = vcvt.s32.f32 %v2791
    %v2824 = vcvt.s32.f32 %v2792
    %v2825 = vcvt.s32.f32 %v2793
    %v2826 = vcvt.s32.f32 %v2794
    %v2827 = vcvt.s32.f32 %v2795
    %v2828 = vcvt.s32.f32 %v2796
    %v2829 = vcvt.s32.f32 %v2797
    %v2830 = vcvt.s32.f32 %v2798
    %v2831 = vcvt.s32.f32 %v2799
    %v2832 = vcvt.s32.f32 %v2800
    %v2833 = vcvt.s32.f32 %v2801
    %v2834 = vcvt.s32.f32 %v2802
    %v2835 = vcvt.s32.f32 %v2803
    %v2836 = vcvt.s32.f32 %v2804
    %v2837 = vcvt.s32.f32 %v2805
    %v2838 = vld [vmem:[%s33] sm:$0x3]
    %v2840 = vlaneseq
    %v2841 = vshrl.u32 %v2840, 7
    %v2842 = vsub.s32 0, %v2841
    %v2843 = vrot.slane %v2838, %v2842
    %v2844 = vlaneseq
    %v2845 = vshrl.u32 %v2844, 7
    %v2846 = vsub.s32 1, %v2845
    %v2847 = vrot.slane %v2838, %v2846
    %v2850 = vmul.f32 %v2806, %v2843
    %v2851 = vmul.f32 %v2807, %v2847
    %v2852 = vmul.f32 %v2808, %v2843
    %v2853 = vmul.f32 %v2809, %v2847
    %v2854 = vmul.f32 %v2810, %v2843
    %v2855 = vmul.f32 %v2811, %v2847
    %v2856 = vmul.f32 %v2812, %v2843
    %v2857 = vmul.f32 %v2813, %v2847
    %v2858 = vmul.f32 %v2814, %v2843
    %v2859 = vmul.f32 %v2815, %v2847
    %v2860 = vmul.f32 %v2816, %v2843
    %v2861 = vmul.f32 %v2817, %v2847
    %v2862 = vmul.f32 %v2818, %v2843
    %v2863 = vmul.f32 %v2819, %v2847
    %v2864 = vmul.f32 %v2820, %v2843
    %v2865 = vmul.f32 %v2821, %v2847
    %v2866 = vmul.f32 %v2822, %v2843
    %v2867 = vmul.f32 %v2823, %v2847
    %v2868 = vmul.f32 %v2824, %v2843
    %v2869 = vmul.f32 %v2825, %v2847
    %v2870 = vmul.f32 %v2826, %v2843
    %v2871 = vmul.f32 %v2827, %v2847
    %v2872 = vmul.f32 %v2828, %v2843
    %v2873 = vmul.f32 %v2829, %v2847
    %v2874 = vmul.f32 %v2830, %v2843
    %v2875 = vmul.f32 %v2831, %v2847
    %v2876 = vmul.f32 %v2832, %v2843
    %v2877 = vmul.f32 %v2833, %v2847
    %v2878 = vmul.f32 %v2834, %v2843
    %v2879 = vmul.f32 %v2835, %v2847
    %v2880 = vmul.f32 %v2836, %v2843
    %v2881 = vmul.f32 %v2837, %v2847
    %v2882 = vpack.c.bf16 %v2852, %v2850
    %v2883 = vpack.c.bf16 %v2853, %v2851
    %v2884 = vpack.c.bf16 %v2856, %v2854
    %v2885 = vpack.c.bf16 %v2857, %v2855
    %v2886 = vpack.c.bf16 %v2860, %v2858
    %v2887 = vpack.c.bf16 %v2861, %v2859
    %v2888 = vpack.c.bf16 %v2864, %v2862
    %v2889 = vpack.c.bf16 %v2865, %v2863
    %v2890 = vpack.c.bf16 %v2868, %v2866
    %v2891 = vpack.c.bf16 %v2869, %v2867
    %v2892 = vpack.c.bf16 %v2872, %v2870
    %v2893 = vpack.c.bf16 %v2873, %v2871
    %v2894 = vpack.c.bf16 %v2876, %v2874
    %v2895 = vpack.c.bf16 %v2877, %v2875
    %v2896 = vpack.c.bf16 %v2880, %v2878
    %v2897 = vpack.c.bf16 %v2881, %v2879
    %v2898 = vld [vmem:[%s53] sm:$0x3]
    %v2900 = vlaneseq
    %v2901 = vshrl.u32 %v2900, 7
    %v2902 = vsub.s32 0, %v2901
    %v2903 = vrot.slane %v2898, %v2902
    %v2904 = vlaneseq
    %v2905 = vshrl.u32 %v2904, 7
    %v2906 = vsub.s32 1, %v2905
    %v2907 = vrot.slane %v2898, %v2906
    %2910 = vmatprep.subr.bf16.mxu0 %v2883
    %2911 = vmatpush1.bf16.msra.mxu0 %v2882
    %2912 = vmatprep.subr.bf16.mxu0 %v2885
    %2913 = vmatpush1.bf16.msra.mxu0 %v2884
    %2914 = vmatprep.subr.bf16.mxu0 %v2887
    %2915 = vmatpush1.bf16.msra.mxu0 %v2886
    %2916 = vmatprep.subr.bf16.mxu0 %v2889
    %2917 = vmatpush1.bf16.msra.mxu0 %v2888
    %2918 = vmatprep.subr.bf16.mxu0 %v2891
    %2919 = vmatpush1.bf16.msra.mxu0 %v2890
    %2920 = vmatprep.subr.bf16.mxu0 %v2893
    %2921 = vmatpush1.bf16.msra.mxu0 %v2892
    %2922 = vmatprep.subr.bf16.mxu0 %v2895
    %2923 = vmatpush1.bf16.msra.mxu0 %v2894
    %2924 = vmatprep.subr.bf16.mxu0 %v2897
    %2925 = vmatpush1.bf16.msra.mxu0 %v2896
    %2926 = vmatprep.subr.bf16.mxu0 0
    %2927 = vmatpush1.bf16.msra.mxu0 0
    %2928 = vmatprep.subr.bf16.mxu0 0
    %2929 = vmatpush1.bf16.msra.mxu0 0
    %2930 = vmatprep.subr.bf16.mxu0 0
    %2931 = vmatpush1.bf16.msra.mxu0 0
    %2932 = vmatprep.subr.bf16.mxu0 0
    %2933 = vmatpush1.bf16.msra.mxu0 0
    %2934 = vmatprep.subr.bf16.mxu0 0
    %2935 = vmatpush1.bf16.msra.mxu0 0
    %2936 = vmatprep.subr.bf16.mxu0 0
    %2937 = vmatpush1.bf16.msra.mxu0 0
    %2938 = vmatprep.subr.bf16.mxu0 0
    %2939 = vmatpush1.bf16.msra.mxu0 0
    %2940 = vmatprep.subr.bf16.mxu0 0
    %2941 = vmatpush1.bf16.msra.mxu0 0
    %2942 = vmatprep.mubr.bf16.mxu0 0
    %2943 = vmatmul.mubr.bf16.gmra.mrb[0].mxu0 %v2765
    %v2944 = vpop.f32.mrb[0].mxu0
    %v2945 = vadd.f32 %v2903, %v2944
    %v2946 = vpop.f32.mrb[0].mxu0
    %v2947 = vadd.f32 %v2907, %v2946
    %v2948 = vpop.f32.mrb[0].mxu0
    %v2949 = vpop.f32.mrb[0].mxu0
    %2950 = vdwg.mxu0
    %v2951 = vmax.f32 %v2945, 0.0
    %v2952 = vmax.f32 %v2947, 0.0
    %v2953 = vpack.c.bf16 %v2951, %v2951
    %v2954 = vpack.c.bf16 %v2952, %v2952
    %v2955 = vld [vmem:[#allocation12] sm:$0xff]
    %v2956 = vld [vmem:[#allocation12 + $0x8] sm:$0xff]
    %v2957 = vld [vmem:[#allocation12 + $0x10] sm:$0xff]
    %v2958 = vld [vmem:[#allocation12 + $0x18] sm:$0xff]
    %v2959 = vld [vmem:[#allocation12 + $0x20] sm:$0xff]
    %v2960 = vld [vmem:[#allocation12 + $0x28] sm:$0xff]
    %v2961 = vld [vmem:[#allocation12 + $0x30] sm:$0xff]
    %v2962 = vld [vmem:[#allocation12 + $0x38] sm:$0xff]
    %v2963 = vld [vmem:[#allocation12 + $0x40] sm:$0xff]
    %v2964 = vld [vmem:[#allocation12 + $0x48] sm:$0xff]
    %v2965 = vld [vmem:[#allocation12 + $0x50] sm:$0xff]
    %v2966 = vld [vmem:[#allocation12 + $0x58] sm:$0xff]
    %v2967 = vld [vmem:[#allocation12 + $0x60] sm:$0xff]
    %v2968 = vld [vmem:[#allocation12 + $0x68] sm:$0xff]
    %v2969 = vld [vmem:[#allocation12 + $0x70] sm:$0xff]
    %v2970 = vld [vmem:[#allocation12 + $0x78] sm:$0xff]
    %v2971 = vunpack.c.0.s8 %v2955
    %v2972 = vunpack.c.0.s8 %v2956
    %v2973 = vunpack.c.1.s8 %v2955
    %v2974 = vunpack.c.1.s8 %v2956
    %v2975 = vunpack.c.2.s8 %v2955
    %v2976 = vunpack.c.2.s8 %v2956
    %v2977 = vunpack.c.3.s8 %v2955
    %v2978 = vunpack.c.3.s8 %v2956
    %v2979 = vunpack.c.0.s8 %v2957
    %v2980 = vunpack.c.0.s8 %v2958
    %v2981 = vunpack.c.1.s8 %v2957
    %v2982 = vunpack.c.1.s8 %v2958
    %v2983 = vunpack.c.2.s8 %v2957
    %v2984 = vunpack.c.2.s8 %v2958
    %v2985 = vunpack.c.3.s8 %v2957
    %v2986 = vunpack.c.3.s8 %v2958
    %v2987 = vunpack.c.0.s8 %v2959
    %v2988 = vunpack.c.0.s8 %v2960
    %v2989 = vunpack.c.1.s8 %v2959
    %v2990 = vunpack.c.1.s8 %v2960
    %v2991 = vunpack.c.2.s8 %v2959
    %v2992 = vunpack.c.2.s8 %v2960
    %v2993 = vunpack.c.3.s8 %v2959
    %v2994 = vunpack.c.3.s8 %v2960
    %v2995 = vunpack.c.0.s8 %v2961
    %v2996 = vunpack.c.0.s8 %v2962
    %v2997 = vunpack.c.1.s8 %v2961
    %v2998 = vunpack.c.1.s8 %v2962
    %v2999 = vunpack.c.2.s8 %v2961
    %v3000 = vunpack.c.2.s8 %v2962
    %v3001 = vunpack.c.3.s8 %v2961
    %v3002 = vunpack.c.3.s8 %v2962
    %v3003 = vunpack.c.0.s8 %v2963
    %v3004 = vunpack.c.0.s8 %v2964
    %v3005 = vunpack.c.1.s8 %v2963
    %v3006 = vunpack.c.1.s8 %v2964
    %v3007 = vunpack.c.2.s8 %v2963
    %v3008 = vunpack.c.2.s8 %v2964
    %v3009 = vunpack.c.3.s8 %v2963
    %v3010 = vunpack.c.3.s8 %v2964
    %v3011 = vunpack.c.0.s8 %v2965
    %v3012 = vunpack.c.0.s8 %v2966
    %v3013 = vunpack.c.1.s8 %v2965
    %v3014 = vunpack.c.1.s8 %v2966
    %v3015 = vunpack.c.2.s8 %v2965
    %v3016 = vunpack.c.2.s8 %v2966
    %v3017 = vunpack.c.3.s8 %v2965
    %v3018 = vunpack.c.3.s8 %v2966
    %v3019 = vunpack.c.0.s8 %v2967
    %v3020 = vunpack.c.0.s8 %v2968
    %v3021 = vunpack.c.1.s8 %v2967
    %v3022 = vunpack.c.1.s8 %v2968
    %v3023 = vunpack.c.2.s8 %v2967
    %v3024 = vunpack.c.2.s8 %v2968
    %v3025 = vunpack.c.3.s8 %v2967
    %v3026 = vunpack.c.3.s8 %v2968
    %v3027 = vunpack.c.0.s8 %v2969
    %v3028 = vunpack.c.0.s8 %v2970
    %v3029 = vunpack.c.1.s8 %v2969
    %v3030 = vunpack.c.1.s8 %v2970
    %v3031 = vunpack.c.2.s8 %v2969
    %v3032 = vunpack.c.2.s8 %v2970
    %v3033 = vunpack.c.3.s8 %v2969
    %v3034 = vunpack.c.3.s8 %v2970
    %v3035 = vcvt.s32.f32 %v2971
    %v3036 = vcvt.s32.f32 %v2972
    %v3037 = vcvt.s32.f32 %v2973
    %v3038 = vcvt.s32.f32 %v2974
    %v3039 = vcvt.s32.f32 %v2975
    %v3040 = vcvt.s32.f32 %v2976
    %v3041 = vcvt.s32.f32 %v2977
    %v3042 = vcvt.s32.f32 %v2978
    %v3043 = vcvt.s32.f32 %v2979
    %v3044 = vcvt.s32.f32 %v2980
    %v3045 = vcvt.s32.f32 %v2981
    %v3046 = vcvt.s32.f32 %v2982
    %v3047 = vcvt.s32.f32 %v2983
    %v3048 = vcvt.s32.f32 %v2984
    %v3049 = vcvt.s32.f32 %v2985
    %v3050 = vcvt.s32.f32 %v2986
    %v3051 = vcvt.s32.f32 %v2987
    %v3052 = vcvt.s32.f32 %v2988
    %v3053 = vcvt.s32.f32 %v2989
    %v3054 = vcvt.s32.f32 %v2990
    %v3055 = vcvt.s32.f32 %v2991
    %v3056 = vcvt.s32.f32 %v2992
    %v3057 = vcvt.s32.f32 %v2993
    %v3058 = vcvt.s32.f32 %v2994
    %v3059 = vcvt.s32.f32 %v2995
    %v3060 = vcvt.s32.f32 %v2996
    %v3061 = vcvt.s32.f32 %v2997
    %v3062 = vcvt.s32.f32 %v2998
    %v3063 = vcvt.s32.f32 %v2999
    %v3064 = vcvt.s32.f32 %v3000
    %v3065 = vcvt.s32.f32 %v3001
    %v3066 = vcvt.s32.f32 %v3002
    %v3067 = vcvt.s32.f32 %v3003
    %v3068 = vcvt.s32.f32 %v3004
    %v3069 = vcvt.s32.f32 %v3005
    %v3070 = vcvt.s32.f32 %v3006
    %v3071 = vcvt.s32.f32 %v3007
    %v3072 = vcvt.s32.f32 %v3008
    %v3073 = vcvt.s32.f32 %v3009
    %v3074 = vcvt.s32.f32 %v3010
    %v3075 = vcvt.s32.f32 %v3011
    %v3076 = vcvt.s32.f32 %v3012
    %v3077 = vcvt.s32.f32 %v3013
    %v3078 = vcvt.s32.f32 %v3014
    %v3079 = vcvt.s32.f32 %v3015
    %v3080 = vcvt.s32.f32 %v3016
    %v3081 = vcvt.s32.f32 %v3017
    %v3082 = vcvt.s32.f32 %v3018
    %v3083 = vcvt.s32.f32 %v3019
    %v3084 = vcvt.s32.f32 %v3020
    %v3085 = vcvt.s32.f32 %v3021
    %v3086 = vcvt.s32.f32 %v3022
    %v3087 = vcvt.s32.f32 %v3023
    %v3088 = vcvt.s32.f32 %v3024
    %v3089 = vcvt.s32.f32 %v3025
    %v3090 = vcvt.s32.f32 %v3026
    %v3091 = vcvt.s32.f32 %v3027
    %v3092 = vcvt.s32.f32 %v3028
    %v3093 = vcvt.s32.f32 %v3029
    %v3094 = vcvt.s32.f32 %v3030
    %v3095 = vcvt.s32.f32 %v3031
    %v3096 = vcvt.s32.f32 %v3032
    %v3097 = vcvt.s32.f32 %v3033
    %v3098 = vcvt.s32.f32 %v3034
    %v3099 = vld [vmem:[%s35] sm:$0x3]
    %v3101 = vlaneseq
    %v3102 = vshrl.u32 %v3101, 7
    %v3103 = vsub.s32 0, %v3102
    %v3104 = vrot.slane %v3099, %v3103
    %v3105 = vlaneseq
    %v3106 = vshrl.u32 %v3105, 7
    %v3107 = vsub.s32 1, %v3106
    %v3108 = vrot.slane %v3099, %v3107
    %v3111 = vmul.f32 %v3035, %v3104
    %v3112 = vmul.f32 %v3036, %v3108
    %v3113 = vmul.f32 %v3037, %v3104
    %v3114 = vmul.f32 %v3038, %v3108
    %v3115 = vmul.f32 %v3039, %v3104
    %v3116 = vmul.f32 %v3040, %v3108
    %v3117 = vmul.f32 %v3041, %v3104
    %v3118 = vmul.f32 %v3042, %v3108
    %v3119 = vmul.f32 %v3043, %v3104
    %v3120 = vmul.f32 %v3044, %v3108
    %v3121 = vmul.f32 %v3045, %v3104
    %v3122 = vmul.f32 %v3046, %v3108
    %v3123 = vmul.f32 %v3047, %v3104
    %v3124 = vmul.f32 %v3048, %v3108
    %v3125 = vmul.f32 %v3049, %v3104
    %v3126 = vmul.f32 %v3050, %v3108
    %v3127 = vmul.f32 %v3051, %v3104
    %v3128 = vmul.f32 %v3052, %v3108
    %v3129 = vmul.f32 %v3053, %v3104
    %v3130 = vmul.f32 %v3054, %v3108
    %v3131 = vmul.f32 %v3055, %v3104
    %v3132 = vmul.f32 %v3056, %v3108
    %v3133 = vmul.f32 %v3057, %v3104
    %v3134 = vmul.f32 %v3058, %v3108
    %v3135 = vmul.f32 %v3059, %v3104
    %v3136 = vmul.f32 %v3060, %v3108
    %v3137 = vmul.f32 %v3061, %v3104
    %v3138 = vmul.f32 %v3062, %v3108
    %v3139 = vmul.f32 %v3063, %v3104
    %v3140 = vmul.f32 %v3064, %v3108
    %v3141 = vmul.f32 %v3065, %v3104
    %v3142 = vmul.f32 %v3066, %v3108
    %v3143 = vmul.f32 %v3067, %v3104
    %v3144 = vmul.f32 %v3068, %v3108
    %v3145 = vmul.f32 %v3069, %v3104
    %v3146 = vmul.f32 %v3070, %v3108
    %v3147 = vmul.f32 %v3071, %v3104
    %v3148 = vmul.f32 %v3072, %v3108
    %v3149 = vmul.f32 %v3073, %v3104
    %v3150 = vmul.f32 %v3074, %v3108
    %v3151 = vmul.f32 %v3075, %v3104
    %v3152 = vmul.f32 %v3076, %v3108
    %v3153 = vmul.f32 %v3077, %v3104
    %v3154 = vmul.f32 %v3078, %v3108
    %v3155 = vmul.f32 %v3079, %v3104
    %v3156 = vmul.f32 %v3080, %v3108
    %v3157 = vmul.f32 %v3081, %v3104
    %v3158 = vmul.f32 %v3082, %v3108
    %v3159 = vmul.f32 %v3083, %v3104
    %v3160 = vmul.f32 %v3084, %v3108
    %v3161 = vmul.f32 %v3085, %v3104
    %v3162 = vmul.f32 %v3086, %v3108
    %v3163 = vmul.f32 %v3087, %v3104
    %v3164 = vmul.f32 %v3088, %v3108
    %v3165 = vmul.f32 %v3089, %v3104
    %v3166 = vmul.f32 %v3090, %v3108
    %v3167 = vmul.f32 %v3091, %v3104
    %v3168 = vmul.f32 %v3092, %v3108
    %v3169 = vmul.f32 %v3093, %v3104
    %v3170 = vmul.f32 %v3094, %v3108
    %v3171 = vmul.f32 %v3095, %v3104
    %v3172 = vmul.f32 %v3096, %v3108
    %v3173 = vmul.f32 %v3097, %v3104
    %v3174 = vmul.f32 %v3098, %v3108
    %v3175 = vpack.c.bf16 %v3113, %v3111
    %v3176 = vpack.c.bf16 %v3114, %v3112
    %v3177 = vpack.c.bf16 %v3117, %v3115
    %v3178 = vpack.c.bf16 %v3118, %v3116
    %v3179 = vpack.c.bf16 %v3121, %v3119
    %v3180 = vpack.c.bf16 %v3122, %v3120
    %v3181 = vpack.c.bf16 %v3125, %v3123
    %v3182 = vpack.c.bf16 %v3126, %v3124
    %v3183 = vpack.c.bf16 %v3129, %v3127
    %v3184 = vpack.c.bf16 %v3130, %v3128
    %v3185 = vpack.c.bf16 %v3133, %v3131
    %v3186 = vpack.c.bf16 %v3134, %v3132
    %v3187 = vpack.c.bf16 %v3137, %v3135
    %v3188 = vpack.c.bf16 %v3138, %v3136
    %v3189 = vpack.c.bf16 %v3141, %v3139
    %v3190 = vpack.c.bf16 %v3142, %v3140
    %v3191 = vpack.c.bf16 %v3145, %v3143
    %v3192 = vpack.c.bf16 %v3146, %v3144
    %v3193 = vpack.c.bf16 %v3149, %v3147
    %v3194 = vpack.c.bf16 %v3150, %v3148
    %v3195 = vpack.c.bf16 %v3153, %v3151
    %v3196 = vpack.c.bf16 %v3154, %v3152
    %v3197 = vpack.c.bf16 %v3157, %v3155
    %v3198 = vpack.c.bf16 %v3158, %v3156
    %v3199 = vpack.c.bf16 %v3161, %v3159
    %v3200 = vpack.c.bf16 %v3162, %v3160
    %v3201 = vpack.c.bf16 %v3165, %v3163
    %v3202 = vpack.c.bf16 %v3166, %v3164
    %v3203 = vpack.c.bf16 %v3169, %v3167
    %v3204 = vpack.c.bf16 %v3170, %v3168
    %v3205 = vpack.c.bf16 %v3173, %v3171
    %v3206 = vpack.c.bf16 %v3174, %v3172
    %v3207 = vld [vmem:[%s55] sm:$0x3]
    %v3209 = vlaneseq
    %v3210 = vshrl.u32 %v3209, 7
    %v3211 = vsub.s32 0, %v3210
    %v3212 = vrot.slane %v3207, %v3211
    %v3213 = vlaneseq
    %v3214 = vshrl.u32 %v3213, 7
    %v3215 = vsub.s32 1, %v3214
    %v3216 = vrot.slane %v3207, %v3215
    %3219 = vmatprep.subr.bf16.mxu0 %v3176
    %3220 = vmatpush1.bf16.msra.mxu0 %v3175
    %3221 = vmatprep.subr.bf16.mxu0 %v3178
    %3222 = vmatpush1.bf16.msra.mxu0 %v3177
    %3223 = vmatprep.subr.bf16.mxu0 %v3180
    %3224 = vmatpush1.bf16.msra.mxu0 %v3179
    %3225 = vmatprep.subr.bf16.mxu0 %v3182
    %3226 = vmatpush1.bf16.msra.mxu0 %v3181
    %3227 = vmatprep.subr.bf16.mxu0 %v3184
    %3228 = vmatpush1.bf16.msra.mxu0 %v3183
    %3229 = vmatprep.subr.bf16.mxu0 %v3186
    %3230 = vmatpush1.bf16.msra.mxu0 %v3185
    %3231 = vmatprep.subr.bf16.mxu0 %v3188
    %3232 = vmatpush1.bf16.msra.mxu0 %v3187
    %3233 = vmatprep.subr.bf16.mxu0 %v3190
    %3234 = vmatpush1.bf16.msra.mxu0 %v3189
    %3235 = vmatprep.subr.bf16.mxu0 %v3192
    %3236 = vmatpush1.bf16.msra.mxu0 %v3191
    %3237 = vmatprep.subr.bf16.mxu0 %v3194
    %3238 = vmatpush1.bf16.msra.mxu0 %v3193
    %3239 = vmatprep.subr.bf16.mxu0 %v3196
    %3240 = vmatpush1.bf16.msra.mxu0 %v3195
    %3241 = vmatprep.subr.bf16.mxu0 %v3198
    %3242 = vmatpush1.bf16.msra.mxu0 %v3197
    %3243 = vmatprep.subr.bf16.mxu0 %v3200
    %3244 = vmatpush1.bf16.msra.mxu0 %v3199
    %3245 = vmatprep.subr.bf16.mxu0 %v3202
    %3246 = vmatpush1.bf16.msra.mxu0 %v3201
    %3247 = vmatprep.subr.bf16.mxu0 %v3204
    %3248 = vmatpush1.bf16.msra.mxu0 %v3203
    %3249 = vmatprep.subr.bf16.mxu0 %v3206
    %3250 = vmatpush1.bf16.msra.mxu0 %v3205
    %3251 = vmatprep.mubr.bf16.mxu0 %v2954
    %3252 = vmatmul.mubr.bf16.gmra.mrb[0].mxu0 %v2953
    %v3253 = vpop.f32.mrb[0].mxu0
    %v3254 = vadd.f32 %v3212, %v3253
    %v3255 = vpop.f32.mrb[0].mxu0
    %v3256 = vadd.f32 %v3216, %v3255
    %v3257 = vpop.f32.mrb[0].mxu0
    %v3258 = vpop.f32.mrb[0].mxu0
    %3259 = vdwg.mxu0
    %v3260 = vmax.f32 %v3254, 0.0
    %v3261 = vmax.f32 %v3256, 0.0
    %v3262 = vpack.c.bf16 %v3260, %v3260
    %v3263 = vpack.c.bf16 %v3261, %v3261
    %v3264 = vld [vmem:[#allocation13] sm:$0xff]
    %v3265 = vld [vmem:[#allocation13 + $0x8] sm:$0xff]
    %v3266 = vld [vmem:[#allocation13 + $0x10] sm:$0xff]
    %v3267 = vld [vmem:[#allocation13 + $0x18] sm:$0xff]
    %v3268 = vld [vmem:[#allocation13 + $0x20] sm:$0xff]
    %v3269 = vld [vmem:[#allocation13 + $0x28] sm:$0xff]
    %v3270 = vld [vmem:[#allocation13 + $0x30] sm:$0xff]
    %v3271 = vld [vmem:[#allocation13 + $0x38] sm:$0xff]
    %v3272 = vld [vmem:[#allocation13 + $0x40] sm:$0xff]
    %v3273 = vld [vmem:[#allocation13 + $0x48] sm:$0xff]
    %v3274 = vld [vmem:[#allocation13 + $0x50] sm:$0xff]
    %v3275 = vld [vmem:[#allocation13 + $0x58] sm:$0xff]
    %v3276 = vld [vmem:[#allocation13 + $0x60] sm:$0xff]
    %v3277 = vld [vmem:[#allocation13 + $0x68] sm:$0xff]
    %v3278 = vld [vmem:[#allocation13 + $0x70] sm:$0xff]
    %v3279 = vld [vmem:[#allocation13 + $0x78] sm:$0xff]
    %v3280 = vld [vmem:[#allocation13 + $0x80] sm:$0xff]
    %v3281 = vld [vmem:[#allocation13 + $0x88] sm:$0xff]
    %v3282 = vld [vmem:[#allocation13 + $0x90] sm:$0xff]
    %v3283 = vld [vmem:[#allocation13 + $0x98] sm:$0xff]
    %v3284 = vld [vmem:[#allocation13 + $0xa0] sm:$0xff]
    %v3285 = vld [vmem:[#allocation13 + $0xa8] sm:$0xff]
    %v3286 = vld [vmem:[#allocation13 + $0xb0] sm:$0xff]
    %v3287 = vld [vmem:[#allocation13 + $0xb8] sm:$0xff]
    %v3288 = vunpack.c.0.s8 %v3264
    %v3289 = vunpack.c.0.s8 %v3265
    %v3290 = vunpack.c.0.s8 %v3266
    %v3291 = vunpack.c.1.s8 %v3264
    %v3292 = vunpack.c.1.s8 %v3265
    %v3293 = vunpack.c.1.s8 %v3266
    %v3294 = vunpack.c.2.s8 %v3264
    %v3295 = vunpack.c.2.s8 %v3265
    %v3296 = vunpack.c.2.s8 %v3266
    %v3297 = vunpack.c.3.s8 %v3264
    %v3298 = vunpack.c.3.s8 %v3265
    %v3299 = vunpack.c.3.s8 %v3266
    %v3300 = vunpack.c.0.s8 %v3267
    %v3301 = vunpack.c.0.s8 %v3268
    %v3302 = vunpack.c.0.s8 %v3269
    %v3303 = vunpack.c.1.s8 %v3267
    %v3304 = vunpack.c.1.s8 %v3268
    %v3305 = vunpack.c.1.s8 %v3269
    %v3306 = vunpack.c.2.s8 %v3267
    %v3307 = vunpack.c.2.s8 %v3268
    %v3308 = vunpack.c.2.s8 %v3269
    %v3309 = vunpack.c.3.s8 %v3267
    %v3310 = vunpack.c.3.s8 %v3268
    %v3311 = vunpack.c.3.s8 %v3269
    %v3312 = vunpack.c.0.s8 %v3270
    %v3313 = vunpack.c.0.s8 %v3271
    %v3314 = vunpack.c.0.s8 %v3272
    %v3315 = vunpack.c.1.s8 %v3270
    %v3316 = vunpack.c.1.s8 %v3271
    %v3317 = vunpack.c.1.s8 %v3272
    %v3318 = vunpack.c.2.s8 %v3270
    %v3319 = vunpack.c.2.s8 %v3271
    %v3320 = vunpack.c.2.s8 %v3272
    %v3321 = vunpack.c.3.s8 %v3270
    %v3322 = vunpack.c.3.s8 %v3271
    %v3323 = vunpack.c.3.s8 %v3272
    %v3324 = vunpack.c.0.s8 %v3273
    %v3325 = vunpack.c.0.s8 %v3274
    %v3326 = vunpack.c.0.s8 %v3275
    %v3327 = vunpack.c.1.s8 %v3273
    %v3328 = vunpack.c.1.s8 %v3274
    %v3329 = vunpack.c.1.s8 %v3275
    %v3330 = vunpack.c.2.s8 %v3273
    %v3331 = vunpack.c.2.s8 %v3274
    %v3332 = vunpack.c.2.s8 %v3275
    %v3333 = vunpack.c.3.s8 %v3273
    %v3334 = vunpack.c.3.s8 %v3274
    %v3335 = vunpack.c.3.s8 %v3275
    %v3336 = vunpack.c.0.s8 %v3276
    %v3337 = vunpack.c.0.s8 %v3277
    %v3338 = vunpack.c.0.s8 %v3278
    %v3339 = vunpack.c.1.s8 %v3276
    %v3340 = vunpack.c.1.s8 %v3277
    %v3341 = vunpack.c.1.s8 %v3278
    %v3342 = vunpack.c.2.s8 %v3276
    %v3343 = vunpack.c.2.s8 %v3277
    %v3344 = vunpack.c.2.s8 %v3278
    %v3345 = vunpack.c.3.s8 %v3276
    %v3346 = vunpack.c.3.s8 %v3277
    %v3347 = vunpack.c.3.s8 %v3278
    %v3348 = vunpack.c.0.s8 %v3279
    %v3349 = vunpack.c.0.s8 %v3280
    %v3350 = vunpack.c.0.s8 %v3281
    %v3351 = vunpack.c.1.s8 %v3279
    %v3352 = vunpack.c.1.s8 %v3280
    %v3353 = vunpack.c.1.s8 %v3281
    %v3354 = vunpack.c.2.s8 %v3279
    %v3355 = vunpack.c.2.s8 %v3280
    %v3356 = vunpack.c.2.s8 %v3281
    %v3357 = vunpack.c.3.s8 %v3279
    %v3358 = vunpack.c.3.s8 %v3280
    %v3359 = vunpack.c.3.s8 %v3281
    %v3360 = vunpack.c.0.s8 %v3282
    %v3361 = vunpack.c.0.s8 %v3283
    %v3362 = vunpack.c.0.s8 %v3284
    %v3363 = vunpack.c.1.s8 %v3282
    %v3364 = vunpack.c.1.s8 %v3283
    %v3365 = vunpack.c.1.s8 %v3284
    %v3366 = vunpack.c.2.s8 %v3282
    %v3367 = vunpack.c.2.s8 %v3283
    %v3368 = vunpack.c.2.s8 %v3284
    %v3369 = vunpack.c.3.s8 %v3282
    %v3370 = vunpack.c.3.s8 %v3283
    %v3371 = vunpack.c.3.s8 %v3284
    %v3372 = vunpack.c.0.s8 %v3285
    %v3373 = vunpack.c.0.s8 %v3286
    %v3374 = vunpack.c.0.s8 %v3287
    %v3375 = vunpack.c.1.s8 %v3285
    %v3376 = vunpack.c.1.s8 %v3286
    %v3377 = vunpack.c.1.s8 %v3287
    %v3378 = vunpack.c.2.s8 %v3285
    %v3379 = vunpack.c.2.s8 %v3286
    %v3380 = vunpack.c.2.s8 %v3287
    %v3381 = vunpack.c.3.s8 %v3285
    %v3382 = vunpack.c.3.s8 %v3286
    %v3383 = vunpack.c.3.s8 %v3287
    %v3384 = vcvt.s32.f32 %v3288
    %v3385 = vcvt.s32.f32 %v3289
    %v3386 = vcvt.s32.f32 %v3290
    %v3387 = vcvt.s32.f32 %v3291
    %v3388 = vcvt.s32.f32 %v3292
    %v3389 = vcvt.s32.f32 %v3293
    %v3390 = vcvt.s32.f32 %v3294
    %v3391 = vcvt.s32.f32 %v3295
    %v3392 = vcvt.s32.f32 %v3296
    %v3393 = vcvt.s32.f32 %v3297
    %v3394 = vcvt.s32.f32 %v3298
    %v3395 = vcvt.s32.f32 %v3299
    %v3396 = vcvt.s32.f32 %v3300
    %v3397 = vcvt.s32.f32 %v3301
    %v3398 = vcvt.s32.f32 %v3302
    %v3399 = vcvt.s32.f32 %v3303
    %v3400 = vcvt.s32.f32 %v3304
    %v3401 = vcvt.s32.f32 %v3305
    %v3402 = vcvt.s32.f32 %v3306
    %v3403 = vcvt.s32.f32 %v3307
    %v3404 = vcvt.s32.f32 %v3308
    %v3405 = vcvt.s32.f32 %v3309
    %v3406 = vcvt.s32.f32 %v3310
    %v3407 = vcvt.s32.f32 %v3311
    %v3408 = vcvt.s32.f32 %v3312
    %v3409 = vcvt.s32.f32 %v3313
    %v3410 = vcvt.s32.f32 %v3314
    %v3411 = vcvt.s32.f32 %v3315
    %v3412 = vcvt.s32.f32 %v3316
    %v3413 = vcvt.s32.f32 %v3317
    %v3414 = vcvt.s32.f32 %v3318
    %v3415 = vcvt.s32.f32 %v3319
    %v3416 = vcvt.s32.f32 %v3320
    %v3417 = vcvt.s32.f32 %v3321
    %v3418 = vcvt.s32.f32 %v3322
    %v3419 = vcvt.s32.f32 %v3323
    %v3420 = vcvt.s32.f32 %v3324
    %v3421 = vcvt.s32.f32 %v3325
    %v3422 = vcvt.s32.f32 %v3326
    %v3423 = vcvt.s32.f32 %v3327
    %v3424 = vcvt.s32.f32 %v3328
    %v3425 = vcvt.s32.f32 %v3329
    %v3426 = vcvt.s32.f32 %v3330
    %v3427 = vcvt.s32.f32 %v3331
    %v3428 = vcvt.s32.f32 %v3332
    %v3429 = vcvt.s32.f32 %v3333
    %v3430 = vcvt.s32.f32 %v3334
    %v3431 = vcvt.s32.f32 %v3335
    %v3432 = vcvt.s32.f32 %v3336
    %v3433 = vcvt.s32.f32 %v3337
    %v3434 = vcvt.s32.f32 %v3338
    %v3435 = vcvt.s32.f32 %v3339
    %v3436 = vcvt.s32.f32 %v3340
    %v3437 = vcvt.s32.f32 %v3341
    %v3438 = vcvt.s32.f32 %v3342
    %v3439 = vcvt.s32.f32 %v3343
    %v3440 = vcvt.s32.f32 %v3344
    %v3441 = vcvt.s32.f32 %v3345
    %v3442 = vcvt.s32.f32 %v3346
    %v3443 = vcvt.s32.f32 %v3347
    %v3444 = vcvt.s32.f32 %v3348
    %v3445 = vcvt.s32.f32 %v3349
    %v3446 = vcvt.s32.f32 %v3350
    %v3447 = vcvt.s32.f32 %v3351
    %v3448 = vcvt.s32.f32 %v3352
    %v3449 = vcvt.s32.f32 %v3353
    %v3450 = vcvt.s32.f32 %v3354
    %v3451 = vcvt.s32.f32 %v3355
    %v3452 = vcvt.s32.f32 %v3356
    %v3453 = vcvt.s32.f32 %v3357
    %v3454 = vcvt.s32.f32 %v3358
    %v3455 = vcvt.s32.f32 %v3359
    %v3456 = vcvt.s32.f32 %v3360
    %v3457 = vcvt.s32.f32 %v3361
    %v3458 = vcvt.s32.f32 %v3362
    %v3459 = vcvt.s32.f32 %v3363
    %v3460 = vcvt.s32.f32 %v3364
    %v3461 = vcvt.s32.f32 %v3365
    %v3462 = vcvt.s32.f32 %v3366
    %v3463 = vcvt.s32.f32 %v3367
    %v3464 = vcvt.s32.f32 %v3368
    %v3465 = vcvt.s32.f32 %v3369
    %v3466 = vcvt.s32.f32 %v3370
    %v3467 = vcvt.s32.f32 %v3371
    %v3468 = vcvt.s32.f32 %v3372
    %v3469 = vcvt.s32.f32 %v3373
    %v3470 = vcvt.s32.f32 %v3374
    %v3471 = vcvt.s32.f32 %v3375
    %v3472 = vcvt.s32.f32 %v3376
    %v3473 = vcvt.s32.f32 %v3377
    %v3474 = vcvt.s32.f32 %v3378
    %v3475 = vcvt.s32.f32 %v3379
    %v3476 = vcvt.s32.f32 %v3380
    %v3477 = vcvt.s32.f32 %v3381
    %v3478 = vcvt.s32.f32 %v3382
    %v3479 = vcvt.s32.f32 %v3383
    %v3480 = vld [vmem:[%s37] sm:$0x7]
    %v3482 = vlaneseq
    %v3483 = vshrl.u32 %v3482, 7
    %v3484 = vsub.s32 0, %v3483
    %v3485 = vrot.slane %v3480, %v3484
    %v3486 = vlaneseq
    %v3487 = vshrl.u32 %v3486, 7
    %v3488 = vsub.s32 1, %v3487
    %v3489 = vrot.slane %v3480, %v3488
    %v3490 = vlaneseq
    %v3491 = vshrl.u32 %v3490, 7
    %v3492 = vsub.s32 2, %v3491
    %v3493 = vrot.slane %v3480, %v3492
    %v3497 = vmul.f32 %v3384, %v3485
    %v3498 = vmul.f32 %v3385, %v3489
    %v3499 = vmul.f32 %v3386, %v3493
    %v3500 = vmul.f32 %v3387, %v3485
    %v3501 = vmul.f32 %v3388, %v3489
    %v3502 = vmul.f32 %v3389, %v3493
    %v3503 = vmul.f32 %v3390, %v3485
    %v3504 = vmul.f32 %v3391, %v3489
    %v3505 = vmul.f32 %v3392, %v3493
    %v3506 = vmul.f32 %v3393, %v3485
    %v3507 = vmul.f32 %v3394, %v3489
    %v3508 = vmul.f32 %v3395, %v3493
    %v3509 = vmul.f32 %v3396, %v3485
    %v3510 = vmul.f32 %v3397, %v3489
    %v3511 = vmul.f32 %v3398, %v3493
    %v3512 = vmul.f32 %v3399, %v3485
    %v3513 = vmul.f32 %v3400, %v3489
    %v3514 = vmul.f32 %v3401, %v3493
    %v3515 = vmul.f32 %v3402, %v3485
    %v3516 = vmul.f32 %v3403, %v3489
    %v3517 = vmul.f32 %v3404, %v3493
    %v3518 = vmul.f32 %v3405, %v3485
    %v3519 = vmul.f32 %v3406, %v3489
    %v3520 = vmul.f32 %v3407, %v3493
    %v3521 = vmul.f32 %v3408, %v3485
    %v3522 = vmul.f32 %v3409, %v3489
    %v3523 = vmul.f32 %v3410, %v3493
    %v3524 = vmul.f32 %v3411, %v3485
    %v3525 = vmul.f32 %v3412, %v3489
    %v3526 = vmul.f32 %v3413, %v3493
    %v3527 = vmul.f32 %v3414, %v3485
    %v3528 = vmul.f32 %v3415, %v3489
    %v3529 = vmul.f32 %v3416, %v3493
    %v3530 = vmul.f32 %v3417, %v3485
    %v3531 = vmul.f32 %v3418, %v3489
    %v3532 = vmul.f32 %v3419, %v3493
    %v3533 = vmul.f32 %v3420, %v3485
    %v3534 = vmul.f32 %v3421, %v3489
    %v3535 = vmul.f32 %v3422, %v3493
    %v3536 = vmul.f32 %v3423, %v3485
    %v3537 = vmul.f32 %v3424, %v3489
    %v3538 = vmul.f32 %v3425, %v3493
    %v3539 = vmul.f32 %v3426, %v3485
    %v3540 = vmul.f32 %v3427, %v3489
    %v3541 = vmul.f32 %v3428, %v3493
    %v3542 = vmul.f32 %v3429, %v3485
    %v3543 = vmul.f32 %v3430, %v3489
    %v3544 = vmul.f32 %v3431, %v3493
    %v3545 = vmul.f32 %v3432, %v3485
    %v3546 = vmul.f32 %v3433, %v3489
    %v3547 = vmul.f32 %v3434, %v3493
    %v3548 = vmul.f32 %v3435, %v3485
    %v3549 = vmul.f32 %v3436, %v3489
    %v3550 = vmul.f32 %v3437, %v3493
    %v3551 = vmul.f32 %v3438, %v3485
    %v3552 = vmul.f32 %v3439, %v3489
    %v3553 = vmul.f32 %v3440, %v3493
    %v3554 = vmul.f32 %v3441, %v3485
    %v3555 = vmul.f32 %v3442, %v3489
    %v3556 = vmul.f32 %v3443, %v3493
    %v3557 = vmul.f32 %v3444, %v3485
    %v3558 = vmul.f32 %v3445, %v3489
    %v3559 = vmul.f32 %v3446, %v3493
    %v3560 = vmul.f32 %v3447, %v3485
    %v3561 = vmul.f32 %v3448, %v3489
    %v3562 = vmul.f32 %v3449, %v3493
    %v3563 = vmul.f32 %v3450, %v3485
    %v3564 = vmul.f32 %v3451, %v3489
    %v3565 = vmul.f32 %v3452, %v3493
    %v3566 = vmul.f32 %v3453, %v3485
    %v3567 = vmul.f32 %v3454, %v3489
    %v3568 = vmul.f32 %v3455, %v3493
    %v3569 = vmul.f32 %v3456, %v3485
    %v3570 = vmul.f32 %v3457, %v3489
    %v3571 = vmul.f32 %v3458, %v3493
    %v3572 = vmul.f32 %v3459, %v3485
    %v3573 = vmul.f32 %v3460, %v3489
    %v3574 = vmul.f32 %v3461, %v3493
    %v3575 = vmul.f32 %v3462, %v3485
    %v3576 = vmul.f32 %v3463, %v3489
    %v3577 = vmul.f32 %v3464, %v3493
    %v3578 = vmul.f32 %v3465, %v3485
    %v3579 = vmul.f32 %v3466, %v3489
    %v3580 = vmul.f32 %v3467, %v3493
    %v3581 = vmul.f32 %v3468, %v3485
    %v3582 = vmul.f32 %v3469, %v3489
    %v3583 = vmul.f32 %v3470, %v3493
    %v3584 = vmul.f32 %v3471, %v3485
    %v3585 = vmul.f32 %v3472, %v3489
    %v3586 = vmul.f32 %v3473, %v3493
    %v3587 = vmul.f32 %v3474, %v3485
    %v3588 = vmul.f32 %v3475, %v3489
    %v3589 = vmul.f32 %v3476, %v3493
    %v3590 = vmul.f32 %v3477, %v3485
    %v3591 = vmul.f32 %v3478, %v3489
    %v3592 = vmul.f32 %v3479, %v3493
    %v3593 = vpack.c.bf16 %v3500, %v3497
    %v3594 = vpack.c.bf16 %v3501, %v3498
    %v3595 = vpack.c.bf16 %v3502, %v3499
    %v3596 = vpack.c.bf16 %v3506, %v3503
    %v3597 = vpack.c.bf16 %v3507, %v3504
    %v3598 = vpack.c.bf16 %v3508, %v3505
    %v3599 = vpack.c.bf16 %v3512, %v3509
    %v3600 = vpack.c.bf16 %v3513, %v3510
    %v3601 = vpack.c.bf16 %v3514, %v3511
    %v3602 = vpack.c.bf16 %v3518, %v3515
    %v3603 = vpack.c.bf16 %v3519, %v3516
    %v3604 = vpack.c.bf16 %v3520, %v3517
    %v3605 = vpack.c.bf16 %v3524, %v3521
    %v3606 = vpack.c.bf16 %v3525, %v3522
    %v3607 = vpack.c.bf16 %v3526, %v3523
    %v3608 = vpack.c.bf16 %v3530, %v3527
    %v3609 = vpack.c.bf16 %v3531, %v3528
    %v3610 = vpack.c.bf16 %v3532, %v3529
    %v3611 = vpack.c.bf16 %v3536, %v3533
    %v3612 = vpack.c.bf16 %v3537, %v3534
    %v3613 = vpack.c.bf16 %v3538, %v3535
    %v3614 = vpack.c.bf16 %v3542, %v3539
    %v3615 = vpack.c.bf16 %v3543, %v3540
    %v3616 = vpack.c.bf16 %v3544, %v3541
    %v3617 = vpack.c.bf16 %v3548, %v3545
    %v3618 = vpack.c.bf16 %v3549, %v3546
    %v3619 = vpack.c.bf16 %v3550, %v3547
    %v3620 = vpack.c.bf16 %v3554, %v3551
    %v3621 = vpack.c.bf16 %v3555, %v3552
    %v3622 = vpack.c.bf16 %v3556, %v3553
    %v3623 = vpack.c.bf16 %v3560, %v3557
    %v3624 = vpack.c.bf16 %v3561, %v3558
    %v3625 = vpack.c.bf16 %v3562, %v3559
    %v3626 = vpack.c.bf16 %v3566, %v3563
    %v3627 = vpack.c.bf16 %v3567, %v3564
    %v3628 = vpack.c.bf16 %v3568, %v3565
    %v3629 = vpack.c.bf16 %v3572, %v3569
    %v3630 = vpack.c.bf16 %v3573, %v3570
    %v3631 = vpack.c.bf16 %v3574, %v3571
    %v3632 = vpack.c.bf16 %v3578, %v3575
    %v3633 = vpack.c.bf16 %v3579, %v3576
    %v3634 = vpack.c.bf16 %v3580, %v3577
    %v3635 = vpack.c.bf16 %v3584, %v3581
    %v3636 = vpack.c.bf16 %v3585, %v3582
    %v3637 = vpack.c.bf16 %v3586, %v3583
    %v3638 = vpack.c.bf16 %v3590, %v3587
    %v3639 = vpack.c.bf16 %v3591, %v3588
    %v3640 = vpack.c.bf16 %v3592, %v3589
    %v3641 = vld [vmem:[%s57] sm:$0x7]
    %v3643 = vlaneseq
    %v3644 = vshrl.u32 %v3643, 7
    %v3645 = vsub.s32 0, %v3644
    %v3646 = vrot.slane %v3641, %v3645
    %v3647 = vlaneseq
    %v3648 = vshrl.u32 %v3647, 7
    %v3649 = vsub.s32 1, %v3648
    %v3650 = vrot.slane %v3641, %v3649
    %v3651 = vlaneseq
    %v3652 = vshrl.u32 %v3651, 7
    %v3653 = vsub.s32 2, %v3652
    %v3654 = vrot.slane %v3641, %v3653
    %3658 = vmatprep.subr.bf16.mxu0 %v3594
    %3659 = vmatpush1.bf16.msra.mxu0 %v3593
    %3660 = vmatprep.subr.bf16.mxu0 %v3597
    %3661 = vmatpush1.bf16.msra.mxu0 %v3596
    %3662 = vmatprep.subr.bf16.mxu0 %v3600
    %3663 = vmatpush1.bf16.msra.mxu0 %v3599
    %3664 = vmatprep.subr.bf16.mxu0 %v3603
    %3665 = vmatpush1.bf16.msra.mxu0 %v3602
    %3666 = vmatprep.subr.bf16.mxu0 %v3606
    %3667 = vmatpush1.bf16.msra.mxu0 %v3605
    %3668 = vmatprep.subr.bf16.mxu0 %v3609
    %3669 = vmatpush1.bf16.msra.mxu0 %v3608
    %3670 = vmatprep.subr.bf16.mxu0 %v3612
    %3671 = vmatpush1.bf16.msra.mxu0 %v3611
    %3672 = vmatprep.subr.bf16.mxu0 %v3615
    %3673 = vmatpush1.bf16.msra.mxu0 %v3614
    %3674 = vmatprep.subr.bf16.mxu0 %v3618
    %3675 = vmatpush1.bf16.msra.mxu0 %v3617
    %3676 = vmatprep.subr.bf16.mxu0 %v3621
    %3677 = vmatpush1.bf16.msra.mxu0 %v3620
    %3678 = vmatprep.subr.bf16.mxu0 %v3624
    %3679 = vmatpush1.bf16.msra.mxu0 %v3623
    %3680 = vmatprep.subr.bf16.mxu0 %v3627
    %3681 = vmatpush1.bf16.msra.mxu0 %v3626
    %3682 = vmatprep.subr.bf16.mxu0 %v3630
    %3683 = vmatpush1.bf16.msra.mxu0 %v3629
    %3684 = vmatprep.subr.bf16.mxu0 %v3633
    %3685 = vmatpush1.bf16.msra.mxu0 %v3632
    %3686 = vmatprep.subr.bf16.mxu0 %v3636
    %3687 = vmatpush1.bf16.msra.mxu0 %v3635
    %3688 = vmatprep.subr.bf16.mxu0 %v3639
    %3689 = vmatpush1.bf16.msra.mxu0 %v3638
    %3690 = vmatprep.mubr.bf16.mxu0 %v3263
    %3691 = vmatmul.mubr.bf16.gmra.mrb[0].mxu0 %v3262
    %v3692 = vpop.f32.mrb[0].mxu0
    %v3693 = vadd.f32 %v3646, %v3692
    %v3694 = vpop.f32.mrb[0].mxu0
    %v3695 = vadd.f32 %v3650, %v3694
    %v3696 = vpop.f32.mrb[0].mxu0
    %v3697 = vpop.f32.mrb[0].mxu0
    %3698 = vdwg.mxu0
    %3699 = vmatprep.subr.bf16.mxu0 0
    %3700 = vmatpush1.bf16.msra.mxu0 %v3595
    %3701 = vmatprep.subr.bf16.mxu0 0
    %3702 = vmatpush1.bf16.msra.mxu0 %v3598
    %3703 = vmatprep.subr.bf16.mxu0 0
    %3704 = vmatpush1.bf16.msra.mxu0 %v3601
    %3705 = vmatprep.subr.bf16.mxu0 0
    %3706 = vmatpush1.bf16.msra.mxu0 %v3604
    %3707 = vmatprep.subr.bf16.mxu0 0
    %3708 = vmatpush1.bf16.msra.mxu0 %v3607
    %3709 = vmatprep.subr.bf16.mxu0 0
    %3710 = vmatpush1.bf16.msra.mxu0 %v3610
    %3711 = vmatprep.subr.bf16.mxu0 0
    %3712 = vmatpush1.bf16.msra.mxu0 %v3613
    %3713 = vmatprep.subr.bf16.mxu0 0
    %3714 = vmatpush1.bf16.msra.mxu0 %v3616
    %3715 = vmatprep.subr.bf16.mxu0 0
    %3716 = vmatpush1.bf16.msra.mxu0 %v3619
    %3717 = vmatprep.subr.bf16.mxu0 0
    %3718 = vmatpush1.bf16.msra.mxu0 %v3622
    %3719 = vmatprep.subr.bf16.mxu0 0
    %3720 = vmatpush1.bf16.msra.mxu0 %v3625
    %3721 = vmatprep.subr.bf16.mxu0 0
    %3722 = vmatpush1.bf16.msra.mxu0 %v3628
    %3723 = vmatprep.subr.bf16.mxu0 0
    %3724 = vmatpush1.bf16.msra.mxu0 %v3631
    %3725 = vmatprep.subr.bf16.mxu0 0
    %3726 = vmatpush1.bf16.msra.mxu0 %v3634
    %3727 = vmatprep.subr.bf16.mxu0 0
    %3728 = vmatpush1.bf16.msra.mxu0 %v3637
    %3729 = vmatprep.subr.bf16.mxu0 0
    %3730 = vmatpush1.bf16.msra.mxu0 %v3640
    %3731 = vmatprep.mubr.bf16.mxu0 %v3263
    %3732 = vmatmul.mubr.bf16.gmra.mrb[0].mxu0 %v3262
    %v3733 = vpop.f32.mrb[0].mxu0
    %v3734 = vadd.f32 %v3654, %v3733
    %v3735 = vpop.f32.mrb[0].mxu0
    %v3736 = vpop.f32.mrb[0].mxu0
    %v3737 = vpop.f32.mrb[0].mxu0
    %3738 = vdwg.mxu0
    %v3739 = vmax.f32 %v3693, 0.0
    %v3740 = vmax.f32 %v3695, 0.0
    %v3741 = vmax.f32 %v3734, 0.0
    %v3742 = vpack.c.bf16 %v3739, %v3739
    %v3743 = vpack.c.bf16 %v3740, %v3740
    %v3744 = vpack.c.bf16 %v3741, %v3741
    %v3745 = vld [vmem:[#allocation15] sm:$0xff]
    %v3746 = vld [vmem:[#allocation15 + $0x8] sm:$0xff]
    %v3747 = vld [vmem:[#allocation15 + $0x10] sm:$0xff]
    %v3748 = vld [vmem:[#allocation15 + $0x18] sm:$0xff]
    %v3749 = vld [vmem:[#allocation15 + $0x20] sm:$0xff]
    %v3750 = vld [vmem:[#allocation15 + $0x28] sm:$0xff]
    %v3751 = vld [vmem:[#allocation15 + $0x30] sm:$0xff]
    %v3752 = vld [vmem:[#allocation15 + $0x38] sm:$0xff]
    %v3753 = vld [vmem:[#allocation15 + $0x40] sm:$0xff]
    %v3754 = vld [vmem:[#allocation15 + $0x48] sm:$0xff]
    %v3755 = vld [vmem:[#allocation15 + $0x50] sm:$0xff]
    %v3756 = vld [vmem:[#allocation15 + $0x58] sm:$0xff]
    %v3757 = vld [vmem:[#allocation15 + $0x60] sm:$0xff]
    %v3758 = vld [vmem:[#allocation15 + $0x68] sm:$0xff]
    %v3759 = vld [vmem:[#allocation15 + $0x70] sm:$0xff]
    %v3760 = vld [vmem:[#allocation15 + $0x78] sm:$0xff]
    %v3761 = vld [vmem:[#allocation15 + $0x80] sm:$0xff]
    %v3762 = vld [vmem:[#allocation15 + $0x88] sm:$0xff]
    %v3763 = vld [vmem:[#allocation15 + $0x90] sm:$0xff]
    %v3764 = vld [vmem:[#allocation15 + $0x98] sm:$0xff]
    %v3765 = vld [vmem:[#allocation15 + $0xa0] sm:$0xff]
    %v3766 = vld [vmem:[#allocation15 + $0xa8] sm:$0xff]
    %v3767 = vld [vmem:[#allocation15 + $0xb0] sm:$0xff]
    %v3768 = vld [vmem:[#allocation15 + $0xb8] sm:$0xff]
    %v3769 = vld [vmem:[#allocation15 + $0xc0] sm:$0xff]
    %v3770 = vld [vmem:[#allocation15 + $0xc8] sm:$0xff]
    %v3771 = vld [vmem:[#allocation15 + $0xd0] sm:$0xff]
    %v3772 = vld [vmem:[#allocation15 + $0xd8] sm:$0xff]
    %v3773 = vld [vmem:[#allocation15 + $0xe0] sm:$0xff]
    %v3774 = vld [vmem:[#allocation15 + $0xe8] sm:$0xff]
    %v3775 = vld [vmem:[#allocation15 + $0xf0] sm:$0xff]
    %v3776 = vld [vmem:[#allocation15 + $0xf8] sm:$0xff]
    %v3777 = vld [vmem:[#allocation15 + $0x100] sm:$0xff]
    %v3778 = vld [vmem:[#allocation15 + $0x108] sm:$0xff]
    %v3779 = vld [vmem:[#allocation15 + $0x110] sm:$0xff]
    %v3780 = vld [vmem:[#allocation15 + $0x118] sm:$0xff]
    %v3781 = vld [vmem:[#allocation15 + $0x120] sm:$0xff]
    %v3782 = vld [vmem:[#allocation15 + $0x128] sm:$0xff]
    %v3783 = vld [vmem:[#allocation15 + $0x130] sm:$0xff]
    %v3784 = vld [vmem:[#allocation15 + $0x138] sm:$0xff]
    %v3785 = vld [vmem:[#allocation15 + $0x140] sm:$0xff]
    %v3786 = vld [vmem:[#allocation15 + $0x148] sm:$0xff]
    %v3787 = vld [vmem:[#allocation15 + $0x150] sm:$0xff]
    %v3788 = vld [vmem:[#allocation15 + $0x158] sm:$0xff]
    %v3789 = vld [vmem:[#allocation15 + $0x160] sm:$0xff]
    %v3790 = vld [vmem:[#allocation15 + $0x168] sm:$0xff]
    %v3791 = vld [vmem:[#allocation15 + $0x170] sm:$0xff]
    %v3792 = vld [vmem:[#allocation15 + $0x178] sm:$0xff]
    %v3793 = vunpack.c.0.s8 %v3745
    %v3794 = vunpack.c.0.s8 %v3746
    %v3795 = vunpack.c.0.s8 %v3747
    %v3796 = vunpack.c.0.s8 %v3748
    %v3797 = vunpack.c.1.s8 %v3745
    %v3798 = vunpack.c.1.s8 %v3746
    %v3799 = vunpack.c.1.s8 %v3747
    %v3800 = vunpack.c.1.s8 %v3748
    %v3801 = vunpack.c.2.s8 %v3745
    %v3802 = vunpack.c.2.s8 %v3746
    %v3803 = vunpack.c.2.s8 %v3747
    %v3804 = vunpack.c.2.s8 %v3748
    %v3805 = vunpack.c.3.s8 %v3745
    %v3806 = vunpack.c.3.s8 %v3746
    %v3807 = vunpack.c.3.s8 %v3747
    %v3808 = vunpack.c.3.s8 %v3748
    %v3809 = vunpack.c.0.s8 %v3749
    %v3810 = vunpack.c.0.s8 %v3750
    %v3811 = vunpack.c.0.s8 %v3751
    %v3812 = vunpack.c.0.s8 %v3752
    %v3813 = vunpack.c.1.s8 %v3749
    %v3814 = vunpack.c.1.s8 %v3750
    %v3815 = vunpack.c.1.s8 %v3751
    %v3816 = vunpack.c.1.s8 %v3752
    %v3817 = vunpack.c.2.s8 %v3749
    %v3818 = vunpack.c.2.s8 %v3750
    %v3819 = vunpack.c.2.s8 %v3751
    %v3820 = vunpack.c.2.s8 %v3752
    %v3821 = vunpack.c.3.s8 %v3749
    %v3822 = vunpack.c.3.s8 %v3750
    %v3823 = vunpack.c.3.s8 %v3751
    %v3824 = vunpack.c.3.s8 %v3752
    %v3825 = vunpack.c.0.s8 %v3753
    %v3826 = vunpack.c.0.s8 %v3754
    %v3827 = vunpack.c.0.s8 %v3755
    %v3828 = vunpack.c.0.s8 %v3756
    %v3829 = vunpack.c.1.s8 %v3753
    %v3830 = vunpack.c.1.s8 %v3754
    %v3831 = vunpack.c.1.s8 %v3755
    %v3832 = vunpack.c.1.s8 %v3756
    %v3833 = vunpack.c.2.s8 %v3753
    %v3834 = vunpack.c.2.s8 %v3754
    %v3835 = vunpack.c.2.s8 %v3755
    %v3836 = vunpack.c.2.s8 %v3756
    %v3837 = vunpack.c.3.s8 %v3753
    %v3838 = vunpack.c.3.s8 %v3754
    %v3839 = vunpack.c.3.s8 %v3755
    %v3840 = vunpack.c.3.s8 %v3756
    %v3841 = vunpack.c.0.s8 %v3757
    %v3842 = vunpack.c.0.s8 %v3758
    %v3843 = vunpack.c.0.s8 %v3759
    %v3844 = vunpack.c.0.s8 %v3760
    %v3845 = vunpack.c.1.s8 %v3757
    %v3846 = vunpack.c.1.s8 %v3758
    %v3847 = vunpack.c.1.s8 %v3759
    %v3848 = vunpack.c.1.s8 %v3760
    %v3849 = vunpack.c.2.s8 %v3757
    %v3850 = vunpack.c.2.s8 %v3758
    %v3851 = vunpack.c.2.s8 %v3759
    %v3852 = vunpack.c.2.s8 %v3760
    %v3853 = vunpack.c.3.s8 %v3757
    %v3854 = vunpack.c.3.s8 %v3758
    %v3855 = vunpack.c.3.s8 %v3759
    %v3856 = vunpack.c.3.s8 %v3760
    %v3857 = vunpack.c.0.s8 %v3761
    %v3858 = vunpack.c.0.s8 %v3762
    %v3859 = vunpack.c.0.s8 %v3763
    %v3860 = vunpack.c.0.s8 %v3764
    %v3861 = vunpack.c.1.s8 %v3761
    %v3862 = vunpack.c.1.s8 %v3762
    %v3863 = vunpack.c.1.s8 %v3763
    %v3864 = vunpack.c.1.s8 %v3764
    %v3865 = vunpack.c.2.s8 %v3761
    %v3866 = vunpack.c.2.s8 %v3762
    %v3867 = vunpack.c.2.s8 %v3763
    %v3868 = vunpack.c.2.s8 %v3764
    %v3869 = vunpack.c.3.s8 %v3761
    %v3870 = vunpack.c.3.s8 %v3762
    %v3871 = vunpack.c.3.s8 %v3763
    %v3872 = vunpack.c.3.s8 %v3764
    %v3873 = vunpack.c.0.s8 %v3765
    %v3874 = vunpack.c.0.s8 %v3766
    %v3875 = vunpack.c.0.s8 %v3767
    %v3876 = vunpack.c.0.s8 %v3768
    %v3877 = vunpack.c.1.s8 %v3765
    %v3878 = vunpack.c.1.s8 %v3766
    %v3879 = vunpack.c.1.s8 %v3767
    %v3880 = vunpack.c.1.s8 %v3768
    %v3881 = vunpack.c.2.s8 %v3765
    %v3882 = vunpack.c.2.s8 %v3766
    %v3883 = vunpack.c.2.s8 %v3767
    %v3884 = vunpack.c.2.s8 %v3768
    %v3885 = vunpack.c.3.s8 %v3765
    %v3886 = vunpack.c.3.s8 %v3766
    %v3887 = vunpack.c.3.s8 %v3767
    %v3888 = vunpack.c.3.s8 %v3768
    %v3889 = vunpack.c.0.s8 %v3769
    %v3890 = vunpack.c.0.s8 %v3770
    %v3891 = vunpack.c.0.s8 %v3771
    %v3892 = vunpack.c.0.s8 %v3772
    %v3893 = vunpack.c.1.s8 %v3769
    %v3894 = vunpack.c.1.s8 %v3770
    %v3895 = vunpack.c.1.s8 %v3771
    %v3896 = vunpack.c.1.s8 %v3772
    %v3897 = vunpack.c.2.s8 %v3769
    %v3898 = vunpack.c.2.s8 %v3770
    %v3899 = vunpack.c.2.s8 %v3771
    %v3900 = vunpack.c.2.s8 %v3772
    %v3901 = vunpack.c.3.s8 %v3769
    %v3902 = vunpack.c.3.s8 %v3770
    %v3903 = vunpack.c.3.s8 %v3771
    %v3904 = vunpack.c.3.s8 %v3772
    %v3905 = vunpack.c.0.s8 %v3773
    %v3906 = vunpack.c.0.s8 %v3774
    %v3907 = vunpack.c.0.s8 %v3775
    %v3908 = vunpack.c.0.s8 %v3776
    %v3909 = vunpack.c.1.s8 %v3773
    %v3910 = vunpack.c.1.s8 %v3774
    %v3911 = vunpack.c.1.s8 %v3775
    %v3912 = vunpack.c.1.s8 %v3776
    %v3913 = vunpack.c.2.s8 %v3773
    %v3914 = vunpack.c.2.s8 %v3774
    %v3915 = vunpack.c.2.s8 %v3775
    %v3916 = vunpack.c.2.s8 %v3776
    %v3917 = vunpack.c.3.s8 %v3773
    %v3918 = vunpack.c.3.s8 %v3774
    %v3919 = vunpack.c.3.s8 %v3775
    %v3920 = vunpack.c.3.s8 %v3776
    %v3921 = vunpack.c.0.s8 %v3777
    %v3922 = vunpack.c.0.s8 %v3778
    %v3923 = vunpack.c.0.s8 %v3779
    %v3924 = vunpack.c.0.s8 %v3780
    %v3925 = vunpack.c.1.s8 %v3777
    %v3926 = vunpack.c.1.s8 %v3778
    %v3927 = vunpack.c.1.s8 %v3779
    %v3928 = vunpack.c.1.s8 %v3780
    %v3929 = vunpack.c.2.s8 %v3777
    %v3930 = vunpack.c.2.s8 %v3778
    %v3931 = vunpack.c.2.s8 %v3779
    %v3932 = vunpack.c.2.s8 %v3780
    %v3933 = vunpack.c.3.s8 %v3777
    %v3934 = vunpack.c.3.s8 %v3778
    %v3935 = vunpack.c.3.s8 %v3779
    %v3936 = vunpack.c.3.s8 %v3780
    %v3937 = vunpack.c.0.s8 %v3781
    %v3938 = vunpack.c.0.s8 %v3782
    %v3939 = vunpack.c.0.s8 %v3783
    %v3940 = vunpack.c.0.s8 %v3784
    %v3941 = vunpack.c.1.s8 %v3781
    %v3942 = vunpack.c.1.s8 %v3782
    %v3943 = vunpack.c.1.s8 %v3783
    %v3944 = vunpack.c.1.s8 %v3784
    %v3945 = vunpack.c.2.s8 %v3781
    %v3946 = vunpack.c.2.s8 %v3782
    %v3947 = vunpack.c.2.s8 %v3783
    %v3948 = vunpack.c.2.s8 %v3784
    %v3949 = vunpack.c.3.s8 %v3781
    %v3950 = vunpack.c.3.s8 %v3782
    %v3951 = vunpack.c.3.s8 %v3783
    %v3952 = vunpack.c.3.s8 %v3784
    %v3953 = vunpack.c.0.s8 %v3785
    %v3954 = vunpack.c.0.s8 %v3786
    %v3955 = vunpack.c.0.s8 %v3787
    %v3956 = vunpack.c.0.s8 %v3788
    %v3957 = vunpack.c.1.s8 %v3785
    %v3958 = vunpack.c.1.s8 %v3786
    %v3959 = vunpack.c.1.s8 %v3787
    %v3960 = vunpack.c.1.s8 %v3788
    %v3961 = vunpack.c.2.s8 %v3785
    %v3962 = vunpack.c.2.s8 %v3786
    %v3963 = vunpack.c.2.s8 %v3787
    %v3964 = vunpack.c.2.s8 %v3788
    %v3965 = vunpack.c.3.s8 %v3785
    %v3966 = vunpack.c.3.s8 %v3786
    %v3967 = vunpack.c.3.s8 %v3787
    %v3968 = vunpack.c.3.s8 %v3788
    %v3969 = vunpack.c.0.s8 %v3789
    %v3970 = vunpack.c.0.s8 %v3790
    %v3971 = vunpack.c.0.s8 %v3791
    %v3972 = vunpack.c.0.s8 %v3792
    %v3973 = vunpack.c.1.s8 %v3789
    %v3974 = vunpack.c.1.s8 %v3790
    %v3975 = vunpack.c.1.s8 %v3791
    %v3976 = vunpack.c.1.s8 %v3792
    %v3977 = vunpack.c.2.s8 %v3789
    %v3978 = vunpack.c.2.s8 %v3790
    %v3979 = vunpack.c.2.s8 %v3791
    %v3980 = vunpack.c.2.s8 %v3792
    %v3981 = vunpack.c.3.s8 %v3789
    %v3982 = vunpack.c.3.s8 %v3790
    %v3983 = vunpack.c.3.s8 %v3791
    %v3984 = vunpack.c.3.s8 %v3792
    %v3985 = vcvt.s32.f32 %v3793
    %v3986 = vcvt.s32.f32 %v3794
    %v3987 = vcvt.s32.f32 %v3795
    %v3988 = vcvt.s32.f32 %v3796
    %v3989 = vcvt.s32.f32 %v3797
    %v3990 = vcvt.s32.f32 %v3798
    %v3991 = vcvt.s32.f32 %v3799
    %v3992 = vcvt.s32.f32 %v3800
    %v3993 = vcvt.s32.f32 %v3801
    %v3994 = vcvt.s32.f32 %v3802
    %v3995 = vcvt.s32.f32 %v3803
    %v3996 = vcvt.s32.f32 %v3804
    %v3997 = vcvt.s32.f32 %v3805
    %v3998 = vcvt.s32.f32 %v3806
    %v3999 = vcvt.s32.f32 %v3807
    %v4000 = vcvt.s32.f32 %v3808
    %v4001 = vcvt.s32.f32 %v3809
    %v4002 = vcvt.s32.f32 %v3810
    %v4003 = vcvt.s32.f32 %v3811
    %v4004 = vcvt.s32.f32 %v3812
    %v4005 = vcvt.s32.f32 %v3813
    %v4006 = vcvt.s32.f32 %v3814
    %v4007 = vcvt.s32.f32 %v3815
    %v4008 = vcvt.s32.f32 %v3816
    %v4009 = vcvt.s32.f32 %v3817
    %v4010 = vcvt.s32.f32 %v3818
    %v4011 = vcvt.s32.f32 %v3819
    %v4012 = vcvt.s32.f32 %v3820
    %v4013 = vcvt.s32.f32 %v3821
    %v4014 = vcvt.s32.f32 %v3822
    %v4015 = vcvt.s32.f32 %v3823
    %v4016 = vcvt.s32.f32 %v3824
    %v4017 = vcvt.s32.f32 %v3825
    %v4018 = vcvt.s32.f32 %v3826
    %v4019 = vcvt.s32.f32 %v3827
    %v4020 = vcvt.s32.f32 %v3828
    %v4021 = vcvt.s32.f32 %v3829
    %v4022 = vcvt.s32.f32 %v3830
    %v4023 = vcvt.s32.f32 %v3831
    %v4024 = vcvt.s32.f32 %v3832
    %v4025 = vcvt.s32.f32 %v3833
    %v4026 = vcvt.s32.f32 %v3834
    %v4027 = vcvt.s32.f32 %v3835
    %v4028 = vcvt.s32.f32 %v3836
    %v4029 = vcvt.s32.f32 %v3837
    %v4030 = vcvt.s32.f32 %v3838
    %v4031 = vcvt.s32.f32 %v3839
    %v4032 = vcvt.s32.f32 %v3840
    %v4033 = vcvt.s32.f32 %v3841
    %v4034 = vcvt.s32.f32 %v3842
    %v4035 = vcvt.s32.f32 %v3843
    %v4036 = vcvt.s32.f32 %v3844
    %v4037 = vcvt.s32.f32 %v3845
    %v4038 = vcvt.s32.f32 %v3846
    %v4039 = vcvt.s32.f32 %v3847
    %v4040 = vcvt.s32.f32 %v3848
    %v4041 = vcvt.s32.f32 %v3849
    %v4042 = vcvt.s32.f32 %v3850
    %v4043 = vcvt.s32.f32 %v3851
    %v4044 = vcvt.s32.f32 %v3852
    %v4045 = vcvt.s32.f32 %v3853
    %v4046 = vcvt.s32.f32 %v3854
    %v4047 = vcvt.s32.f32 %v3855
    %v4048 = vcvt.s32.f32 %v3856
    %v4049 = vcvt.s32.f32 %v3857
    %v4050 = vcvt.s32.f32 %v3858
    %v4051 = vcvt.s32.f32 %v3859
    %v4052 = vcvt.s32.f32 %v3860
    %v4053 = vcvt.s32.f32 %v3861
    %v4054 = vcvt.s32.f32 %v3862
    %v4055 = vcvt.s32.f32 %v3863
    %v4056 = vcvt.s32.f32 %v3864
    %v4057 = vcvt.s32.f32 %v3865
    %v4058 = vcvt.s32.f32 %v3866
    %v4059 = vcvt.s32.f32 %v3867
    %v4060 = vcvt.s32.f32 %v3868
    %v4061 = vcvt.s32.f32 %v3869
    %v4062 = vcvt.s32.f32 %v3870
    %v4063 = vcvt.s32.f32 %v3871
    %v4064 = vcvt.s32.f32 %v3872
    %v4065 = vcvt.s32.f32 %v3873
    %v4066 = vcvt.s32.f32 %v3874
    %v4067 = vcvt.s32.f32 %v3875
    %v4068 = vcvt.s32.f32 %v3876
    %v4069 = vcvt.s32.f32 %v3877
    %v4070 = vcvt.s32.f32 %v3878
    %v4071 = vcvt.s32.f32 %v3879
    %v4072 = vcvt.s32.f32 %v3880
    %v4073 = vcvt.s32.f32 %v3881
    %v4074 = vcvt.s32.f32 %v3882
    %v4075 = vcvt.s32.f32 %v3883
    %v4076 = vcvt.s32.f32 %v3884
    %v4077 = vcvt.s32.f32 %v3885
    %v4078 = vcvt.s32.f32 %v3886
    %v4079 = vcvt.s32.f32 %v3887
    %v4080 = vcvt.s32.f32 %v3888
    %v4081 = vcvt.s32.f32 %v3889
    %v4082 = vcvt.s32.f32 %v3890
    %v4083 = vcvt.s32.f32 %v3891
    %v4084 = vcvt.s32.f32 %v3892
    %v4085 = vcvt.s32.f32 %v3893
    %v4086 = vcvt.s32.f32 %v3894
    %v4087 = vcvt.s32.f32 %v3895
    %v4088 = vcvt.s32.f32 %v3896
    %v4089 = vcvt.s32.f32 %v3897
    %v4090 = vcvt.s32.f32 %v3898
    %v4091 = vcvt.s32.f32 %v3899
    %v4092 = vcvt.s32.f32 %v3900
    %v4093 = vcvt.s32.f32 %v3901
    %v4094 = vcvt.s32.f32 %v3902
    %v4095 = vcvt.s32.f32 %v3903
    %v4096 = vcvt.s32.f32 %v3904
    %v4097 = vcvt.s32.f32 %v3905
    %v4098 = vcvt.s32.f32 %v3906
    %v4099 = vcvt.s32.f32 %v3907
    %v4100 = vcvt.s32.f32 %v3908
    %v4101 = vcvt.s32.f32 %v3909
    %v4102 = vcvt.s32.f32 %v3910
    %v4103 = vcvt.s32.f32 %v3911
    %v4104 = vcvt.s32.f32 %v3912
    %v4105 = vcvt.s32.f32 %v3913
    %v4106 = vcvt.s32.f32 %v3914
    %v4107 = vcvt.s32.f32 %v3915
    %v4108 = vcvt.s32.f32 %v3916
    %v4109 = vcvt.s32.f32 %v3917
    %v4110 = vcvt.s32.f32 %v3918
    %v4111 = vcvt.s32.f32 %v3919
    %v4112 = vcvt.s32.f32 %v3920
    %v4113 = vcvt.s32.f32 %v3921
    %v4114 = vcvt.s32.f32 %v3922
    %v4115 = vcvt.s32.f32 %v3923
    %v4116 = vcvt.s32.f32 %v3924
    %v4117 = vcvt.s32.f32 %v3925
    %v4118 = vcvt.s32.f32 %v3926
    %v4119 = vcvt.s32.f32 %v3927
    %v4120 = vcvt.s32.f32 %v3928
    %v4121 = vcvt.s32.f32 %v3929
    %v4122 = vcvt.s32.f32 %v3930
    %v4123 = vcvt.s32.f32 %v3931
    %v4124 = vcvt.s32.f32 %v3932
    %v4125 = vcvt.s32.f32 %v3933
    %v4126 = vcvt.s32.f32 %v3934
    %v4127 = vcvt.s32.f32 %v3935
    %v4128 = vcvt.s32.f32 %v3936
    %v4129 = vcvt.s32.f32 %v3937
    %v4130 = vcvt.s32.f32 %v3938
    %v4131 = vcvt.s32.f32 %v3939
    %v4132 = vcvt.s32.f32 %v3940
    %v4133 = vcvt.s32.f32 %v3941
    %v4134 = vcvt.s32.f32 %v3942
    %v4135 = vcvt.s32.f32 %v3943
    %v4136 = vcvt.s32.f32 %v3944
    %v4137 = vcvt.s32.f32 %v3945
    %v4138 = vcvt.s32.f32 %v3946
    %v4139 = vcvt.s32.f32 %v3947
    %v4140 = vcvt.s32.f32 %v3948
    %v4141 = vcvt.s32.f32 %v3949
    %v4142 = vcvt.s32.f32 %v3950
    %v4143 = vcvt.s32.f32 %v3951
    %v4144 = vcvt.s32.f32 %v3952
    %v4145 = vcvt.s32.f32 %v3953
    %v4146 = vcvt.s32.f32 %v3954
    %v4147 = vcvt.s32.f32 %v3955
    %v4148 = vcvt.s32.f32 %v3956
    %v4149 = vcvt.s32.f32 %v3957
    %v4150 = vcvt.s32.f32 %v3958
    %v4151 = vcvt.s32.f32 %v3959
    %v4152 = vcvt.s32.f32 %v3960
    %v4153 = vcvt.s32.f32 %v3961
    %v4154 = vcvt.s32.f32 %v3962
    %v4155 = vcvt.s32.f32 %v3963
    %v4156 = vcvt.s32.f32 %v3964
    %v4157 = vcvt.s32.f32 %v3965
    %v4158 = vcvt.s32.f32 %v3966
    %v4159 = vcvt.s32.f32 %v3967
    %v4160 = vcvt.s32.f32 %v3968
    %v4161 = vcvt.s32.f32 %v3969
    %v4162 = vcvt.s32.f32 %v3970
    %v4163 = vcvt.s32.f32 %v3971
    %v4164 = vcvt.s32.f32 %v3972
    %v4165 = vcvt.s32.f32 %v3973
    %v4166 = vcvt.s32.f32 %v3974
    %v4167 = vcvt.s32.f32 %v3975
    %v4168 = vcvt.s32.f32 %v3976
    %v4169 = vcvt.s32.f32 %v3977
    %v4170 = vcvt.s32.f32 %v3978
    %v4171 = vcvt.s32.f32 %v3979
    %v4172 = vcvt.s32.f32 %v3980
    %v4173 = vcvt.s32.f32 %v3981
    %v4174 = vcvt.s32.f32 %v3982
    %v4175 = vcvt.s32.f32 %v3983
    %v4176 = vcvt.s32.f32 %v3984
    %v4177 = vld [vmem:[%s39] sm:$0xf]
    %v4179 = vlaneseq
    %v4180 = vshrl.u32 %v4179, 7
    %v4181 = vsub.s32 0, %v4180
    %v4182 = vrot.slane %v4177, %v4181
    %v4183 = vlaneseq
    %v4184 = vshrl.u32 %v4183, 7
    %v4185 = vsub.s32 1, %v4184
    %v4186 = vrot.slane %v4177, %v4185
    %v4187 = vlaneseq
    %v4188 = vshrl.u32 %v4187, 7
    %v4189 = vsub.s32 2, %v4188
    %v4190 = vrot.slane %v4177, %v4189
    %v4191 = vlaneseq
    %v4192 = vshrl.u32 %v4191, 7
    %v4193 = vsub.s32 3, %v4192
    %v4194 = vrot.slane %v4177, %v4193
    %v4199 = vmul.f32 %v3985, %v4182
    %v4200 = vmul.f32 %v3986, %v4186
    %v4201 = vmul.f32 %v3987, %v4190
    %v4202 = vmul.f32 %v3988, %v4194
    %v4203 = vmul.f32 %v3989, %v4182
    %v4204 = vmul.f32 %v3990, %v4186
    %v4205 = vmul.f32 %v3991, %v4190
    %v4206 = vmul.f32 %v3992, %v4194
    %v4207 = vmul.f32 %v3993, %v4182
    %v4208 = vmul.f32 %v3994, %v4186
    %v4209 = vmul.f32 %v3995, %v4190
    %v4210 = vmul.f32 %v3996, %v4194
    %v4211 = vmul.f32 %v3997, %v4182
    %v4212 = vmul.f32 %v3998, %v4186
    %v4213 = vmul.f32 %v3999, %v4190
    %v4214 = vmul.f32 %v4000, %v4194
    %v4215 = vmul.f32 %v4001, %v4182
    %v4216 = vmul.f32 %v4002, %v4186
    %v4217 = vmul.f32 %v4003, %v4190
    %v4218 = vmul.f32 %v4004, %v4194
    %v4219 = vmul.f32 %v4005, %v4182
    %v4220 = vmul.f32 %v4006, %v4186
    %v4221 = vmul.f32 %v4007, %v4190
    %v4222 = vmul.f32 %v4008, %v4194
    %v4223 = vmul.f32 %v4009, %v4182
    %v4224 = vmul.f32 %v4010, %v4186
    %v4225 = vmul.f32 %v4011, %v4190
    %v4226 = vmul.f32 %v4012, %v4194
    %v4227 = vmul.f32 %v4013, %v4182
    %v4228 = vmul.f32 %v4014, %v4186
    %v4229 = vmul.f32 %v4015, %v4190
    %v4230 = vmul.f32 %v4016, %v4194
    %v4231 = vmul.f32 %v4017, %v4182
    %v4232 = vmul.f32 %v4018, %v4186
    %v4233 = vmul.f32 %v4019, %v4190
    %v4234 = vmul.f32 %v4020, %v4194
    %v4235 = vmul.f32 %v4021, %v4182
    %v4236 = vmul.f32 %v4022, %v4186
    %v4237 = vmul.f32 %v4023, %v4190
    %v4238 = vmul.f32 %v4024, %v4194
    %v4239 = vmul.f32 %v4025, %v4182
    %v4240 = vmul.f32 %v4026, %v4186
    %v4241 = vmul.f32 %v4027, %v4190
    %v4242 = vmul.f32 %v4028, %v4194
    %v4243 = vmul.f32 %v4029, %v4182
    %v4244 = vmul.f32 %v4030, %v4186
    %v4245 = vmul.f32 %v4031, %v4190
    %v4246 = vmul.f32 %v4032, %v4194
    %v4247 = vmul.f32 %v4033, %v4182
    %v4248 = vmul.f32 %v4034, %v4186
    %v4249 = vmul.f32 %v4035, %v4190
    %v4250 = vmul.f32 %v4036, %v4194
    %v4251 = vmul.f32 %v4037, %v4182
    %v4252 = vmul.f32 %v4038, %v4186
    %v4253 = vmul.f32 %v4039, %v4190
    %v4254 = vmul.f32 %v4040, %v4194
    %v4255 = vmul.f32 %v4041, %v4182
    %v4256 = vmul.f32 %v4042, %v4186
    %v4257 = vmul.f32 %v4043, %v4190
    %v4258 = vmul.f32 %v4044, %v4194
    %v4259 = vmul.f32 %v4045, %v4182
    %v4260 = vmul.f32 %v4046, %v4186
    %v4261 = vmul.f32 %v4047, %v4190
    %v4262 = vmul.f32 %v4048, %v4194
    %v4263 = vmul.f32 %v4049, %v4182
    %v4264 = vmul.f32 %v4050, %v4186
    %v4265 = vmul.f32 %v4051, %v4190
    %v4266 = vmul.f32 %v4052, %v4194
    %v4267 = vmul.f32 %v4053, %v4182
    %v4268 = vmul.f32 %v4054, %v4186
    %v4269 = vmul.f32 %v4055, %v4190
    %v4270 = vmul.f32 %v4056, %v4194
    %v4271 = vmul.f32 %v4057, %v4182
    %v4272 = vmul.f32 %v4058, %v4186
    %v4273 = vmul.f32 %v4059, %v4190
    %v4274 = vmul.f32 %v4060, %v4194
    %v4275 = vmul.f32 %v4061, %v4182
    %v4276 = vmul.f32 %v4062, %v4186
    %v4277 = vmul.f32 %v4063, %v4190
    %v4278 = vmul.f32 %v4064, %v4194
    %v4279 = vmul.f32 %v4065, %v4182
    %v4280 = vmul.f32 %v4066, %v4186
    %v4281 = vmul.f32 %v4067, %v4190
    %v4282 = vmul.f32 %v4068, %v4194
    %v4283 = vmul.f32 %v4069, %v4182
    %v4284 = vmul.f32 %v4070, %v4186
    %v4285 = vmul.f32 %v4071, %v4190
    %v4286 = vmul.f32 %v4072, %v4194
    %v4287 = vmul.f32 %v4073, %v4182
    %v4288 = vmul.f32 %v4074, %v4186
    %v4289 = vmul.f32 %v4075, %v4190
    %v4290 = vmul.f32 %v4076, %v4194
    %v4291 = vmul.f32 %v4077, %v4182
    %v4292 = vmul.f32 %v4078, %v4186
    %v4293 = vmul.f32 %v4079, %v4190
    %v4294 = vmul.f32 %v4080, %v4194
    %v4295 = vmul.f32 %v4081, %v4182
    %v4296 = vmul.f32 %v4082, %v4186
    %v4297 = vmul.f32 %v4083, %v4190
    %v4298 = vmul.f32 %v4084, %v4194
    %v4299 = vmul.f32 %v4085, %v4182
    %v4300 = vmul.f32 %v4086, %v4186
    %v4301 = vmul.f32 %v4087, %v4190
    %v4302 = vmul.f32 %v4088, %v4194
    %v4303 = vmul.f32 %v4089, %v4182
    %v4304 = vmul.f32 %v4090, %v4186
    %v4305 = vmul.f32 %v4091, %v4190
    %v4306 = vmul.f32 %v4092, %v4194
    %v4307 = vmul.f32 %v4093, %v4182
    %v4308 = vmul.f32 %v4094, %v4186
    %v4309 = vmul.f32 %v4095, %v4190
    %v4310 = vmul.f32 %v4096, %v4194
    %v4311 = vmul.f32 %v4097, %v4182
    %v4312 = vmul.f32 %v4098, %v4186
    %v4313 = vmul.f32 %v4099, %v4190
    %v4314 = vmul.f32 %v4100, %v4194
    %v4315 = vmul.f32 %v4101, %v4182
    %v4316 = vmul.f32 %v4102, %v4186
    %v4317 = vmul.f32 %v4103, %v4190
    %v4318 = vmul.f32 %v4104, %v4194
    %v4319 = vmul.f32 %v4105, %v4182
    %v4320 = vmul.f32 %v4106, %v4186
    %v4321 = vmul.f32 %v4107, %v4190
    %v4322 = vmul.f32 %v4108, %v4194
    %v4323 = vmul.f32 %v4109, %v4182
    %v4324 = vmul.f32 %v4110, %v4186
    %v4325 = vmul.f32 %v4111, %v4190
    %v4326 = vmul.f32 %v4112, %v4194
    %v4327 = vmul.f32 %v4113, %v4182
    %v4328 = vmul.f32 %v4114, %v4186
    %v4329 = vmul.f32 %v4115, %v4190
    %v4330 = vmul.f32 %v4116, %v4194
    %v4331 = vmul.f32 %v4117, %v4182
    %v4332 = vmul.f32 %v4118, %v4186
    %v4333 = vmul.f32 %v4119, %v4190
    %v4334 = vmul.f32 %v4120, %v4194
    %v4335 = vmul.f32 %v4121, %v4182
    %v4336 = vmul.f32 %v4122, %v4186
    %v4337 = vmul.f32 %v4123, %v4190
    %v4338 = vmul.f32 %v4124, %v4194
    %v4339 = vmul.f32 %v4125, %v4182
    %v4340 = vmul.f32 %v4126, %v4186
    %v4341 = vmul.f32 %v4127, %v4190
    %v4342 = vmul.f32 %v4128, %v4194
    %v4343 = vmul.f32 %v4129, %v4182
    %v4344 = vmul.f32 %v4130, %v4186
    %v4345 = vmul.f32 %v4131, %v4190
    %v4346 = vmul.f32 %v4132, %v4194
    %v4347 = vmul.f32 %v4133, %v4182
    %v4348 = vmul.f32 %v4134, %v4186
    %v4349 = vmul.f32 %v4135, %v4190
    %v4350 = vmul.f32 %v4136, %v4194
    %v4351 = vmul.f32 %v4137, %v4182
    %v4352 = vmul.f32 %v4138, %v4186
    %v4353 = vmul.f32 %v4139, %v4190
    %v4354 = vmul.f32 %v4140, %v4194
    %v4355 = vmul.f32 %v4141, %v4182
    %v4356 = vmul.f32 %v4142, %v4186
    %v4357 = vmul.f32 %v4143, %v4190
    %v4358 = vmul.f32 %v4144, %v4194
    %v4359 = vmul.f32 %v4145, %v4182
    %v4360 = vmul.f32 %v4146, %v4186
    %v4361 = vmul.f32 %v4147, %v4190
    %v4362 = vmul.f32 %v4148, %v4194
    %v4363 = vmul.f32 %v4149, %v4182
    %v4364 = vmul.f32 %v4150, %v4186
    %v4365 = vmul.f32 %v4151, %v4190
    %v4366 = vmul.f32 %v4152, %v4194
    %v4367 = vmul.f32 %v4153, %v4182
    %v4368 = vmul.f32 %v4154, %v4186
    %v4369 = vmul.f32 %v4155, %v4190
    %v4370 = vmul.f32 %v4156, %v4194
    %v4371 = vmul.f32 %v4157, %v4182
    %v4372 = vmul.f32 %v4158, %v4186
    %v4373 = vmul.f32 %v4159, %v4190
    %v4374 = vmul.f32 %v4160, %v4194
    %v4375 = vmul.f32 %v4161, %v4182
    %v4376 = vmul.f32 %v4162, %v4186
    %v4377 = vmul.f32 %v4163, %v4190
    %v4378 = vmul.f32 %v4164, %v4194
    %v4379 = vmul.f32 %v4165, %v4182
    %v4380 = vmul.f32 %v4166, %v4186
    %v4381 = vmul.f32 %v4167, %v4190
    %v4382 = vmul.f32 %v4168, %v4194
    %v4383 = vmul.f32 %v4169, %v4182
    %v4384 = vmul.f32 %v4170, %v4186
    %v4385 = vmul.f32 %v4171, %v4190
    %v4386 = vmul.f32 %v4172, %v4194
    %v4387 = vmul.f32 %v4173, %v4182
    %v4388 = vmul.f32 %v4174, %v4186
    %v4389 = vmul.f32 %v4175, %v4190
    %v4390 = vmul.f32 %v4176, %v4194
    %v4391 = vpack.c.bf16 %v4203, %v4199
    %v4392 = vpack.c.bf16 %v4204, %v4200
    %v4393 = vpack.c.bf16 %v4205, %v4201
    %v4394 = vpack.c.bf16 %v4206, %v4202
    %v4395 = vpack.c.bf16 %v4211, %v4207
    %v4396 = vpack.c.bf16 %v4212, %v4208
    %v4397 = vpack.c.bf16 %v4213, %v4209
    %v4398 = vpack.c.bf16 %v4214, %v4210
    %v4399 = vpack.c.bf16 %v4219, %v4215
    %v4400 = vpack.c.bf16 %v4220, %v4216
    %v4401 = vpack.c.bf16 %v4221, %v4217
    %v4402 = vpack.c.bf16 %v4222, %v4218
    %v4403 = vpack.c.bf16 %v4227, %v4223
    %v4404 = vpack.c.bf16 %v4228, %v4224
    %v4405 = vpack.c.bf16 %v4229, %v4225
    %v4406 = vpack.c.bf16 %v4230, %v4226
    %v4407 = vpack.c.bf16 %v4235, %v4231
    %v4408 = vpack.c.bf16 %v4236, %v4232
    %v4409 = vpack.c.bf16 %v4237, %v4233
    %v4410 = vpack.c.bf16 %v4238, %v4234
    %v4411 = vpack.c.bf16 %v4243, %v4239
    %v4412 = vpack.c.bf16 %v4244, %v4240
    %v4413 = vpack.c.bf16 %v4245, %v4241
    %v4414 = vpack.c.bf16 %v4246, %v4242
    %v4415 = vpack.c.bf16 %v4251, %v4247
    %v4416 = vpack.c.bf16 %v4252, %v4248
    %v4417 = vpack.c.bf16 %v4253, %v4249
    %v4418 = vpack.c.bf16 %v4254, %v4250
    %v4419 = vpack.c.bf16 %v4259, %v4255
    %v4420 = vpack.c.bf16 %v4260, %v4256
    %v4421 = vpack.c.bf16 %v4261, %v4257
    %v4422 = vpack.c.bf16 %v4262, %v4258
    %v4423 = vpack.c.bf16 %v4267, %v4263
    %v4424 = vpack.c.bf16 %v4268, %v4264
    %v4425 = vpack.c.bf16 %v4269, %v4265
    %v4426 = vpack.c.bf16 %v4270, %v4266
    %v4427 = vpack.c.bf16 %v4275, %v4271
    %v4428 = vpack.c.bf16 %v4276, %v4272
    %v4429 = vpack.c.bf16 %v4277, %v4273
    %v4430 = vpack.c.bf16 %v4278, %v4274
    %v4431 = vpack.c.bf16 %v4283, %v4279
    %v4432 = vpack.c.bf16 %v4284, %v4280
    %v4433 = vpack.c.bf16 %v4285, %v4281
    %v4434 = vpack.c.bf16 %v4286, %v4282
    %v4435 = vpack.c.bf16 %v4291, %v4287
    %v4436 = vpack.c.bf16 %v4292, %v4288
    %v4437 = vpack.c.bf16 %v4293, %v4289
    %v4438 = vpack.c.bf16 %v4294, %v4290
    %v4439 = vpack.c.bf16 %v4299, %v4295
    %v4440 = vpack.c.bf16 %v4300, %v4296
    %v4441 = vpack.c.bf16 %v4301, %v4297
    %v4442 = vpack.c.bf16 %v4302, %v4298
    %v4443 = vpack.c.bf16 %v4307, %v4303
    %v4444 = vpack.c.bf16 %v4308, %v4304
    %v4445 = vpack.c.bf16 %v4309, %v4305
    %v4446 = vpack.c.bf16 %v4310, %v4306
    %v4447 = vpack.c.bf16 %v4315, %v4311
    %v4448 = vpack.c.bf16 %v4316, %v4312
    %v4449 = vpack.c.bf16 %v4317, %v4313
    %v4450 = vpack.c.bf16 %v4318, %v4314
    %v4451 = vpack.c.bf16 %v4323, %v4319
    %v4452 = vpack.c.bf16 %v4324, %v4320
    %v4453 = vpack.c.bf16 %v4325, %v4321
    %v4454 = vpack.c.bf16 %v4326, %v4322
    %v4455 = vpack.c.bf16 %v4331, %v4327
    %v4456 = vpack.c.bf16 %v4332, %v4328
    %v4457 = vpack.c.bf16 %v4333, %v4329
    %v4458 = vpack.c.bf16 %v4334, %v4330
    %v4459 = vpack.c.bf16 %v4339, %v4335
    %v4460 = vpack.c.bf16 %v4340, %v4336
    %v4461 = vpack.c.bf16 %v4341, %v4337
    %v4462 = vpack.c.bf16 %v4342, %v4338
    %v4463 = vpack.c.bf16 %v4347, %v4343
    %v4464 = vpack.c.bf16 %v4348, %v4344
    %v4465 = vpack.c.bf16 %v4349, %v4345
    %v4466 = vpack.c.bf16 %v4350, %v4346
    %v4467 = vpack.c.bf16 %v4355, %v4351
    %v4468 = vpack.c.bf16 %v4356, %v4352
    %v4469 = vpack.c.bf16 %v4357, %v4353
    %v4470 = vpack.c.bf16 %v4358, %v4354
    %v4471 = vpack.c.bf16 %v4363, %v4359
    %v4472 = vpack.c.bf16 %v4364, %v4360
    %v4473 = vpack.c.bf16 %v4365, %v4361
    %v4474 = vpack.c.bf16 %v4366, %v4362
    %v4475 = vpack.c.bf16 %v4371, %v4367
    %v4476 = vpack.c.bf16 %v4372, %v4368
    %v4477 = vpack.c.bf16 %v4373, %v4369
    %v4478 = vpack.c.bf16 %v4374, %v4370
    %v4479 = vpack.c.bf16 %v4379, %v4375
    %v4480 = vpack.c.bf16 %v4380, %v4376
    %v4481 = vpack.c.bf16 %v4381, %v4377
    %v4482 = vpack.c.bf16 %v4382, %v4378
    %v4483 = vpack.c.bf16 %v4387, %v4383
    %v4484 = vpack.c.bf16 %v4388, %v4384
    %v4485 = vpack.c.bf16 %v4389, %v4385
    %v4486 = vpack.c.bf16 %v4390, %v4386
    %v4487 = vld [vmem:[%s59] sm:$0xf]
    %v4489 = vlaneseq
    %v4490 = vshrl.u32 %v4489, 7
    %v4491 = vsub.s32 0, %v4490
    %v4492 = vrot.slane %v4487, %v4491
    %v4493 = vlaneseq
    %v4494 = vshrl.u32 %v4493, 7
    %v4495 = vsub.s32 1, %v4494
    %v4496 = vrot.slane %v4487, %v4495
    %v4497 = vlaneseq
    %v4498 = vshrl.u32 %v4497, 7
    %v4499 = vsub.s32 2, %v4498
    %v4500 = vrot.slane %v4487, %v4499
    %v4501 = vlaneseq
    %v4502 = vshrl.u32 %v4501, 7
    %v4503 = vsub.s32 3, %v4502
    %v4504 = vrot.slane %v4487, %v4503
    %4509 = vmatprep.subr.bf16.mxu0 %v4392
    %4510 = vmatpush1.bf16.msra.mxu0 %v4391
    %4511 = vmatprep.subr.bf16.mxu0 %v4396
    %4512 = vmatpush1.bf16.msra.mxu0 %v4395
    %4513 = vmatprep.subr.bf16.mxu0 %v4400
    %4514 = vmatpush1.bf16.msra.mxu0 %v4399
    %4515 = vmatprep.subr.bf16.mxu0 %v4404
    %4516 = vmatpush1.bf16.msra.mxu0 %v4403
    %4517 = vmatprep.subr.bf16.mxu0 %v4408
    %4518 = vmatpush1.bf16.msra.mxu0 %v4407
    %4519 = vmatprep.subr.bf16.mxu0 %v4412
    %4520 = vmatpush1.bf16.msra.mxu0 %v4411
    %4521 = vmatprep.subr.bf16.mxu0 %v4416
    %4522 = vmatpush1.bf16.msra.mxu0 %v4415
    %4523 = vmatprep.subr.bf16.mxu0 %v4420
    %4524 = vmatpush1.bf16.msra.mxu0 %v4419
    %4525 = vmatprep.subr.bf16.mxu0 %v4424
    %4526 = vmatpush1.bf16.msra.mxu0 %v4423
    %4527 = vmatprep.subr.bf16.mxu0 %v4428
    %4528 = vmatpush1.bf16.msra.mxu0 %v4427
    %4529 = vmatprep.subr.bf16.mxu0 %v4432
    %4530 = vmatpush1.bf16.msra.mxu0 %v4431
    %4531 = vmatprep.subr.bf16.mxu0 %v4436
    %4532 = vmatpush1.bf16.msra.mxu0 %v4435
    %4533 = vmatprep.subr.bf16.mxu0 %v4440
    %4534 = vmatpush1.bf16.msra.mxu0 %v4439
    %4535 = vmatprep.subr.bf16.mxu0 %v4444
    %4536 = vmatpush1.bf16.msra.mxu0 %v4443
    %4537 = vmatprep.subr.bf16.mxu0 %v4448
    %4538 = vmatpush1.bf16.msra.mxu0 %v4447
    %4539 = vmatprep.subr.bf16.mxu0 %v4452
    %4540 = vmatpush1.bf16.msra.mxu0 %v4451
    %4541 = vmatprep.mubr.bf16.mxu0 %v3743
    %4542 = vmatmul.mubr.bf16.gmra.mrb[0].mxu0 %v3742
    %v4543 = vpop.f32.mrb[0].mxu0
    %v4544 = vadd.f32 %v4492, %v4543
    %v4545 = vpop.f32.mrb[0].mxu0
    %v4546 = vadd.f32 %v4496, %v4545
    %v4547 = vpop.f32.mrb[0].mxu0
    %v4548 = vpop.f32.mrb[0].mxu0
    %4549 = vdwg.mxu0
    %4550 = vmatprep.subr.bf16.mxu0 %v4456
    %4551 = vmatpush1.bf16.msra.mxu0 %v4455
    %4552 = vmatprep.subr.bf16.mxu0 %v4460
    %4553 = vmatpush1.bf16.msra.mxu0 %v4459
    %4554 = vmatprep.subr.bf16.mxu0 %v4464
    %4555 = vmatpush1.bf16.msra.mxu0 %v4463
    %4556 = vmatprep.subr.bf16.mxu0 %v4468
    %4557 = vmatpush1.bf16.msra.mxu0 %v4467
    %4558 = vmatprep.subr.bf16.mxu0 %v4472
    %4559 = vmatpush1.bf16.msra.mxu0 %v4471
    %4560 = vmatprep.subr.bf16.mxu0 %v4476
    %4561 = vmatpush1.bf16.msra.mxu0 %v4475
    %4562 = vmatprep.subr.bf16.mxu0 %v4480
    %4563 = vmatpush1.bf16.msra.mxu0 %v4479
    %4564 = vmatprep.subr.bf16.mxu0 %v4484
    %4565 = vmatpush1.bf16.msra.mxu0 %v4483
    %4566 = vmatprep.subr.bf16.mxu0 0
    %4567 = vmatpush1.bf16.msra.mxu0 0
    %4568 = vmatprep.subr.bf16.mxu0 0
    %4569 = vmatpush1.bf16.msra.mxu0 0
    %4570 = vmatprep.subr.bf16.mxu0 0
    %4571 = vmatpush1.bf16.msra.mxu0 0
    %4572 = vmatprep.subr.bf16.mxu0 0
    %4573 = vmatpush1.bf16.msra.mxu0 0
    %4574 = vmatprep.subr.bf16.mxu0 0
    %4575 = vmatpush1.bf16.msra.mxu0 0
    %4576 = vmatprep.subr.bf16.mxu0 0
    %4577 = vmatpush1.bf16.msra.mxu0 0
    %4578 = vmatprep.subr.bf16.mxu0 0
    %4579 = vmatpush1.bf16.msra.mxu0 0
    %4580 = vmatprep.subr.bf16.mxu0 0
    %4581 = vmatpush1.bf16.msra.mxu0 0
    %4582 = vmatprep.mubr.bf16.mxu0 0
    %4583 = vmatmul.mubr.bf16.gmra.mrb[0].mxu0 %v3744
    %v4584 = vpop.f32.mrb[0].mxu0
    %v4585 = vadd.f32 %v4544, %v4584
    %v4586 = vpop.f32.mrb[0].mxu0
    %v4587 = vadd.f32 %v4546, %v4586
    %v4588 = vpop.f32.mrb[0].mxu0
    %v4589 = vpop.f32.mrb[0].mxu0
    %4590 = vdwg.mxu0
    %4591 = vmatprep.subr.bf16.mxu0 %v4394
    %4592 = vmatpush1.bf16.msra.mxu0 %v4393
    %4593 = vmatprep.subr.bf16.mxu0 %v4398
    %4594 = vmatpush1.bf16.msra.mxu0 %v4397
    %4595 = vmatprep.subr.bf16.mxu0 %v4402
    %4596 = vmatpush1.bf16.msra.mxu0 %v4401
    %4597 = vmatprep.subr.bf16.mxu0 %v4406
    %4598 = vmatpush1.bf16.msra.mxu0 %v4405
    %4599 = vmatprep.subr.bf16.mxu0 %v4410
    %4600 = vmatpush1.bf16.msra.mxu0 %v4409
    %4601 = vmatprep.subr.bf16.mxu0 %v4414
    %4602 = vmatpush1.bf16.msra.mxu0 %v4413
    %4603 = vmatprep.subr.bf16.mxu0 %v4418
    %4604 = vmatpush1.bf16.msra.mxu0 %v4417
    %4605 = vmatprep.subr.bf16.mxu0 %v4422
    %4606 = vmatpush1.bf16.msra.mxu0 %v4421
    %4607 = vmatprep.subr.bf16.mxu0 %v4426
    %4608 = vmatpush1.bf16.msra.mxu0 %v4425
    %4609 = vmatprep.subr.bf16.mxu0 %v4430
    %4610 = vmatpush1.bf16.msra.mxu0 %v4429
    %4611 = vmatprep.subr.bf16.mxu0 %v4434
    %4612 = vmatpush1.bf16.msra.mxu0 %v4433
    %4613 = vmatprep.subr.bf16.mxu0 %v4438
    %4614 = vmatpush1.bf16.msra.mxu0 %v4437
    %4615 = vmatprep.subr.bf16.mxu0 %v4442
    %4616 = vmatpush1.bf16.msra.mxu0 %v4441
    %4617 = vmatprep.subr.bf16.mxu0 %v4446
    %4618 = vmatpush1.bf16.msra.mxu0 %v4445
    %4619 = vmatprep.subr.bf16.mxu0 %v4450
    %4620 = vmatpush1.bf16.msra.mxu0 %v4449
    %4621 = vmatprep.subr.bf16.mxu0 %v4454
    %4622 = vmatpush1.bf16.msra.mxu0 %v4453
    %4623 = vmatprep.mubr.bf16.mxu0 %v3743
    %4624 = vmatmul.mubr.bf16.gmra.mrb[0].mxu0 %v3742
    %v4625 = vpop.f32.mrb[0].mxu0
    %v4626 = vadd.f32 %v4500, %v4625
    %v4627 = vpop.f32.mrb[0].mxu0
    %v4628 = vadd.f32 %v4504, %v4627
    %v4629 = vpop.f32.mrb[0].mxu0
    %v4630 = vpop.f32.mrb[0].mxu0
    %4631 = vdwg.mxu0
    %4632 = vmatprep.subr.bf16.mxu0 %v4458
    %4633 = vmatpush1.bf16.msra.mxu0 %v4457
    %4634 = vmatprep.subr.bf16.mxu0 %v4462
    %4635 = vmatpush1.bf16.msra.mxu0 %v4461
    %4636 = vmatprep.subr.bf16.mxu0 %v4466
    %4637 = vmatpush1.bf16.msra.mxu0 %v4465
    %4638 = vmatprep.subr.bf16.mxu0 %v4470
    %4639 = vmatpush1.bf16.msra.mxu0 %v4469
    %4640 = vmatprep.subr.bf16.mxu0 %v4474
    %4641 = vmatpush1.bf16.msra.mxu0 %v4473
    %4642 = vmatprep.subr.bf16.mxu0 %v4478
    %4643 = vmatpush1.bf16.msra.mxu0 %v4477
    %4644 = vmatprep.subr.bf16.mxu0 %v4482
    %4645 = vmatpush1.bf16.msra.mxu0 %v4481
    %4646 = vmatprep.subr.bf16.mxu0 %v4486
    %4647 = vmatpush1.bf16.msra.mxu0 %v4485
    %4648 = vmatprep.subr.bf16.mxu0 0
    %4649 = vmatpush1.bf16.msra.mxu0 0
    %4650 = vmatprep.subr.bf16.mxu0 0
    %4651 = vmatpush1.bf16.msra.mxu0 0
    %4652 = vmatprep.subr.bf16.mxu0 0
    %4653 = vmatpush1.bf16.msra.mxu0 0
    %4654 = vmatprep.subr.bf16.mxu0 0
    %4655 = vmatpush1.bf16.msra.mxu0 0
    %4656 = vmatprep.subr.bf16.mxu0 0
    %4657 = vmatpush1.bf16.msra.mxu0 0
    %4658 = vmatprep.subr.bf16.mxu0 0
    %4659 = vmatpush1.bf16.msra.mxu0 0
    %4660 = vmatprep.subr.bf16.mxu0 0
    %4661 = vmatpush1.bf16.msra.mxu0 0
    %4662 = vmatprep.subr.bf16.mxu0 0
    %4663 = vmatpush1.bf16.msra.mxu0 0
    %4664 = vmatprep.mubr.bf16.mxu0 0
    %4665 = vmatmul.mubr.bf16.gmra.mrb[0].mxu0 %v3744
    %v4666 = vpop.f32.mrb[0].mxu0
    %v4667 = vadd.f32 %v4626, %v4666
    %v4668 = vpop.f32.mrb[0].mxu0
    %v4669 = vadd.f32 %v4628, %v4668
    %v4670 = vpop.f32.mrb[0].mxu0
    %v4671 = vpop.f32.mrb[0].mxu0
    %4672 = vdwg.mxu0
    %v4673 = vmax.f32 %v4585, 0.0
    %v4674 = vmax.f32 %v4587, 0.0
    %v4675 = vmax.f32 %v4667, 0.0
    %v4676 = vmax.f32 %v4669, 0.0
    %v4677 = vpack.c.bf16 %v4673, %v4673
    %v4678 = vpack.c.bf16 %v4674, %v4674
    %v4679 = vpack.c.bf16 %v4675, %v4675
    %v4680 = vpack.c.bf16 %v4676, %v4676
    %v4681 = vld [vmem:[#allocation16] sm:$0xff]
    %v4682 = vld [vmem:[#allocation16 + $0x8] sm:$0xff]
    %v4683 = vld [vmem:[#allocation16 + $0x10] sm:$0xff]
    %v4684 = vld [vmem:[#allocation16 + $0x18] sm:$0xff]
    %v4685 = vld [vmem:[#allocation16 + $0x20] sm:$0xff]
    %v4686 = vld [vmem:[#allocation16 + $0x28] sm:$0xff]
    %v4687 = vld [vmem:[#allocation16 + $0x30] sm:$0xff]
    %v4688 = vld [vmem:[#allocation16 + $0x38] sm:$0xff]
    %v4689 = vld [vmem:[#allocation16 + $0x40] sm:$0xff]
    %v4690 = vld [vmem:[#allocation16 + $0x48] sm:$0xff]
    %v4691 = vld [vmem:[#allocation16 + $0x50] sm:$0xff]
    %v4692 = vld [vmem:[#allocation16 + $0x58] sm:$0xff]
    %v4693 = vld [vmem:[#allocation16 + $0x60] sm:$0xff]
    %v4694 = vld [vmem:[#allocation16 + $0x68] sm:$0xff]
    %v4695 = vld [vmem:[#allocation16 + $0x70] sm:$0xff]
    %v4696 = vld [vmem:[#allocation16 + $0x78] sm:$0xff]
    %v4697 = vld [vmem:[#allocation16 + $0x80] sm:$0xff]
    %v4698 = vld [vmem:[#allocation16 + $0x88] sm:$0xff]
    %v4699 = vld [vmem:[#allocation16 + $0x90] sm:$0xff]
    %v4700 = vld [vmem:[#allocation16 + $0x98] sm:$0xff]
    %v4701 = vld [vmem:[#allocation16 + $0xa0] sm:$0xff]
    %v4702 = vld [vmem:[#allocation16 + $0xa8] sm:$0xff]
    %v4703 = vld [vmem:[#allocation16 + $0xb0] sm:$0xff]
    %v4704 = vld [vmem:[#allocation16 + $0xb8] sm:$0xff]
    %v4705 = vld [vmem:[#allocation16 + $0xc0] sm:$0xff]
    %v4706 = vld [vmem:[#allocation16 + $0xc8] sm:$0xff]
    %v4707 = vld [vmem:[#allocation16 + $0xd0] sm:$0xff]
    %v4708 = vld [vmem:[#allocation16 + $0xd8] sm:$0xff]
    %v4709 = vld [vmem:[#allocation16 + $0xe0] sm:$0xff]
    %v4710 = vld [vmem:[#allocation16 + $0xe8] sm:$0xff]
    %v4711 = vld [vmem:[#allocation16 + $0xf0] sm:$0xff]
    %v4712 = vld [vmem:[#allocation16 + $0xf8] sm:$0xff]
    %v4713 = vunpack.c.0.s8 %v4681
    %v4714 = vunpack.c.0.s8 %v4682
    %v4715 = vunpack.c.1.s8 %v4681
    %v4716 = vunpack.c.1.s8 %v4682
    %v4717 = vunpack.c.2.s8 %v4681
    %v4718 = vunpack.c.2.s8 %v4682
    %v4719 = vunpack.c.3.s8 %v4681
    %v4720 = vunpack.c.3.s8 %v4682
    %v4721 = vunpack.c.0.s8 %v4683
    %v4722 = vunpack.c.0.s8 %v4684
    %v4723 = vunpack.c.1.s8 %v4683
    %v4724 = vunpack.c.1.s8 %v4684
    %v4725 = vunpack.c.2.s8 %v4683
    %v4726 = vunpack.c.2.s8 %v4684
    %v4727 = vunpack.c.3.s8 %v4683
    %v4728 = vunpack.c.3.s8 %v4684
    %v4729 = vunpack.c.0.s8 %v4685
    %v4730 = vunpack.c.0.s8 %v4686
    %v4731 = vunpack.c.1.s8 %v4685
    %v4732 = vunpack.c.1.s8 %v4686
    %v4733 = vunpack.c.2.s8 %v4685
    %v4734 = vunpack.c.2.s8 %v4686
    %v4735 = vunpack.c.3.s8 %v4685
    %v4736 = vunpack.c.3.s8 %v4686
    %v4737 = vunpack.c.0.s8 %v4687
    %v4738 = vunpack.c.0.s8 %v4688
    %v4739 = vunpack.c.1.s8 %v4687
    %v4740 = vunpack.c.1.s8 %v4688
    %v4741 = vunpack.c.2.s8 %v4687
    %v4742 = vunpack.c.2.s8 %v4688
    %v4743 = vunpack.c.3.s8 %v4687
    %v4744 = vunpack.c.3.s8 %v4688
    %v4745 = vunpack.c.0.s8 %v4689
    %v4746 = vunpack.c.0.s8 %v4690
    %v4747 = vunpack.c.1.s8 %v4689
    %v4748 = vunpack.c.1.s8 %v4690
    %v4749 = vunpack.c.2.s8 %v4689
    %v4750 = vunpack.c.2.s8 %v4690
    %v4751 = vunpack.c.3.s8 %v4689
    %v4752 = vunpack.c.3.s8 %v4690
    %v4753 = vunpack.c.0.s8 %v4691
    %v4754 = vunpack.c.0.s8 %v4692
    %v4755 = vunpack.c.1.s8 %v4691
    %v4756 = vunpack.c.1.s8 %v4692
    %v4757 = vunpack.c.2.s8 %v4691
    %v4758 = vunpack.c.2.s8 %v4692
    %v4759 = vunpack.c.3.s8 %v4691
    %v4760 = vunpack.c.3.s8 %v4692
    %v4761 = vunpack.c.0.s8 %v4693
    %v4762 = vunpack.c.0.s8 %v4694
    %v4763 = vunpack.c.1.s8 %v4693
    %v4764 = vunpack.c.1.s8 %v4694
    %v4765 = vunpack.c.2.s8 %v4693
    %v4766 = vunpack.c.2.s8 %v4694
    %v4767 = vunpack.c.3.s8 %v4693
    %v4768 = vunpack.c.3.s8 %v4694
    %v4769 = vunpack.c.0.s8 %v4695
    %v4770 = vunpack.c.0.s8 %v4696
    %v4771 = vunpack.c.1.s8 %v4695
    %v4772 = vunpack.c.1.s8 %v4696
    %v4773 = vunpack.c.2.s8 %v4695
    %v4774 = vunpack.c.2.s8 %v4696
    %v4775 = vunpack.c.3.s8 %v4695
    %v4776 = vunpack.c.3.s8 %v4696
    %v4777 = vunpack.c.0.s8 %v4697
    %v4778 = vunpack.c.0.s8 %v4698
    %v4779 = vunpack.c.1.s8 %v4697
    %v4780 = vunpack.c.1.s8 %v4698
    %v4781 = vunpack.c.2.s8 %v4697
    %v4782 = vunpack.c.2.s8 %v4698
    %v4783 = vunpack.c.3.s8 %v4697
    %v4784 = vunpack.c.3.s8 %v4698
    %v4785 = vunpack.c.0.s8 %v4699
    %v4786 = vunpack.c.0.s8 %v4700
    %v4787 = vunpack.c.1.s8 %v4699
    %v4788 = vunpack.c.1.s8 %v4700
    %v4789 = vunpack.c.2.s8 %v4699
    %v4790 = vunpack.c.2.s8 %v4700
    %v4791 = vunpack.c.3.s8 %v4699
    %v4792 = vunpack.c.3.s8 %v4700
    %v4793 = vunpack.c.0.s8 %v4701
    %v4794 = vunpack.c.0.s8 %v4702
    %v4795 = vunpack.c.1.s8 %v4701
    %v4796 = vunpack.c.1.s8 %v4702
    %v4797 = vunpack.c.2.s8 %v4701
    %v4798 = vunpack.c.2.s8 %v4702
    %v4799 = vunpack.c.3.s8 %v4701
    %v4800 = vunpack.c.3.s8 %v4702
    %v4801 = vunpack.c.0.s8 %v4703
    %v4802 = vunpack.c.0.s8 %v4704
    %v4803 = vunpack.c.1.s8 %v4703
    %v4804 = vunpack.c.1.s8 %v4704
    %v4805 = vunpack.c.2.s8 %v4703
    %v4806 = vunpack.c.2.s8 %v4704
    %v4807 = vunpack.c.3.s8 %v4703
    %v4808 = vunpack.c.3.s8 %v4704
    %v4809 = vunpack.c.0.s8 %v4705
    %v4810 = vunpack.c.0.s8 %v4706
    %v4811 = vunpack.c.1.s8 %v4705
    %v4812 = vunpack.c.1.s8 %v4706
    %v4813 = vunpack.c.2.s8 %v4705
    %v4814 = vunpack.c.2.s8 %v4706
    %v4815 = vunpack.c.3.s8 %v4705
    %v4816 = vunpack.c.3.s8 %v4706
    %v4817 = vunpack.c.0.s8 %v4707
    %v4818 = vunpack.c.0.s8 %v4708
    %v4819 = vunpack.c.1.s8 %v4707
    %v4820 = vunpack.c.1.s8 %v4708
    %v4821 = vunpack.c.2.s8 %v4707
    %v4822 = vunpack.c.2.s8 %v4708
    %v4823 = vunpack.c.3.s8 %v4707
    %v4824 = vunpack.c.3.s8 %v4708
    %v4825 = vunpack.c.0.s8 %v4709
    %v4826 = vunpack.c.0.s8 %v4710
    %v4827 = vunpack.c.1.s8 %v4709
    %v4828 = vunpack.c.1.s8 %v4710
    %v4829 = vunpack.c.2.s8 %v4709
    %v4830 = vunpack.c.2.s8 %v4710
    %v4831 = vunpack.c.3.s8 %v4709
    %v4832 = vunpack.c.3.s8 %v4710
    %v4833 = vunpack.c.0.s8 %v4711
    %v4834 = vunpack.c.0.s8 %v4712
    %v4835 = vunpack.c.1.s8 %v4711
    %v4836 = vunpack.c.1.s8 %v4712
    %v4837 = vunpack.c.2.s8 %v4711
    %v4838 = vunpack.c.2.s8 %v4712
    %v4839 = vunpack.c.3.s8 %v4711
    %v4840 = vunpack.c.3.s8 %v4712
    %v4841 = vcvt.s32.f32 %v4713
    %v4842 = vcvt.s32.f32 %v4714
    %v4843 = vcvt.s32.f32 %v4715
    %v4844 = vcvt.s32.f32 %v4716
    %v4845 = vcvt.s32.f32 %v4717
    %v4846 = vcvt.s32.f32 %v4718
    %v4847 = vcvt.s32.f32 %v4719
    %v4848 = vcvt.s32.f32 %v4720
    %v4849 = vcvt.s32.f32 %v4721
    %v4850 = vcvt.s32.f32 %v4722
    %v4851 = vcvt.s32.f32 %v4723
    %v4852 = vcvt.s32.f32 %v4724
    %v4853 = vcvt.s32.f32 %v4725
    %v4854 = vcvt.s32.f32 %v4726
    %v4855 = vcvt.s32.f32 %v4727
    %v4856 = vcvt.s32.f32 %v4728
    %v4857 = vcvt.s32.f32 %v4729
    %v4858 = vcvt.s32.f32 %v4730
    %v4859 = vcvt.s32.f32 %v4731
    %v4860 = vcvt.s32.f32 %v4732
    %v4861 = vcvt.s32.f32 %v4733
    %v4862 = vcvt.s32.f32 %v4734
    %v4863 = vcvt.s32.f32 %v4735
    %v4864 = vcvt.s32.f32 %v4736
    %v4865 = vcvt.s32.f32 %v4737
    %v4866 = vcvt.s32.f32 %v4738
    %v4867 = vcvt.s32.f32 %v4739
    %v4868 = vcvt.s32.f32 %v4740
    %v4869 = vcvt.s32.f32 %v4741
    %v4870 = vcvt.s32.f32 %v4742
    %v4871 = vcvt.s32.f32 %v4743
    %v4872 = vcvt.s32.f32 %v4744
    %v4873 = vcvt.s32.f32 %v4745
    %v4874 = vcvt.s32.f32 %v4746
    %v4875 = vcvt.s32.f32 %v4747
    %v4876 = vcvt.s32.f32 %v4748
    %v4877 = vcvt.s32.f32 %v4749
    %v4878 = vcvt.s32.f32 %v4750
    %v4879 = vcvt.s32.f32 %v4751
    %v4880 = vcvt.s32.f32 %v4752
    %v4881 = vcvt.s32.f32 %v4753
    %v4882 = vcvt.s32.f32 %v4754
    %v4883 = vcvt.s32.f32 %v4755
    %v4884 = vcvt.s32.f32 %v4756
    %v4885 = vcvt.s32.f32 %v4757
    %v4886 = vcvt.s32.f32 %v4758
    %v4887 = vcvt.s32.f32 %v4759
    %v4888 = vcvt.s32.f32 %v4760
    %v4889 = vcvt.s32.f32 %v4761
    %v4890 = vcvt.s32.f32 %v4762
    %v4891 = vcvt.s32.f32 %v4763
    %v4892 = vcvt.s32.f32 %v4764
    %v4893 = vcvt.s32.f32 %v4765
    %v4894 = vcvt.s32.f32 %v4766
    %v4895 = vcvt.s32.f32 %v4767
    %v4896 = vcvt.s32.f32 %v4768
    %v4897 = vcvt.s32.f32 %v4769
    %v4898 = vcvt.s32.f32 %v4770
    %v4899 = vcvt.s32.f32 %v4771
    %v4900 = vcvt.s32.f32 %v4772
    %v4901 = vcvt.s32.f32 %v4773
    %v4902 = vcvt.s32.f32 %v4774
    %v4903 = vcvt.s32.f32 %v4775
    %v4904 = vcvt.s32.f32 %v4776
    %v4905 = vcvt.s32.f32 %v4777
    %v4906 = vcvt.s32.f32 %v4778
    %v4907 = vcvt.s32.f32 %v4779
    %v4908 = vcvt.s32.f32 %v4780
    %v4909 = vcvt.s32.f32 %v4781
    %v4910 = vcvt.s32.f32 %v4782
    %v4911 = vcvt.s32.f32 %v4783
    %v4912 = vcvt.s32.f32 %v4784
    %v4913 = vcvt.s32.f32 %v4785
    %v4914 = vcvt.s32.f32 %v4786
    %v4915 = vcvt.s32.f32 %v4787
    %v4916 = vcvt.s32.f32 %v4788
    %v4917 = vcvt.s32.f32 %v4789
    %v4918 = vcvt.s32.f32 %v4790
    %v4919 = vcvt.s32.f32 %v4791
    %v4920 = vcvt.s32.f32 %v4792
    %v4921 = vcvt.s32.f32 %v4793
    %v4922 = vcvt.s32.f32 %v4794
    %v4923 = vcvt.s32.f32 %v4795
    %v4924 = vcvt.s32.f32 %v4796
    %v4925 = vcvt.s32.f32 %v4797
    %v4926 = vcvt.s32.f32 %v4798
    %v4927 = vcvt.s32.f32 %v4799
    %v4928 = vcvt.s32.f32 %v4800
    %v4929 = vcvt.s32.f32 %v4801
    %v4930 = vcvt.s32.f32 %v4802
    %v4931 = vcvt.s32.f32 %v4803
    %v4932 = vcvt.s32.f32 %v4804
    %v4933 = vcvt.s32.f32 %v4805
    %v4934 = vcvt.s32.f32 %v4806
    %v4935 = vcvt.s32.f32 %v4807
    %v4936 = vcvt.s32.f32 %v4808
    %v4937 = vcvt.s32.f32 %v4809
    %v4938 = vcvt.s32.f32 %v4810
    %v4939 = vcvt.s32.f32 %v4811
    %v4940 = vcvt.s32.f32 %v4812
    %v4941 = vcvt.s32.f32 %v4813
    %v4942 = vcvt.s32.f32 %v4814
    %v4943 = vcvt.s32.f32 %v4815
    %v4944 = vcvt.s32.f32 %v4816
    %v4945 = vcvt.s32.f32 %v4817
    %v4946 = vcvt.s32.f32 %v4818
    %v4947 = vcvt.s32.f32 %v4819
    %v4948 = vcvt.s32.f32 %v4820
    %v4949 = vcvt.s32.f32 %v4821
    %v4950 = vcvt.s32.f32 %v4822
    %v4951 = vcvt.s32.f32 %v4823
    %v4952 = vcvt.s32.f32 %v4824
    %v4953 = vcvt.s32.f32 %v4825
    %v4954 = vcvt.s32.f32 %v4826
    %v4955 = vcvt.s32.f32 %v4827
    %v4956 = vcvt.s32.f32 %v4828
    %v4957 = vcvt.s32.f32 %v4829
    %v4958 = vcvt.s32.f32 %v4830
    %v4959 = vcvt.s32.f32 %v4831
    %v4960 = vcvt.s32.f32 %v4832
    %v4961 = vcvt.s32.f32 %v4833
    %v4962 = vcvt.s32.f32 %v4834
    %v4963 = vcvt.s32.f32 %v4835
    %v4964 = vcvt.s32.f32 %v4836
    %v4965 = vcvt.s32.f32 %v4837
    %v4966 = vcvt.s32.f32 %v4838
    %v4967 = vcvt.s32.f32 %v4839
    %v4968 = vcvt.s32.f32 %v4840
    %v4969 = vld [vmem:[%s41] sm:$0x3]
    %v4971 = vlaneseq
    %v4972 = vshrl.u32 %v4971, 7
    %v4973 = vsub.s32 0, %v4972
    %v4974 = vrot.slane %v4969, %v4973
    %v4975 = vlaneseq
    %v4976 = vshrl.u32 %v4975, 7
    %v4977 = vsub.s32 1, %v4976
    %v4978 = vrot.slane %v4969, %v4977
    %v4981 = vmul.f32 %v4841, %v4974
    %v4982 = vmul.f32 %v4842, %v4978
    %v4983 = vmul.f32 %v4843, %v4974
    %v4984 = vmul.f32 %v4844, %v4978
    %v4985 = vmul.f32 %v4845, %v4974
    %v4986 = vmul.f32 %v4846, %v4978
    %v4987 = vmul.f32 %v4847, %v4974
    %v4988 = vmul.f32 %v4848, %v4978
    %v4989 = vmul.f32 %v4849, %v4974
    %v4990 = vmul.f32 %v4850, %v4978
    %v4991 = vmul.f32 %v4851, %v4974
    %v4992 = vmul.f32 %v4852, %v4978
    %v4993 = vmul.f32 %v4853, %v4974
    %v4994 = vmul.f32 %v4854, %v4978
    %v4995 = vmul.f32 %v4855, %v4974
    %v4996 = vmul.f32 %v4856, %v4978
    %v4997 = vmul.f32 %v4857, %v4974
    %v4998 = vmul.f32 %v4858, %v4978
    %v4999 = vmul.f32 %v4859, %v4974
    %v5000 = vmul.f32 %v4860, %v4978
    %v5001 = vmul.f32 %v4861, %v4974
    %v5002 = vmul.f32 %v4862, %v4978
    %v5003 = vmul.f32 %v4863, %v4974
    %v5004 = vmul.f32 %v4864, %v4978
    %v5005 = vmul.f32 %v4865, %v4974
    %v5006 = vmul.f32 %v4866, %v4978
    %v5007 = vmul.f32 %v4867, %v4974
    %v5008 = vmul.f32 %v4868, %v4978
    %v5009 = vmul.f32 %v4869, %v4974
    %v5010 = vmul.f32 %v4870, %v4978
    %v5011 = vmul.f32 %v4871, %v4974
    %v5012 = vmul.f32 %v4872, %v4978
    %v5013 = vmul.f32 %v4873, %v4974
    %v5014 = vmul.f32 %v4874, %v4978
    %v5015 = vmul.f32 %v4875, %v4974
    %v5016 = vmul.f32 %v4876, %v4978
    %v5017 = vmul.f32 %v4877, %v4974
    %v5018 = vmul.f32 %v4878, %v4978
    %v5019 = vmul.f32 %v4879, %v4974
    %v5020 = vmul.f32 %v4880, %v4978
    %v5021 = vmul.f32 %v4881, %v4974
    %v5022 = vmul.f32 %v4882, %v4978
    %v5023 = vmul.f32 %v4883, %v4974
    %v5024 = vmul.f32 %v4884, %v4978
    %v5025 = vmul.f32 %v4885, %v4974
    %v5026 = vmul.f32 %v4886, %v4978
    %v5027 = vmul.f32 %v4887, %v4974
    %v5028 = vmul.f32 %v4888, %v4978
    %v5029 = vmul.f32 %v4889, %v4974
    %v5030 = vmul.f32 %v4890, %v4978
    %v5031 = vmul.f32 %v4891, %v4974
    %v5032 = vmul.f32 %v4892, %v4978
    %v5033 = vmul.f32 %v4893, %v4974
    %v5034 = vmul.f32 %v4894, %v4978
    %v5035 = vmul.f32 %v4895, %v4974
    %v5036 = vmul.f32 %v4896, %v4978
    %v5037 = vmul.f32 %v4897, %v4974
    %v5038 = vmul.f32 %v4898, %v4978
    %v5039 = vmul.f32 %v4899, %v4974
    %v5040 = vmul.f32 %v4900, %v4978
    %v5041 = vmul.f32 %v4901, %v4974
    %v5042 = vmul.f32 %v4902, %v4978
    %v5043 = vmul.f32 %v4903, %v4974
    %v5044 = vmul.f32 %v4904, %v4978
    %v5045 = vmul.f32 %v4905, %v4974
    %v5046 = vmul.f32 %v4906, %v4978
    %v5047 = vmul.f32 %v4907, %v4974
    %v5048 = vmul.f32 %v4908, %v4978
    %v5049 = vmul.f32 %v4909, %v4974
    %v5050 = vmul.f32 %v4910, %v4978
    %v5051 = vmul.f32 %v4911, %v4974
    %v5052 = vmul.f32 %v4912, %v4978
    %v5053 = vmul.f32 %v4913, %v4974
    %v5054 = vmul.f32 %v4914, %v4978
    %v5055 = vmul.f32 %v4915, %v4974
    %v5056 = vmul.f32 %v4916, %v4978
    %v5057 = vmul.f32 %v4917, %v4974
    %v5058 = vmul.f32 %v4918, %v4978
    %v5059 = vmul.f32 %v4919, %v4974
    %v5060 = vmul.f32 %v4920, %v4978
    %v5061 = vmul.f32 %v4921, %v4974
    %v5062 = vmul.f32 %v4922, %v4978
    %v5063 = vmul.f32 %v4923, %v4974
    %v5064 = vmul.f32 %v4924, %v4978
    %v5065 = vmul.f32 %v4925, %v4974
    %v5066 = vmul.f32 %v4926, %v4978
    %v5067 = vmul.f32 %v4927, %v4974
    %v5068 = vmul.f32 %v4928, %v4978
    %v5069 = vmul.f32 %v4929, %v4974
    %v5070 = vmul.f32 %v4930, %v4978
    %v5071 = vmul.f32 %v4931, %v4974
    %v5072 = vmul.f32 %v4932, %v4978
    %v5073 = vmul.f32 %v4933, %v4974
    %v5074 = vmul.f32 %v4934, %v4978
    %v5075 = vmul.f32 %v4935, %v4974
    %v5076 = vmul.f32 %v4936, %v4978
    %v5077 = vmul.f32 %v4937, %v4974
    %v5078 = vmul.f32 %v4938, %v4978
    %v5079 = vmul.f32 %v4939, %v4974
    %v5080 = vmul.f32 %v4940, %v4978
    %v5081 = vmul.f32 %v4941, %v4974
    %v5082 = vmul.f32 %v4942, %v4978
    %v5083 = vmul.f32 %v4943, %v4974
    %v5084 = vmul.f32 %v4944, %v4978
    %v5085 = vmul.f32 %v4945, %v4974
    %v5086 = vmul.f32 %v4946, %v4978
    %v5087 = vmul.f32 %v4947, %v4974
    %v5088 = vmul.f32 %v4948, %v4978
    %v5089 = vmul.f32 %v4949, %v4974
    %v5090 = vmul.f32 %v4950, %v4978
    %v5091 = vmul.f32 %v4951, %v4974
    %v5092 = vmul.f32 %v4952, %v4978
    %v5093 = vmul.f32 %v4953, %v4974
    %v5094 = vmul.f32 %v4954, %v4978
    %v5095 = vmul.f32 %v4955, %v4974
    %v5096 = vmul.f32 %v4956, %v4978
    %v5097 = vmul.f32 %v4957, %v4974
    %v5098 = vmul.f32 %v4958, %v4978
    %v5099 = vmul.f32 %v4959, %v4974
    %v5100 = vmul.f32 %v4960, %v4978
    %v5101 = vmul.f32 %v4961, %v4974
    %v5102 = vmul.f32 %v4962, %v4978
    %v5103 = vmul.f32 %v4963, %v4974
    %v5104 = vmul.f32 %v4964, %v4978
    %v5105 = vmul.f32 %v4965, %v4974
    %v5106 = vmul.f32 %v4966, %v4978
    %v5107 = vmul.f32 %v4967, %v4974
    %v5108 = vmul.f32 %v4968, %v4978
    %v5109 = vpack.c.bf16 %v4983, %v4981
    %v5110 = vpack.c.bf16 %v4984, %v4982
    %v5111 = vpack.c.bf16 %v4987, %v4985
    %v5112 = vpack.c.bf16 %v4988, %v4986
    %v5113 = vpack.c.bf16 %v4991, %v4989
    %v5114 = vpack.c.bf16 %v4992, %v4990
    %v5115 = vpack.c.bf16 %v4995, %v4993
    %v5116 = vpack.c.bf16 %v4996, %v4994
    %v5117 = vpack.c.bf16 %v4999, %v4997
    %v5118 = vpack.c.bf16 %v5000, %v4998
    %v5119 = vpack.c.bf16 %v5003, %v5001
    %v5120 = vpack.c.bf16 %v5004, %v5002
    %v5121 = vpack.c.bf16 %v5007, %v5005
    %v5122 = vpack.c.bf16 %v5008, %v5006
    %v5123 = vpack.c.bf16 %v5011, %v5009
    %v5124 = vpack.c.bf16 %v5012, %v5010
    %v5125 = vpack.c.bf16 %v5015, %v5013
    %v5126 = vpack.c.bf16 %v5016, %v5014
    %v5127 = vpack.c.bf16 %v5019, %v5017
    %v5128 = vpack.c.bf16 %v5020, %v5018
    %v5129 = vpack.c.bf16 %v5023, %v5021
    %v5130 = vpack.c.bf16 %v5024, %v5022
    %v5131 = vpack.c.bf16 %v5027, %v5025
    %v5132 = vpack.c.bf16 %v5028, %v5026
    %v5133 = vpack.c.bf16 %v5031, %v5029
    %v5134 = vpack.c.bf16 %v5032, %v5030
    %v5135 = vpack.c.bf16 %v5035, %v5033
    %v5136 = vpack.c.bf16 %v5036, %v5034
    %v5137 = vpack.c.bf16 %v5039, %v5037
    %v5138 = vpack.c.bf16 %v5040, %v5038
    %v5139 = vpack.c.bf16 %v5043, %v5041
    %v5140 = vpack.c.bf16 %v5044, %v5042
    %v5141 = vpack.c.bf16 %v5047, %v5045
    %v5142 = vpack.c.bf16 %v5048, %v5046
    %v5143 = vpack.c.bf16 %v5051, %v5049
    %v5144 = vpack.c.bf16 %v5052, %v5050
    %v5145 = vpack.c.bf16 %v5055, %v5053
    %v5146 = vpack.c.bf16 %v5056, %v5054
    %v5147 = vpack.c.bf16 %v5059, %v5057
    %v5148 = vpack.c.bf16 %v5060, %v5058
    %v5149 = vpack.c.bf16 %v5063, %v5061
    %v5150 = vpack.c.bf16 %v5064, %v5062
    %v5151 = vpack.c.bf16 %v5067, %v5065
    %v5152 = vpack.c.bf16 %v5068, %v5066
    %v5153 = vpack.c.bf16 %v5071, %v5069
    %v5154 = vpack.c.bf16 %v5072, %v5070
    %v5155 = vpack.c.bf16 %v5075, %v5073
    %v5156 = vpack.c.bf16 %v5076, %v5074
    %v5157 = vpack.c.bf16 %v5079, %v5077
    %v5158 = vpack.c.bf16 %v5080, %v5078
    %v5159 = vpack.c.bf16 %v5083, %v5081
    %v5160 = vpack.c.bf16 %v5084, %v5082
    %v5161 = vpack.c.bf16 %v5087, %v5085
    %v5162 = vpack.c.bf16 %v5088, %v5086
    %v5163 = vpack.c.bf16 %v5091, %v5089
    %v5164 = vpack.c.bf16 %v5092, %v5090
    %v5165 = vpack.c.bf16 %v5095, %v5093
    %v5166 = vpack.c.bf16 %v5096, %v5094
    %v5167 = vpack.c.bf16 %v5099, %v5097
    %v5168 = vpack.c.bf16 %v5100, %v5098
    %v5169 = vpack.c.bf16 %v5103, %v5101
    %v5170 = vpack.c.bf16 %v5104, %v5102
    %v5171 = vpack.c.bf16 %v5107, %v5105
    %v5172 = vpack.c.bf16 %v5108, %v5106
    %v5173 = vld [vmem:[%s61] sm:$0x3]
    %v5175 = vlaneseq
    %v5176 = vshrl.u32 %v5175, 7
    %v5177 = vsub.s32 0, %v5176
    %v5178 = vrot.slane %v5173, %v5177
    %v5179 = vlaneseq
    %v5180 = vshrl.u32 %v5179, 7
    %v5181 = vsub.s32 1, %v5180
    %v5182 = vrot.slane %v5173, %v5181
    %5185 = vmatprep.subr.bf16.mxu0 %v5110
    %5186 = vmatpush1.bf16.msra.mxu0 %v5109
    %5187 = vmatprep.subr.bf16.mxu0 %v5112
    %5188 = vmatpush1.bf16.msra.mxu0 %v5111
    %5189 = vmatprep.subr.bf16.mxu0 %v5114
    %5190 = vmatpush1.bf16.msra.mxu0 %v5113
    %5191 = vmatprep.subr.bf16.mxu0 %v5116
    %5192 = vmatpush1.bf16.msra.mxu0 %v5115
    %5193 = vmatprep.subr.bf16.mxu0 %v5118
    %5194 = vmatpush1.bf16.msra.mxu0 %v5117
    %5195 = vmatprep.subr.bf16.mxu0 %v5120
    %5196 = vmatpush1.bf16.msra.mxu0 %v5119
    %5197 = vmatprep.subr.bf16.mxu0 %v5122
    %5198 = vmatpush1.bf16.msra.mxu0 %v5121
    %5199 = vmatprep.subr.bf16.mxu0 %v5124
    %5200 = vmatpush1.bf16.msra.mxu0 %v5123
    %5201 = vmatprep.subr.bf16.mxu0 %v5126
    %5202 = vmatpush1.bf16.msra.mxu0 %v5125
    %5203 = vmatprep.subr.bf16.mxu0 %v5128
    %5204 = vmatpush1.bf16.msra.mxu0 %v5127
    %5205 = vmatprep.subr.bf16.mxu0 %v5130
    %5206 = vmatpush1.bf16.msra.mxu0 %v5129
    %5207 = vmatprep.subr.bf16.mxu0 %v5132
    %5208 = vmatpush1.bf16.msra.mxu0 %v5131
    %5209 = vmatprep.subr.bf16.mxu0 %v5134
    %5210 = vmatpush1.bf16.msra.mxu0 %v5133
    %5211 = vmatprep.subr.bf16.mxu0 %v5136
    %5212 = vmatpush1.bf16.msra.mxu0 %v5135
    %5213 = vmatprep.subr.bf16.mxu0 %v5138
    %5214 = vmatpush1.bf16.msra.mxu0 %v5137
    %5215 = vmatprep.subr.bf16.mxu0 %v5140
    %5216 = vmatpush1.bf16.msra.mxu0 %v5139
    %5217 = vmatprep.mubr.bf16.mxu0 %v4678
    %5218 = vmatmul.mubr.bf16.gmra.mrb[0].mxu0 %v4677
    %v5219 = vpop.f32.mrb[0].mxu0
    %v5220 = vadd.f32 %v5178, %v5219
    %v5221 = vpop.f32.mrb[0].mxu0
    %v5222 = vadd.f32 %v5182, %v5221
    %v5223 = vpop.f32.mrb[0].mxu0
    %v5224 = vpop.f32.mrb[0].mxu0
    %5225 = vdwg.mxu0
    %5226 = vmatprep.subr.bf16.mxu0 %v5142
    %5227 = vmatpush1.bf16.msra.mxu0 %v5141
    %5228 = vmatprep.subr.bf16.mxu0 %v5144
    %5229 = vmatpush1.bf16.msra.mxu0 %v5143
    %5230 = vmatprep.subr.bf16.mxu0 %v5146
    %5231 = vmatpush1.bf16.msra.mxu0 %v5145
    %5232 = vmatprep.subr.bf16.mxu0 %v5148
    %5233 = vmatpush1.bf16.msra.mxu0 %v5147
    %5234 = vmatprep.subr.bf16.mxu0 %v5150
    %5235 = vmatpush1.bf16.msra.mxu0 %v5149
    %5236 = vmatprep.subr.bf16.mxu0 %v5152
    %5237 = vmatpush1.bf16.msra.mxu0 %v5151
    %5238 = vmatprep.subr.bf16.mxu0 %v5154
    %5239 = vmatpush1.bf16.msra.mxu0 %v5153
    %5240 = vmatprep.subr.bf16.mxu0 %v5156
    %5241 = vmatpush1.bf16.msra.mxu0 %v5155
    %5242 = vmatprep.subr.bf16.mxu0 %v5158
    %5243 = vmatpush1.bf16.msra.mxu0 %v5157
    %5244 = vmatprep.subr.bf16.mxu0 %v5160
    %5245 = vmatpush1.bf16.msra.mxu0 %v5159
    %5246 = vmatprep.subr.bf16.mxu0 %v5162
    %5247 = vmatpush1.bf16.msra.mxu0 %v5161
    %5248 = vmatprep.subr.bf16.mxu0 %v5164
    %5249 = vmatpush1.bf16.msra.mxu0 %v5163
    %5250 = vmatprep.subr.bf16.mxu0 %v5166
    %5251 = vmatpush1.bf16.msra.mxu0 %v5165
    %5252 = vmatprep.subr.bf16.mxu0 %v5168
    %5253 = vmatpush1.bf16.msra.mxu0 %v5167
    %5254 = vmatprep.subr.bf16.mxu0 %v5170
    %5255 = vmatpush1.bf16.msra.mxu0 %v5169
    %5256 = vmatprep.subr.bf16.mxu0 %v5172
    %5257 = vmatpush1.bf16.msra.mxu0 %v5171
    %5258 = vmatprep.mubr.bf16.mxu0 %v4680
    %5259 = vmatmul.mubr.bf16.gmra.mrb[0].mxu0 %v4679
    %v5260 = vpop.f32.mrb[0].mxu0
    %v5261 = vadd.f32 %v5220, %v5260
    %v5262 = vpop.f32.mrb[0].mxu0
    %v5263 = vadd.f32 %v5222, %v5262
    %v5264 = vpop.f32.mrb[0].mxu0
    %v5265 = vpop.f32.mrb[0].mxu0
    %5266 = vdwg.mxu0
    %5267 = vst [vmem:[%s65] sm:$0xff] %v5261
    %5268 = vst [vmem:[%s65 + $0x8] sm:$0xff] %v5263
    // Predicated region
    $region166: #{autoencoder_apply.1} parent=1 // pred_check
      _
    $region167: #{autoencoder_apply.1} parent=1 // pred_check_branch
      %5270 = sbr.rel (0) target = $region169
    $region168: #{autoencoder_apply.1} parent=1 // pred_region
      _
    $region169: #{autoencoder_apply.1} parent=1 // pred_fallthru
      _
    // Predicated region
    $region170: #{autoencoder_apply.1} parent=1 // pred_check
      _
    $region171: #{autoencoder_apply.1} parent=1 // pred_check_branch
      %5272 = sbr.rel (0) target = $region173
    $region172: #{autoencoder_apply.1} parent=1 // pred_region
      _
    $region173: #{autoencoder_apply.1} parent=1 // pred_fallthru
      _
    // Predicated region
    $region174: #{autoencoder_apply.1} parent=1 // pred_check
      _
    $region175: #{autoencoder_apply.1} parent=1 // pred_check_branch
      %5274 = sbr.rel (0) target = $region177
    $region176: #{autoencoder_apply.1} parent=1 // pred_region
      _
    $region177: #{autoencoder_apply.1} parent=1 // pred_fallthru
      _
    // Predicated region
    $region178: #{autoencoder_apply.1} parent=1 // pred_check
      _
    $region179: #{autoencoder_apply.1} parent=1 // pred_check_branch
      %5276 = sbr.rel (0) target = $region181
    $region180: #{autoencoder_apply.1} parent=1 // pred_region
      _
    $region181: #{autoencoder_apply.1} parent=1 // pred_fallthru
      _
    %5277 = vsyncpa [#allocation3], 1
    %5278 = vsyncpa [#allocation5], 1
    %5279 = vsyncpa [#allocation8], 1
    %5280 = vsyncpa [#allocation11], 1
    %5281 = vsyncpa [#allocation14], 1
    %5282 = vsyncpa [#allocation17], 1

</llo_original>
